<compile_context>
chip_gen: v7x
topology: tpu7x:2x2x1
jax: 0.10.0
libtpu: 0.0.40
codegen_flags: <defaults>
</compile_context>

<pallas_src>
import numpy as np
import jax
import jax.numpy as jnp
from jax.experimental import pallas as pl
from jax.experimental.pallas import tpu as pltpu

LRELU_SLOPE = 0.2
BN_EPS = 1e-5
KW = 4      # conv kernel size
PADW = 1    # conv padding


# ----------------------------------------------------------------------------
# Parameter init (mirrors the PyTorch module structure)
# ----------------------------------------------------------------------------
def init_net_d_params(key, input_nc, ndf=8, n_layers=3):
    # (cin, cout, stride, has_bias, has_bn, has_lrelu) per conv layer.
    cfgs = [(input_nc, ndf, 2, True, False, True)]                    # model1
    nf_mult = 1
    for nl in range(1, n_layers):                                     # modellist
        prev, nf_mult = nf_mult, min(2 ** nl, 8)
        cfgs.append((ndf * prev, ndf * nf_mult, 2, False, True, True))
    prev, nf_mult = nf_mult, min(2 ** n_layers, 8)
    cfgs.append((ndf * prev, ndf * nf_mult, 1, False, True, True))    # model2
    cfgs.append((ndf * nf_mult, 1, 1, True, False, False))            # model3

    params = []
    for cin, cout, stride, has_bias, has_bn, has_lrelu in cfgs:
        key, k_w, k_b = jax.random.split(key, 3)
        w = 0.02 * jax.random.normal(k_w, (cout, cin, KW, KW), jnp.float32)
        b = (0.01 * jax.random.normal(k_b, (cout,), jnp.float32)
             if has_bias else jnp.zeros((cout,), jnp.float32))
        params.append(dict(
            w=w, b=b,
            gamma=jnp.ones((cout,), jnp.float32),   # BatchNorm2d default weight
            beta=jnp.zeros((cout,), jnp.float32),   # BatchNorm2d default bias
            stride=stride, has_bias=has_bias, has_bn=has_bn, has_lrelu=has_lrelu))
    return params


# ----------------------------------------------------------------------------
# Constant-operand builders (run once at build time, pure numpy)
# ----------------------------------------------------------------------------
def _conv_out(sz, stride):
    return (sz + 2 * PADW - KW) // stride + 1


def _round_up(x, m):
    return (x + m - 1) // m * m


def _make_sel(n, hin, hout, stride):
    """(KW*NHp, N*Hin) 0/1 matrix gathering ALL 4 kh row sets in one matmul.

    Row (kh*NHp + b*hout + ho) selects input row (b, stride*ho + kh - 1);
    rows hitting the H zero-padding (and the sublane-alignment filler rows)
    are all-zero.  NHp = round_up(N*hout, 8) so each kh block starts on an
    8-sublane boundary (clean static slicing inside the kernel)."""
    nh = n * hout
    nhp = _round_up(nh, 8)
    sel = np.zeros((KW * nhp, n * hin), np.float32)
    for kh in range(KW):
        for b in range(n):
            for ho in range(hout):
                h = stride * ho + kh - PADW
                if 0 <= h < hin:
                    sel[kh * nhp + b * hout + ho, b * hin + h] = 1.0
    return sel


def _make_wbs(w_oihw, win, wout, stride, cin_store):
    """(KW*Win*CinStore, Wout*Cout): kh-stacked im2col weight.

    Row block kh holds the conv weight scattered over the (wi, cin) lane
    layout of the input; kw, the conv stride and the W-direction zero padding
    are folded in.  cin_store >= cin allows a zero-padded channel layout."""
    cout, cin = int(w_oihw.shape[0]), int(w_oihw.shape[1])
    w_np = np.asarray(w_oihw, np.float32)
    wbs = np.zeros((KW * win * cin_store, wout * cout), np.float32)
    for kh in range(KW):
        for kw in range(KW):
            for wo in range(wout):
                wi = stride * wo + kw - PADW
                if 0 <= wi < win:
                    r0 = kh * win * cin_store + wi * cin_store
                    wbs[r0:r0 + cin, wo * cout:(wo + 1) * cout] = w_np[:, :, kh, kw].T
    return wbs


def _row_expand(vec, wout):
    """(Cout,) -> (1, Wout*Cout) laid out as [w0c0..w0cC, w1c0..]."""
    return np.tile(np.asarray(vec, np.float32), wout).reshape(1, -1)


# ----------------------------------------------------------------------------
# Fused Pallas kernel: all 5 conv(+bias)(+BN)(+LeakyReLU) layers in one call
# ----------------------------------------------------------------------------
def _build_kernel(layer_meta, n_in):
    def kernel(*refs):
        in_refs, out_refs = refs[:n_in], refs[n_in:]
        x = in_refs[0][...]                      # (N*H, W*C) f32 activation
        i = 1
        for li, m in enumerate(layer_meta):
            sel = in_refs[i][...]                # (KW*NHp, N*Hin)
            wbs = in_refs[i + 1][...]            # (KW*Win*Cin, Wout*Cout)
            i += 2
            nh, nhp = m["nh"], m["nhp"]

            # One MXU push gathers the rows for all 4 kh taps (padding,
            # stride and batch blocking are folded into the constant SEL).
            rows = jnp.dot(sel, x, preferred_element_type=jnp.float32)
            # im2col patches: lane-concat the 4 kh row blocks (VPU/XLU only),
            # then ONE conv matmul with K = KW*Win*Cin.
            patches = jnp.concatenate(
                [rows[kh * nhp:kh * nhp + nh, :] for kh in range(KW)], axis=-1)
            acc = jnp.dot(patches, wbs, preferred_element_type=jnp.float32)

            if m["has_bias"]:
                acc = acc + in_refs[i][...]      # (1, Wout*Cout) bias row
                i += 1

            if m["has_bn"]:
                # Training-mode batch statistics over (N, Hout, Wout), biased
                # variance, eps=1e-5.  Per-channel reduction = sublane row
                # reduce + static lane-chunk sums; broadcast back with a
                # lane concat.  No MXU work, no constants.
                gamma_c = in_refs[i][...]        # (1, Cout)
                beta_row = in_refs[i + 1][...]   # (1, Wout*Cout)
                i += 2
                wout, cout = m["wout"], m["cout"]
                inv = 1.0 / (nh * wout)

                def group_sum(row):              # (1, Wout*Cout) -> (1, Cout)
                    tot = row[:, 0:cout]
                    for wv in range(1, wout):
                        tot = tot + row[:, wv * cout:(wv + 1) * cout]
                    return tot

                srow = jnp.sum(acc, axis=0, keepdims=True)
                mean_c = group_sum(srow) * inv
                mrow = jnp.concatenate([mean_c] * wout, axis=-1)
                xc = acc - mrow
                s2row = jnp.sum(xc * xc, axis=0, keepdims=True)
                var_c = group_sum(s2row) * inv
                scale_c = gamma_c * jax.lax.rsqrt(var_c + BN_EPS)   # rsqrt -> EUP
                scale_row = jnp.concatenate([scale_c] * wout, axis=-1)
                acc = xc * scale_row + beta_row

            if m["has_lrelu"]:
                acc = jnp.where(acc > 0, acc, LRELU_SLOPE * acc)

            out_refs[li][...] = acc              # lane-dense (N*Hout, Wout*Cout)
            x = acc                              # feed next layer (stays in VMEM)

    return kernel


def build_fused_net(params, batch, height, width):
    """Precompute all constant operands and build the single fused kernel."""
    n = batch
    hin, win = height, width
    cin_real = int(params[0]["w"].shape[1])

    # Pad layer-1 channels so the lane width (Win*Cin) is a multiple of 128
    # (keeps every kh lane-concat offset 128-aligned).
    cin_store = cin_real
    for c in range(cin_real, cin_real + 32):
        if (win * c) % 128 == 0:
            cin_store = c
            break

    layer_meta, kernel_inputs, out_dims = [], [], []
    flops = 0
    transcendentals = 0
    cin_layout = cin_store
    for p in params:
        w = np.asarray(p["w"], np.float32)
        cout = int(w.shape[0])
        s = int(p["stride"])
        hout, wout = _conv_out(hin, s), _conv_out(win, s)
        nh = n * hout
        nhp = _round_up(nh, 8)

        kernel_inputs.append(jnp.asarray(_make_sel(n, hin, hout, s)))
        kernel_inputs.append(jnp.asarray(_make_wbs(w, win, wout, s, cin_layout)))
        if p["has_bias"]:
            kernel_inputs.append(jnp.asarray(_row_expand(p["b"], wout)))
        if p["has_bn"]:
            kernel_inputs.append(
                jnp.asarray(np.asarray(p["gamma"], np.float32).reshape(1, cout)))
            kernel_inputs.append(jnp.asarray(_row_expand(p["beta"], wout)))

        layer_meta.append(dict(nh=nh, nhp=nhp, wout=wout, cout=cout,
                               has_bias=bool(p["has_bias"]),
                               has_bn=bool(p["has_bn"]),
                               has_lrelu=bool(p["has_lrelu"])))
        out_dims.append((hout, wout, cout))

        flops += 2 * (KW * nhp) * (n * hin) * (win * cin_layout)      # row gather
        flops += 2 * nh * (KW * win * cin_layout) * (wout * cout)     # conv matmul
        if p["has_bn"]:
            flops += 6 * nh * wout * cout                             # BN stats
            transcendentals += cout                                   # rsqrt
        hin, win, cin_layout = hout, wout, cout

    bytes_accessed = 4 * (n * height * width * cin_store
                          + sum(int(a.size) for a in kernel_inputs)
                          + sum(n * ho * wo * co for ho, wo, co in out_dims))

    return dict(
        kernel=_build_kernel(layer_meta, n_in=1 + len(kernel_inputs)),
        kernel_inputs=kernel_inputs,
        out_dims=out_dims,
        cin_store=cin_store,
        cost=pl.CostEstimate(flops=int(flops),
                             transcendentals=int(transcendentals),
                             bytes_accessed=int(bytes_accessed)),
    )


def net_d_forward(x_nchw, plan):
    """Returns the list of 5 intermediate outputs (NCHW), like PyTorch forward."""
    nb, c, h, w = x_nchw.shape
    cpad = plan["cin_store"]
    if cpad > c:
        x_nchw = jnp.pad(x_nchw, ((0, 0), (0, cpad - c), (0, 0), (0, 0)))
    # Single layout hop into the kernel: NCHW -> NHWC -> (N*H, W*C).
    x2d = jnp.transpose(x_nchw, (0, 2, 3, 1)).reshape(nb * h, w * cpad)

    vmem = pl.BlockSpec(memory_space=pltpu.MemorySpace.VMEM)
    out_shape = tuple(jax.ShapeDtypeStruct((nb * ho, wo * co), jnp.float32)
                      for ho, wo, co in plan["out_dims"])
    outs2d = pl.pallas_call(
        plan["kernel"],
        out_shape=out_shape,
        in_specs=[vmem] * (1 + len(plan["kernel_inputs"])),
        out_specs=tuple(vmem for _ in out_shape),
        cost_estimate=plan["cost"],
    )(x2d, *plan["kernel_inputs"])

    outputs = []
    for o2d, (ho, wo, co) in zip(outs2d, plan["out_dims"]):
        outputs.append(jnp.transpose(o2d.reshape(nb, ho, wo, co), (0, 3, 1, 2)))
    return outputs


# ----------------------------------------------------------------------------
# Pure-JAX reference (correctness sanity check)
# ----------------------------------------------------------------------------
def _conv_layer_ref(x, p):
    s = p["stride"]
    y = jax.lax.conv_general_dilated(
        x, p["w"], window_strides=(s, s), padding=((PADW, PADW), (PADW, PADW)),
        dimension_numbers=("NCHW", "OIHW", "NCHW"))
    if p["has_bias"]:
        y = y + p["b"].reshape(1, -1, 1, 1)
    if p["has_bn"]:
        mean = jnp.mean(y, axis=(0, 2, 3), keepdims=True)
        var = jnp.mean(jnp.square(y - mean), axis=(0, 2, 3), keepdims=True)
        y = (y - mean) * jax.lax.rsqrt(var + BN_EPS)
        y = y * p["gamma"].reshape(1, -1, 1, 1) + p["beta"].reshape(1, -1, 1, 1)
    if p["has_lrelu"]:
        y = jnp.where(y > 0, y, LRELU_SLOPE * y)
    return y


def net_d_forward_ref(x, params):
    outputs = []
    out = x
    for p in params:
        out = _conv_layer_ref(out, p)
        outputs.append(out)
    return outputs


# ----------------------------------------------------------------------------
if __name__ == "__main__":
    key = jax.random.PRNGKey(0)
    k_in, k_par = jax.random.split(key)

    # batch=2, input_nc=3, 32x32 spatial, ndf=8, n_layers=3 (spatial must
    # survive the two stride-1 k=4 convs).
    N, INPUT_NC, H, W = 2, 3, 32, 32
    x = jax.random.normal(k_in, (N, INPUT_NC, H, W), jnp.float32)

    params = init_net_d_params(k_par, input_nc=INPUT_NC, ndf=8, n_layers=3)
    plan = build_fused_net(params, batch=N, height=H, width=W)

    fwd = jax.jit(lambda inp: net_d_forward(inp, plan))
    outs = jax.block_until_ready(fwd(x))

    refs = net_d_forward_ref(x, params)
    expected_shapes = [(2, 8, 16, 16), (2, 16, 8, 8), (2, 32, 4, 4),
                       (2, 64, 3, 3), (2, 1, 2, 2)]
    for i, (o, r, es) in enumerate(zip(outs, refs, expected_shapes)):
        assert o.shape == es, f"layer {i}: shape {o.shape} != {es}"
        assert jnp.allclose(o, r, atol=2e-3, rtol=2e-3), f"layer {i}: mismatch vs reference"

    print("KERNEL_OK")
</pallas_src>

<mosaic_0001>
module attributes {stable_mosaic.version = 11 : i64} {
  func.func @kernel(%arg0: memref<64x128xf32, #tpu.memory_space<vmem>>, %arg1: memref<128x64xf32, #tpu.memory_space<vmem>>, %arg2: memref<512x128xf32, #tpu.memory_space<vmem>>, %arg3: memref<1x128xf32, #tpu.memory_space<vmem>>, %arg4: memref<64x32xf32, #tpu.memory_space<vmem>>, %arg5: memref<512x128xf32, #tpu.memory_space<vmem>>, %arg6: memref<1x16xf32, #tpu.memory_space<vmem>>, %arg7: memref<1x128xf32, #tpu.memory_space<vmem>>, %arg8: memref<32x16xf32, #tpu.memory_space<vmem>>, %arg9: memref<512x128xf32, #tpu.memory_space<vmem>>, %arg10: memref<1x32xf32, #tpu.memory_space<vmem>>, %arg11: memref<1x128xf32, #tpu.memory_space<vmem>>, %arg12: memref<32x8xf32, #tpu.memory_space<vmem>>, %arg13: memref<512x192xf32, #tpu.memory_space<vmem>>, %arg14: memref<1x64xf32, #tpu.memory_space<vmem>>, %arg15: memref<1x192xf32, #tpu.memory_space<vmem>>, %arg16: memref<32x6xf32, #tpu.memory_space<vmem>>, %arg17: memref<768x2xf32, #tpu.memory_space<vmem>>, %arg18: memref<1x2xf32, #tpu.memory_space<vmem>>, %arg19: memref<32x128xf32, #tpu.memory_space<vmem>>, %arg20: memref<16x128xf32, #tpu.memory_space<vmem>>, %arg21: memref<8x128xf32, #tpu.memory_space<vmem>>, %arg22: memref<6x192xf32, #tpu.memory_space<vmem>>, %arg23: memref<4x2xf32, #tpu.memory_space<vmem>>) attributes {dimension_semantics = [], scalar_prefetch = 0 : i64, scratch_operands = 0 : i64, tpu.core_type = #tpu.core_type<tc>} {
    %c0 = arith.constant 0 : index
    %c0_0 = arith.constant 0 : index
    %0 = vector.load %arg0[%c0, %c0_0] : memref<64x128xf32, #tpu.memory_space<vmem>>, vector<64x128xf32>
    %c0_1 = arith.constant 0 : index
    %c0_2 = arith.constant 0 : index
    %1 = vector.load %arg1[%c0_1, %c0_2] : memref<128x64xf32, #tpu.memory_space<vmem>>, vector<128x64xf32>
    %c0_3 = arith.constant 0 : index
    %c0_4 = arith.constant 0 : index
    %2 = vector.load %arg2[%c0_3, %c0_4] : memref<512x128xf32, #tpu.memory_space<vmem>>, vector<512x128xf32>
    %cst = arith.constant dense<0.000000e+00> : vector<128x128xf32>
    %3 = tpu.matmul %1, %0, %cst {dimension_numbers = #tpu.dot_dimension_numbers<[1], [0], [0], [1], [0, 0, 1, 1], [], []>} : vector<128x64xf32>, vector<64x128xf32>, vector<128x128xf32> -> vector<128x128xf32>
    %4 = vector.extract_strided_slice %3 {offsets = [0, 0], sizes = [32, 128], strides = [1, 1]} : vector<128x128xf32> to vector<32x128xf32>
    %5 = vector.extract_strided_slice %3 {offsets = [32, 0], sizes = [32, 128], strides = [1, 1]} : vector<128x128xf32> to vector<32x128xf32>
    %6 = vector.extract_strided_slice %3 {offsets = [64, 0], sizes = [32, 128], strides = [1, 1]} : vector<128x128xf32> to vector<32x128xf32>
    %7 = vector.extract_strided_slice %3 {offsets = [96, 0], sizes = [32, 128], strides = [1, 1]} : vector<128x128xf32> to vector<32x128xf32>
    %8 = tpu.concatenate %4, %5, %6, %7 in 1 : vector<32x128xf32>, vector<32x128xf32>, vector<32x128xf32>, vector<32x128xf32> -> vector<32x512xf32>
    %cst_5 = arith.constant dense<0.000000e+00> : vector<32x128xf32>
    %9 = tpu.matmul %8, %2, %cst_5 {dimension_numbers = #tpu.dot_dimension_numbers<[1], [0], [0], [1], [0, 0, 1, 1], [], []>} : vector<32x512xf32>, vector<512x128xf32>, vector<32x128xf32> -> vector<32x128xf32>
    %c0_6 = arith.constant 0 : index
    %c0_7 = arith.constant 0 : index
    %10 = vector.load %arg3[%c0_6, %c0_7] : memref<1x128xf32, #tpu.memory_space<vmem>>, vector<1x128xf32>
    %11 = vector.broadcast %10 : vector<1x128xf32> to vector<32x128xf32>
    %12 = arith.addf %9, %11 : vector<32x128xf32>
    %cst_8 = arith.constant 0.000000e+00 : f32
    %13 = vector.broadcast %cst_8 : f32 to vector<32x128xf32>
    %14 = arith.cmpf ogt, %12, %13 : vector<32x128xf32>
    %cst_9 = arith.constant 2.000000e-01 : f32
    %15 = vector.broadcast %cst_9 : f32 to vector<32x128xf32>
    %16 = arith.mulf %15, %12 : vector<32x128xf32>
    %17 = arith.select %14, %12, %16 : vector<32x128xi1>, vector<32x128xf32>
    %c0_10 = arith.constant 0 : index
    %c0_11 = arith.constant 0 : index
    %18 = vector.load %arg19[%c0_10, %c0_11] : memref<32x128xf32, #tpu.memory_space<vmem>>, vector<32x128xf32>
    tpu.vector_store %arg19[%c0_10, %c0_11], %17 {strides = array<i32>} : memref<32x128xf32, #tpu.memory_space<vmem>>, vector<32x128xf32>,
    %c0_12 = arith.constant 0 : index
    %c0_13 = arith.constant 0 : index
    %19 = vector.load %arg4[%c0_12, %c0_13] : memref<64x32xf32, #tpu.memory_space<vmem>>, vector<64x32xf32>
    %c0_14 = arith.constant 0 : index
    %c0_15 = arith.constant 0 : index
    %20 = vector.load %arg5[%c0_14, %c0_15] : memref<512x128xf32, #tpu.memory_space<vmem>>, vector<512x128xf32>
    %cst_16 = arith.constant dense<0.000000e+00> : vector<64x128xf32>
    %21 = tpu.matmul %19, %17, %cst_16 {dimension_numbers = #tpu.dot_dimension_numbers<[1], [0], [0], [1], [0, 0, 1, 1], [], []>} : vector<64x32xf32>, vector<32x128xf32>, vector<64x128xf32> -> vector<64x128xf32>
    %22 = vector.extract_strided_slice %21 {offsets = [0, 0], sizes = [16, 128], strides = [1, 1]} : vector<64x128xf32> to vector<16x128xf32>
    %23 = vector.extract_strided_slice %21 {offsets = [16, 0], sizes = [16, 128], strides = [1, 1]} : vector<64x128xf32> to vector<16x128xf32>
    %24 = vector.extract_strided_slice %21 {offsets = [32, 0], sizes = [16, 128], strides = [1, 1]} : vector<64x128xf32> to vector<16x128xf32>
    %25 = vector.extract_strided_slice %21 {offsets = [48, 0], sizes = [16, 128], strides = [1, 1]} : vector<64x128xf32> to vector<16x128xf32>
    %26 = tpu.concatenate %22, %23, %24, %25 in 1 : vector<16x128xf32>, vector<16x128xf32>, vector<16x128xf32>, vector<16x128xf32> -> vector<16x512xf32>
    %cst_17 = arith.constant dense<0.000000e+00> : vector<16x128xf32>
    %27 = tpu.matmul %26, %20, %cst_17 {dimension_numbers = #tpu.dot_dimension_numbers<[1], [0], [0], [1], [0, 0, 1, 1], [], []>} : vector<16x512xf32>, vector<512x128xf32>, vector<16x128xf32> -> vector<16x128xf32>
    %c0_18 = arith.constant 0 : index
    %c0_19 = arith.constant 0 : index
    %28 = vector.load %arg6[%c0_18, %c0_19] : memref<1x16xf32, #tpu.memory_space<vmem>>, vector<1x16xf32>
    %c0_20 = arith.constant 0 : index
    %c0_21 = arith.constant 0 : index
    %29 = vector.load %arg7[%c0_20, %c0_21] : memref<1x128xf32, #tpu.memory_space<vmem>>, vector<1x128xf32>
    %cst_22 = arith.constant dense<0.000000e+00> : vector<128xf32>
    %30 = vector.multi_reduction <add>, %27, %cst_22 [0] : vector<16x128xf32> to vector<128xf32>
    %31 = vector.shape_cast %30 : vector<128xf32> to vector<1x128xf32>
    %32 = vector.extract_strided_slice %31 {offsets = [0, 0], sizes = [1, 16], strides = [1, 1]} : vector<1x128xf32> to vector<1x16xf32>
    %33 = vector.extract_strided_slice %31 {offsets = [0, 16], sizes = [1, 16], strides = [1, 1]} : vector<1x128xf32> to vector<1x16xf32>
    %34 = arith.addf %32, %33 : vector<1x16xf32>
    %35 = vector.extract_strided_slice %31 {offsets = [0, 32], sizes = [1, 16], strides = [1, 1]} : vector<1x128xf32> to vector<1x16xf32>
    %36 = arith.addf %34, %35 : vector<1x16xf32>
    %37 = vector.extract_strided_slice %31 {offsets = [0, 48], sizes = [1, 16], strides = [1, 1]} : vector<1x128xf32> to vector<1x16xf32>
    %38 = arith.addf %36, %37 : vector<1x16xf32>
    %39 = vector.extract_strided_slice %31 {offsets = [0, 64], sizes = [1, 16], strides = [1, 1]} : vector<1x128xf32> to vector<1x16xf32>
    %40 = arith.addf %38, %39 : vector<1x16xf32>
    %41 = vector.extract_strided_slice %31 {offsets = [0, 80], sizes = [1, 16], strides = [1, 1]} : vector<1x128xf32> to vector<1x16xf32>
    %42 = arith.addf %40, %41 : vector<1x16xf32>
    %43 = vector.extract_strided_slice %31 {offsets = [0, 96], sizes = [1, 16], strides = [1, 1]} : vector<1x128xf32> to vector<1x16xf32>
    %44 = arith.addf %42, %43 : vector<1x16xf32>
    %45 = vector.extract_strided_slice %31 {offsets = [0, 112], sizes = [1, 16], strides = [1, 1]} : vector<1x128xf32> to vector<1x16xf32>
    %46 = arith.addf %44, %45 : vector<1x16xf32>
    %cst_23 = arith.constant 7.812500e-03 : f32
    %47 = vector.broadcast %cst_23 : f32 to vector<1x16xf32>
    %48 = arith.mulf %46, %47 : vector<1x16xf32>
    %49 = tpu.concatenate %48, %48, %48, %48, %48, %48, %48, %48 in 1 : vector<1x16xf32>, vector<1x16xf32>, vector<1x16xf32>, vector<1x16xf32>, vector<1x16xf32>, vector<1x16xf32>, vector<1x16xf32>, vector<1x16xf32> -> vector<1x128xf32>
    %50 = vector.broadcast %49 : vector<1x128xf32> to vector<16x128xf32>
    %51 = arith.subf %27, %50 : vector<16x128xf32>
    %52 = arith.mulf %51, %51 : vector<16x128xf32>
    %cst_24 = arith.constant dense<0.000000e+00> : vector<128xf32>
    %53 = vector.multi_reduction <add>, %52, %cst_24 [0] : vector<16x128xf32> to vector<128xf32>
    %54 = vector.shape_cast %53 : vector<128xf32> to vector<1x128xf32>
    %55 = vector.extract_strided_slice %54 {offsets = [0, 0], sizes = [1, 16], strides = [1, 1]} : vector<1x128xf32> to vector<1x16xf32>
    %56 = vector.extract_strided_slice %54 {offsets = [0, 16], sizes = [1, 16], strides = [1, 1]} : vector<1x128xf32> to vector<1x16xf32>
    %57 = arith.addf %55, %56 : vector<1x16xf32>
    %58 = vector.extract_strided_slice %54 {offsets = [0, 32], sizes = [1, 16], strides = [1, 1]} : vector<1x128xf32> to vector<1x16xf32>
    %59 = arith.addf %57, %58 : vector<1x16xf32>
    %60 = vector.extract_strided_slice %54 {offsets = [0, 48], sizes = [1, 16], strides = [1, 1]} : vector<1x128xf32> to vector<1x16xf32>
    %61 = arith.addf %59, %60 : vector<1x16xf32>
    %62 = vector.extract_strided_slice %54 {offsets = [0, 64], sizes = [1, 16], strides = [1, 1]} : vector<1x128xf32> to vector<1x16xf32>
    %63 = arith.addf %61, %62 : vector<1x16xf32>
    %64 = vector.extract_strided_slice %54 {offsets = [0, 80], sizes = [1, 16], strides = [1, 1]} : vector<1x128xf32> to vector<1x16xf32>
    %65 = arith.addf %63, %64 : vector<1x16xf32>
    %66 = vector.extract_strided_slice %54 {offsets = [0, 96], sizes = [1, 16], strides = [1, 1]} : vector<1x128xf32> to vector<1x16xf32>
    %67 = arith.addf %65, %66 : vector<1x16xf32>
    %68 = vector.extract_strided_slice %54 {offsets = [0, 112], sizes = [1, 16], strides = [1, 1]} : vector<1x128xf32> to vector<1x16xf32>
    %69 = arith.addf %67, %68 : vector<1x16xf32>
    %cst_25 = arith.constant 7.812500e-03 : f32
    %70 = vector.broadcast %cst_25 : f32 to vector<1x16xf32>
    %71 = arith.mulf %69, %70 : vector<1x16xf32>
    %cst_26 = arith.constant 9.99999974E-6 : f32
    %72 = vector.broadcast %cst_26 : f32 to vector<1x16xf32>
    %73 = arith.addf %71, %72 : vector<1x16xf32>
    %74 = math.rsqrt %73 : vector<1x16xf32>
    %75 = arith.mulf %28, %74 : vector<1x16xf32>
    %76 = tpu.concatenate %75, %75, %75, %75, %75, %75, %75, %75 in 1 : vector<1x16xf32>, vector<1x16xf32>, vector<1x16xf32>, vector<1x16xf32>, vector<1x16xf32>, vector<1x16xf32>, vector<1x16xf32>, vector<1x16xf32> -> vector<1x128xf32>
    %77 = vector.broadcast %76 : vector<1x128xf32> to vector<16x128xf32>
    %78 = arith.mulf %51, %77 : vector<16x128xf32>
    %79 = vector.broadcast %29 : vector<1x128xf32> to vector<16x128xf32>
    %80 = arith.addf %78, %79 : vector<16x128xf32>
    %cst_27 = arith.constant 0.000000e+00 : f32
    %81 = vector.broadcast %cst_27 : f32 to vector<16x128xf32>
    %82 = arith.cmpf ogt, %80, %81 : vector<16x128xf32>
    %cst_28 = arith.constant 2.000000e-01 : f32
    %83 = vector.broadcast %cst_28 : f32 to vector<16x128xf32>
    %84 = arith.mulf %83, %80 : vector<16x128xf32>
    %85 = arith.select %82, %80, %84 : vector<16x128xi1>, vector<16x128xf32>
    %c0_29 = arith.constant 0 : index
    %c0_30 = arith.constant 0 : index
    %86 = vector.load %arg20[%c0_29, %c0_30] : memref<16x128xf32, #tpu.memory_space<vmem>>, vector<16x128xf32>
    tpu.vector_store %arg20[%c0_29, %c0_30], %85 {strides = array<i32>} : memref<16x128xf32, #tpu.memory_space<vmem>>, vector<16x128xf32>,
    %c0_31 = arith.constant 0 : index
    %c0_32 = arith.constant 0 : index
    %87 = vector.load %arg8[%c0_31, %c0_32] : memref<32x16xf32, #tpu.memory_space<vmem>>, vector<32x16xf32>
    %c0_33 = arith.constant 0 : index
    %c0_34 = arith.constant 0 : index
    %88 = vector.load %arg9[%c0_33, %c0_34] : memref<512x128xf32, #tpu.memory_space<vmem>>, vector<512x128xf32>
    %cst_35 = arith.constant dense<0.000000e+00> : vector<32x128xf32>
    %89 = tpu.matmul %87, %85, %cst_35 {dimension_numbers = #tpu.dot_dimension_numbers<[1], [0], [0], [1], [0, 0, 1, 1], [], []>} : vector<32x16xf32>, vector<16x128xf32>, vector<32x128xf32> -> vector<32x128xf32>
    %90 = vector.extract_strided_slice %89 {offsets = [0, 0], sizes = [8, 128], strides = [1, 1]} : vector<32x128xf32> to vector<8x128xf32>
    %91 = vector.extract_strided_slice %89 {offsets = [8, 0], sizes = [8, 128], strides = [1, 1]} : vector<32x128xf32> to vector<8x128xf32>
    %92 = vector.extract_strided_slice %89 {offsets = [16, 0], sizes = [8, 128], strides = [1, 1]} : vector<32x128xf32> to vector<8x128xf32>
    %93 = vector.extract_strided_slice %89 {offsets = [24, 0], sizes = [8, 128], strides = [1, 1]} : vector<32x128xf32> to vector<8x128xf32>
    %94 = tpu.concatenate %90, %91, %92, %93 in 1 : vector<8x128xf32>, vector<8x128xf32>, vector<8x128xf32>, vector<8x128xf32> -> vector<8x512xf32>
    %cst_36 = arith.constant dense<0.000000e+00> : vector<8x128xf32>
    %95 = tpu.matmul %94, %88, %cst_36 {dimension_numbers = #tpu.dot_dimension_numbers<[1], [0], [0], [1], [0, 0, 1, 1], [], []>} : vector<8x512xf32>, vector<512x128xf32>, vector<8x128xf32> -> vector<8x128xf32>
    %c0_37 = arith.constant 0 : index
    %c0_38 = arith.constant 0 : index
    %96 = vector.load %arg10[%c0_37, %c0_38] : memref<1x32xf32, #tpu.memory_space<vmem>>, vector<1x32xf32>
    %c0_39 = arith.constant 0 : index
    %c0_40 = arith.constant 0 : index
    %97 = vector.load %arg11[%c0_39, %c0_40] : memref<1x128xf32, #tpu.memory_space<vmem>>, vector<1x128xf32>
    %cst_41 = arith.constant dense<0.000000e+00> : vector<128xf32>
    %98 = vector.multi_reduction <add>, %95, %cst_41 [0] : vector<8x128xf32> to vector<128xf32>
    %99 = vector.shape_cast %98 : vector<128xf32> to vector<1x128xf32>
    %100 = vector.extract_strided_slice %99 {offsets = [0, 0], sizes = [1, 32], strides = [1, 1]} : vector<1x128xf32> to vector<1x32xf32>
    %101 = vector.extract_strided_slice %99 {offsets = [0, 32], sizes = [1, 32], strides = [1, 1]} : vector<1x128xf32> to vector<1x32xf32>
    %102 = arith.addf %100, %101 : vector<1x32xf32>
    %103 = vector.extract_strided_slice %99 {offsets = [0, 64], sizes = [1, 32], strides = [1, 1]} : vector<1x128xf32> to vector<1x32xf32>
    %104 = arith.addf %102, %103 : vector<1x32xf32>
    %105 = vector.extract_strided_slice %99 {offsets = [0, 96], sizes = [1, 32], strides = [1, 1]} : vector<1x128xf32> to vector<1x32xf32>
    %106 = arith.addf %104, %105 : vector<1x32xf32>
    %cst_42 = arith.constant 3.125000e-02 : f32
    %107 = vector.broadcast %cst_42 : f32 to vector<1x32xf32>
    %108 = arith.mulf %106, %107 : vector<1x32xf32>
    %109 = tpu.concatenate %108, %108, %108, %108 in 1 : vector<1x32xf32>, vector<1x32xf32>, vector<1x32xf32>, vector<1x32xf32> -> vector<1x128xf32>
    %110 = vector.broadcast %109 : vector<1x128xf32> to vector<8x128xf32>
    %111 = arith.subf %95, %110 : vector<8x128xf32>
    %112 = arith.mulf %111, %111 : vector<8x128xf32>
    %cst_43 = arith.constant dense<0.000000e+00> : vector<128xf32>
    %113 = vector.multi_reduction <add>, %112, %cst_43 [0] : vector<8x128xf32> to vector<128xf32>
    %114 = vector.shape_cast %113 : vector<128xf32> to vector<1x128xf32>
    %115 = vector.extract_strided_slice %114 {offsets = [0, 0], sizes = [1, 32], strides = [1, 1]} : vector<1x128xf32> to vector<1x32xf32>
    %116 = vector.extract_strided_slice %114 {offsets = [0, 32], sizes = [1, 32], strides = [1, 1]} : vector<1x128xf32> to vector<1x32xf32>
    %117 = arith.addf %115, %116 : vector<1x32xf32>
    %118 = vector.extract_strided_slice %114 {offsets = [0, 64], sizes = [1, 32], strides = [1, 1]} : vector<1x128xf32> to vector<1x32xf32>
    %119 = arith.addf %117, %118 : vector<1x32xf32>
    %120 = vector.extract_strided_slice %114 {offsets = [0, 96], sizes = [1, 32], strides = [1, 1]} : vector<1x128xf32> to vector<1x32xf32>
    %121 = arith.addf %119, %120 : vector<1x32xf32>
    %cst_44 = arith.constant 3.125000e-02 : f32
    %122 = vector.broadcast %cst_44 : f32 to vector<1x32xf32>
    %123 = arith.mulf %121, %122 : vector<1x32xf32>
    %cst_45 = arith.constant 9.99999974E-6 : f32
    %124 = vector.broadcast %cst_45 : f32 to vector<1x32xf32>
    %125 = arith.addf %123, %124 : vector<1x32xf32>
    %126 = math.rsqrt %125 : vector<1x32xf32>
    %127 = arith.mulf %96, %126 : vector<1x32xf32>
    %128 = tpu.concatenate %127, %127, %127, %127 in 1 : vector<1x32xf32>, vector<1x32xf32>, vector<1x32xf32>, vector<1x32xf32> -> vector<1x128xf32>
    %129 = vector.broadcast %128 : vector<1x128xf32> to vector<8x128xf32>
    %130 = arith.mulf %111, %129 : vector<8x128xf32>
    %131 = vector.broadcast %97 : vector<1x128xf32> to vector<8x128xf32>
    %132 = arith.addf %130, %131 : vector<8x128xf32>
    %cst_46 = arith.constant 0.000000e+00 : f32
    %133 = vector.broadcast %cst_46 : f32 to vector<8x128xf32>
    %134 = arith.cmpf ogt, %132, %133 : vector<8x128xf32>
    %cst_47 = arith.constant 2.000000e-01 : f32
    %135 = vector.broadcast %cst_47 : f32 to vector<8x128xf32>
    %136 = arith.mulf %135, %132 : vector<8x128xf32>
    %137 = arith.select %134, %132, %136 : vector<8x128xi1>, vector<8x128xf32>
    %c0_48 = arith.constant 0 : index
    %c0_49 = arith.constant 0 : index
    %138 = vector.load %arg21[%c0_48, %c0_49] : memref<8x128xf32, #tpu.memory_space<vmem>>, vector<8x128xf32>
    tpu.vector_store %arg21[%c0_48, %c0_49], %137 {strides = array<i32>} : memref<8x128xf32, #tpu.memory_space<vmem>>, vector<8x128xf32>,
    %c0_50 = arith.constant 0 : index
    %c0_51 = arith.constant 0 : index
    %139 = vector.load %arg12[%c0_50, %c0_51] : memref<32x8xf32, #tpu.memory_space<vmem>>, vector<32x8xf32>
    %c0_52 = arith.constant 0 : index
    %c0_53 = arith.constant 0 : index
    %140 = vector.load %arg13[%c0_52, %c0_53] : memref<512x192xf32, #tpu.memory_space<vmem>>, vector<512x192xf32>
    %cst_54 = arith.constant dense<0.000000e+00> : vector<32x128xf32>
    %141 = tpu.matmul %139, %137, %cst_54 {dimension_numbers = #tpu.dot_dimension_numbers<[1], [0], [0], [1], [0, 0, 1, 1], [], []>} : vector<32x8xf32>, vector<8x128xf32>, vector<32x128xf32> -> vector<32x128xf32>
    %142 = vector.extract_strided_slice %141 {offsets = [0, 0], sizes = [6, 128], strides = [1, 1]} : vector<32x128xf32> to vector<6x128xf32>
    %143 = vector.extract_strided_slice %141 {offsets = [8, 0], sizes = [6, 128], strides = [1, 1]} : vector<32x128xf32> to vector<6x128xf32>
    %144 = vector.extract_strided_slice %141 {offsets = [16, 0], sizes = [6, 128], strides = [1, 1]} : vector<32x128xf32> to vector<6x128xf32>
    %145 = vector.extract_strided_slice %141 {offsets = [24, 0], sizes = [6, 128], strides = [1, 1]} : vector<32x128xf32> to vector<6x128xf32>
    %146 = tpu.concatenate %142, %143, %144, %145 in 1 : vector<6x128xf32>, vector<6x128xf32>, vector<6x128xf32>, vector<6x128xf32> -> vector<6x512xf32>
    %cst_55 = arith.constant dense<0.000000e+00> : vector<6x192xf32>
    %147 = tpu.matmul %146, %140, %cst_55 {dimension_numbers = #tpu.dot_dimension_numbers<[1], [0], [0], [1], [0, 0, 1, 1], [], []>} : vector<6x512xf32>, vector<512x192xf32>, vector<6x192xf32> -> vector<6x192xf32>
    %c0_56 = arith.constant 0 : index
    %c0_57 = arith.constant 0 : index
    %148 = vector.load %arg14[%c0_56, %c0_57] : memref<1x64xf32, #tpu.memory_space<vmem>>, vector<1x64xf32>
    %c0_58 = arith.constant 0 : index
    %c0_59 = arith.constant 0 : index
    %149 = vector.load %arg15[%c0_58, %c0_59] : memref<1x192xf32, #tpu.memory_space<vmem>>, vector<1x192xf32>
    %cst_60 = arith.constant dense<0.000000e+00> : vector<192xf32>
    %150 = vector.multi_reduction <add>, %147, %cst_60 [0] : vector<6x192xf32> to vector<192xf32>
    %151 = vector.shape_cast %150 : vector<192xf32> to vector<1x192xf32>
    %152 = vector.extract_strided_slice %151 {offsets = [0, 0], sizes = [1, 64], strides = [1, 1]} : vector<1x192xf32> to vector<1x64xf32>
    %153 = vector.extract_strided_slice %151 {offsets = [0, 64], sizes = [1, 64], strides = [1, 1]} : vector<1x192xf32> to vector<1x64xf32>
    %154 = arith.addf %152, %153 : vector<1x64xf32>
    %155 = vector.extract_strided_slice %151 {offsets = [0, 128], sizes = [1, 64], strides = [1, 1]} : vector<1x192xf32> to vector<1x64xf32>
    %156 = arith.addf %154, %155 : vector<1x64xf32>
    %cst_61 = arith.constant 0.055555556 : f32
    %157 = vector.broadcast %cst_61 : f32 to vector<1x64xf32>
    %158 = arith.mulf %156, %157 : vector<1x64xf32>
    %159 = tpu.concatenate %158, %158, %158 in 1 : vector<1x64xf32>, vector<1x64xf32>, vector<1x64xf32> -> vector<1x192xf32>
    %160 = vector.broadcast %159 : vector<1x192xf32> to vector<6x192xf32>
    %161 = arith.subf %147, %160 : vector<6x192xf32>
    %162 = arith.mulf %161, %161 : vector<6x192xf32>
    %cst_62 = arith.constant dense<0.000000e+00> : vector<192xf32>
    %163 = vector.multi_reduction <add>, %162, %cst_62 [0] : vector<6x192xf32> to vector<192xf32>
    %164 = vector.shape_cast %163 : vector<192xf32> to vector<1x192xf32>
    %165 = vector.extract_strided_slice %164 {offsets = [0, 0], sizes = [1, 64], strides = [1, 1]} : vector<1x192xf32> to vector<1x64xf32>
    %166 = vector.extract_strided_slice %164 {offsets = [0, 64], sizes = [1, 64], strides = [1, 1]} : vector<1x192xf32> to vector<1x64xf32>
    %167 = arith.addf %165, %166 : vector<1x64xf32>
    %168 = vector.extract_strided_slice %164 {offsets = [0, 128], sizes = [1, 64], strides = [1, 1]} : vector<1x192xf32> to vector<1x64xf32>
    %169 = arith.addf %167, %168 : vector<1x64xf32>
    %cst_63 = arith.constant 0.055555556 : f32
    %170 = vector.broadcast %cst_63 : f32 to vector<1x64xf32>
    %171 = arith.mulf %169, %170 : vector<1x64xf32>
    %cst_64 = arith.constant 9.99999974E-6 : f32
    %172 = vector.broadcast %cst_64 : f32 to vector<1x64xf32>
    %173 = arith.addf %171, %172 : vector<1x64xf32>
    %174 = math.rsqrt %173 : vector<1x64xf32>
    %175 = arith.mulf %148, %174 : vector<1x64xf32>
    %176 = tpu.concatenate %175, %175, %175 in 1 : vector<1x64xf32>, vector<1x64xf32>, vector<1x64xf32> -> vector<1x192xf32>
    %177 = vector.broadcast %176 : vector<1x192xf32> to vector<6x192xf32>
    %178 = arith.mulf %161, %177 : vector<6x192xf32>
    %179 = vector.broadcast %149 : vector<1x192xf32> to vector<6x192xf32>
    %180 = arith.addf %178, %179 : vector<6x192xf32>
    %cst_65 = arith.constant 0.000000e+00 : f32
    %181 = vector.broadcast %cst_65 : f32 to vector<6x192xf32>
    %182 = arith.cmpf ogt, %180, %181 : vector<6x192xf32>
    %cst_66 = arith.constant 2.000000e-01 : f32
    %183 = vector.broadcast %cst_66 : f32 to vector<6x192xf32>
    %184 = arith.mulf %183, %180 : vector<6x192xf32>
    %185 = arith.select %182, %180, %184 : vector<6x192xi1>, vector<6x192xf32>
    %c0_67 = arith.constant 0 : index
    %c0_68 = arith.constant 0 : index
    %186 = vector.load %arg22[%c0_67, %c0_68] : memref<6x192xf32, #tpu.memory_space<vmem>>, vector<6x192xf32>
    tpu.vector_store %arg22[%c0_67, %c0_68], %185 {strides = array<i32>} : memref<6x192xf32, #tpu.memory_space<vmem>>, vector<6x192xf32>,
    %c0_69 = arith.constant 0 : index
    %c0_70 = arith.constant 0 : index
    %187 = vector.load %arg16[%c0_69, %c0_70] : memref<32x6xf32, #tpu.memory_space<vmem>>, vector<32x6xf32>
    %c0_71 = arith.constant 0 : index
    %c0_72 = arith.constant 0 : index
    %188 = vector.load %arg17[%c0_71, %c0_72] : memref<768x2xf32, #tpu.memory_space<vmem>>, vector<768x2xf32>
    %cst_73 = arith.constant dense<0.000000e+00> : vector<32x192xf32>
    %189 = tpu.matmul %187, %185, %cst_73 {dimension_numbers = #tpu.dot_dimension_numbers<[1], [0], [0], [1], [0, 0, 1, 1], [], []>} : vector<32x6xf32>, vector<6x192xf32>, vector<32x192xf32> -> vector<32x192xf32>
    %190 = vector.extract_strided_slice %189 {offsets = [0, 0], sizes = [4, 192], strides = [1, 1]} : vector<32x192xf32> to vector<4x192xf32>
    %191 = vector.extract_strided_slice %189 {offsets = [8, 0], sizes = [4, 192], strides = [1, 1]} : vector<32x192xf32> to vector<4x192xf32>
    %192 = vector.extract_strided_slice %189 {offsets = [16, 0], sizes = [4, 192], strides = [1, 1]} : vector<32x192xf32> to vector<4x192xf32>
    %193 = vector.extract_strided_slice %189 {offsets = [24, 0], sizes = [4, 192], strides = [1, 1]} : vector<32x192xf32> to vector<4x192xf32>
    %194 = tpu.concatenate %190, %191, %192, %193 in 1 : vector<4x192xf32>, vector<4x192xf32>, vector<4x192xf32>, vector<4x192xf32> -> vector<4x768xf32>
    %cst_74 = arith.constant dense<0.000000e+00> : vector<4x2xf32>
    %195 = tpu.matmul %194, %188, %cst_74 {dimension_numbers = #tpu.dot_dimension_numbers<[1], [0], [0], [1], [0, 0, 1, 1], [], []>} : vector<4x768xf32>, vector<768x2xf32>, vector<4x2xf32> -> vector<4x2xf32>
    %c0_75 = arith.constant 0 : index
    %c0_76 = arith.constant 0 : index
    %196 = vector.load %arg18[%c0_75, %c0_76] : memref<1x2xf32, #tpu.memory_space<vmem>>, vector<1x2xf32>
    %197 = vector.broadcast %196 : vector<1x2xf32> to vector<4x2xf32>
    %198 = arith.addf %195, %197 : vector<4x2xf32>
    %c0_77 = arith.constant 0 : index
    %c0_78 = arith.constant 0 : index
    %199 = vector.load %arg23[%c0_77, %c0_78] : memref<4x2xf32, #tpu.memory_space<vmem>>, vector<4x2xf32>
    tpu.vector_store %arg23[%c0_77, %c0_78], %198 {strides = array<i32>} : memref<4x2xf32, #tpu.memory_space<vmem>>, vector<4x2xf32>,
    return
  }
}

</mosaic_0001>

<llo_original>
// kernel: _lambda_.1
$region0: #{_lambda_.1}
  #allocation0 [shape = 'u32[]', space=smem, size = 0x4, offset = 0x4, fixed_abs, tag = 'smem constant byte address 0x4 - core index']
  #allocation1 [shape = 'u32[144,128]{1,0:T(1,128)}', space=vmem, size = 0x12000, scoped, tag = 'internal scratch']
  %s0 = inlined_call_operand.vmem [shape: f32[64,128], index: 0, kind: input, shape index: {}]
  %s1 = inlined_call_operand.hbm [shape: f32[128,64], index: 1, kind: input, shape index: {}]
  %s2 = inlined_call_operand.vmem [shape: f32[512,128], index: 2, kind: input, shape index: {}]
  %s3 = inlined_call_operand.vmem [shape: f32[1,128], index: 3, kind: input, shape index: {}]
  %s4 = inlined_call_operand.hbm [shape: f32[64,32], index: 4, kind: input, shape index: {}]
  %s5 = inlined_call_operand.hbm [shape: f32[512,128], index: 5, kind: input, shape index: {}]
  %s6 = inlined_call_operand.vmem [shape: f32[1,16], index: 6, kind: input, shape index: {}]
  %s7 = inlined_call_operand.vmem [shape: f32[1,128], index: 7, kind: input, shape index: {}, may-alias: {7,11}]
  %s8 = inlined_call_operand.vmem [shape: f32[32,16], index: 8, kind: input, shape index: {}]
  %s9 = inlined_call_operand.hbm [shape: f32[512,128], index: 9, kind: input, shape index: {}]
  %s10 = inlined_call_operand.vmem [shape: f32[1,32], index: 10, kind: input, shape index: {}]
  %s11 = inlined_call_operand.vmem [shape: f32[1,128], index: 11, kind: input, shape index: {}, may-alias: {7,11}]
  %s12 = inlined_call_operand.hbm [shape: f32[32,8], index: 12, kind: input, shape index: {}]
  %s13 = inlined_call_operand.vmem [shape: f32[512,192], index: 13, kind: input, shape index: {}]
  %s14 = inlined_call_operand.vmem [shape: f32[1,64], index: 14, kind: input, shape index: {}]
  %s15 = inlined_call_operand.vmem [shape: f32[1,192], index: 15, kind: input, shape index: {}]
  %s16 = inlined_call_operand.hbm [shape: f32[32,6], index: 16, kind: input, shape index: {}]
  %s17 = inlined_call_operand.hbm [shape: f32[768,2], index: 17, kind: input, shape index: {}]
  %s18 = inlined_call_operand.vmem [shape: f32[1,2], index: 18, kind: input, shape index: {}]
  %s19 = inlined_call_operand.vmem [shape: f32[32,128], index: 19, kind: output, shape index: {0}]
  %s20 = inlined_call_operand.vmem [shape: f32[16,128], index: 20, kind: output, shape index: {1}]
  %s21 = inlined_call_operand.vmem [shape: f32[8,128], index: 21, kind: output, shape index: {2}]
  %s22 = inlined_call_operand.vmem [shape: f32[6,192], index: 22, kind: output, shape index: {3}]
  %s23 = inlined_call_operand.hbm [shape: f32[4,2], index: 23, kind: output, shape index: {4}]
  %24 = xla_tuple %s19, %s20, %s21, %s22, %s23
  %s25 = sld [smem:[#allocation0]]
  $region146: #{_lambda_.1} parent=0
    _
  %s27 = ssub.s32 1, %s25
  %s28 = scalar_select 0, %s27, %s25
  $region1: #{_lambda_.1} parent=0
    #allocation2 [shape = 'u8[65536]{0}', space=vmem, size = 0x10000, scoped, tag = 'input window, operand 1, single buffered']
    #allocation3 [shape = 's32[1]{0}', space=sflag, size = 0x4, scoped, tag = 'scoped memory for _lambda_.1']
    #allocation4 [shape = 's32[1]{0}', space=sflag, size = 0x4, scoped, tag = 'scoped memory for _lambda_.1']
    #allocation5 [shape = 'u8[32768]{0}', space=vmem, size = 0x8000, scoped, tag = 'input window, operand 4, single buffered']
    #allocation6 [shape = 's32[1]{0}', space=sflag, size = 0x4, scoped, tag = 'scoped memory for _lambda_.1']
    #allocation7 [shape = 'u8[262144]{0}', space=vmem, size = 0x40000, scoped, tag = 'input window, operand 5, single buffered']
    #allocation8 [shape = 'u8[262144]{0}', space=vmem, size = 0x40000, scoped, tag = 'input window, operand 9, single buffered']
    #allocation9 [shape = 's32[1]{0}', space=sflag, size = 0x4, scoped, tag = 'scoped memory for _lambda_.1']
    #allocation10 [shape = 'u8[16384]{0}', space=vmem, size = 0x4000, scoped, tag = 'input window, operand 12, single buffered']
    #allocation11 [shape = 'u8[16384]{0}', space=vmem, size = 0x4000, scoped, tag = 'input window, operand 16, single buffered']
    #allocation12 [shape = 's32[1]{0}', space=sflag, size = 0x4, scoped, tag = 'scoped memory for _lambda_.1']
    #allocation13 [shape = 'u8[393216]{0}', space=vmem, size = 0x60000, scoped, tag = 'input window, operand 17, single buffered']
    #allocation14 [shape = 'u8[2048]{0}', space=vmem, size = 0x800, scoped, tag = 'output window, operand 4, single buffered']
    %29 = vsyncpa [#allocation3], 0
    %30 = vsyncpa [#allocation6], 0
    %31 = vsyncpa [#allocation9], 0
    %32 = vsyncpa [#allocation12], 0
    %33 = vsyncpa [#allocation4], 0
    // Predicated region
    $region2: #{_lambda_.1} parent=1 // pred_check
      _
    $region3: #{_lambda_.1} parent=1 // pred_check_branch
      %35 = sbr.rel (0) target = $region5
    $region4: #{_lambda_.1} parent=1 // pred_region
      _
    $region5: #{_lambda_.1} parent=1 // pred_fallthru
      _
    // Predicated region
    $region6: #{_lambda_.1} parent=1 // pred_check
      _
    $region7: #{_lambda_.1} parent=1 // pred_check_branch
      %37 = sbr.rel (0) target = $region9
    $region8: #{_lambda_.1} parent=1 // pred_region
      %s39 = ssub.s32 2048, 2048
      %40 = vsyncadd [#allocation3], %s39
      %s41 = sshll.u32 [#allocation2], 4
      %s42 = int_to_ptr.vmem [resolvable:$true] %s41
      %47 = dma.hbm_to_vmem [thread:$0]  %s1, 2048, %s42, [#allocation3], 128, 128, 8
    $region9: #{_lambda_.1} parent=1 // pred_fallthru
      _
    // Predicated region
    $region10: #{_lambda_.1} parent=1 // pred_check
      _
    $region11: #{_lambda_.1} parent=1 // pred_check_branch
      %49 = sbr.rel (0) target = $region13
    $region12: #{_lambda_.1} parent=1 // pred_region
      _
    $region13: #{_lambda_.1} parent=1 // pred_fallthru
      _
    // Predicated region
    $region14: #{_lambda_.1} parent=1 // pred_check
      _
    $region15: #{_lambda_.1} parent=1 // pred_check_branch
      %51 = sbr.rel (0) target = $region17
    $region16: #{_lambda_.1} parent=1 // pred_region
      _
    $region17: #{_lambda_.1} parent=1 // pred_fallthru
      _
    // Predicated region
    $region18: #{_lambda_.1} parent=1 // pred_check
      _
    $region19: #{_lambda_.1} parent=1 // pred_check_branch
      %53 = sbr.rel (0) target = $region21
    $region20: #{_lambda_.1} parent=1 // pred_region
      %s55 = ssub.s32 1024, 1024
      %56 = vsyncadd [#allocation6], %s55
      %s57 = sshll.u32 [#allocation5], 4
      %s58 = int_to_ptr.vmem [resolvable:$true] %s57
      %63 = dma.hbm_to_vmem [thread:$0]  %s4, 1024, %s58, [#allocation6], 128, 128, 8
    $region21: #{_lambda_.1} parent=1 // pred_fallthru
      _
    // Predicated region
    $region22: #{_lambda_.1} parent=1 // pred_check
      _
    $region23: #{_lambda_.1} parent=1 // pred_check_branch
      %65 = sbr.rel (0) target = $region25
    $region24: #{_lambda_.1} parent=1 // pred_region
      %s67 = ssub.s32 8192, 8192
      %68 = vsyncadd [#allocation6], %s67
      %s69 = sshll.u32 [#allocation7], 4
      %s70 = int_to_ptr.vmem [resolvable:$true] %s69
      %75 = dma.hbm_to_vmem [thread:$0]  %s5, 8192, %s70, [#allocation6], 128, 128, 8
    $region25: #{_lambda_.1} parent=1 // pred_fallthru
      _
    // Predicated region
    $region26: #{_lambda_.1} parent=1 // pred_check
      _
    $region27: #{_lambda_.1} parent=1 // pred_check_branch
      %77 = sbr.rel (0) target = $region29
    $region28: #{_lambda_.1} parent=1 // pred_region
      _
    $region29: #{_lambda_.1} parent=1 // pred_fallthru
      _
    // Predicated region
    $region30: #{_lambda_.1} parent=1 // pred_check
      _
    $region31: #{_lambda_.1} parent=1 // pred_check_branch
      %79 = sbr.rel (0) target = $region33
    $region32: #{_lambda_.1} parent=1 // pred_region
      _
    $region33: #{_lambda_.1} parent=1 // pred_fallthru
      _
    // Predicated region
    $region34: #{_lambda_.1} parent=1 // pred_check
      _
    $region35: #{_lambda_.1} parent=1 // pred_check_branch
      %81 = sbr.rel (0) target = $region37
    $region36: #{_lambda_.1} parent=1 // pred_region
      _
    $region37: #{_lambda_.1} parent=1 // pred_fallthru
      _
    // Predicated region
    $region38: #{_lambda_.1} parent=1 // pred_check
      _
    $region39: #{_lambda_.1} parent=1 // pred_check_branch
      %83 = sbr.rel (0) target = $region41
    $region40: #{_lambda_.1} parent=1 // pred_region
      %s85 = ssub.s32 8192, 8192
      %86 = vsyncadd [#allocation9], %s85
      %s87 = sshll.u32 [#allocation8], 4
      %s88 = int_to_ptr.vmem [resolvable:$true] %s87
      %93 = dma.hbm_to_vmem [thread:$0]  %s9, 8192, %s88, [#allocation9], 128, 128, 8
    $region41: #{_lambda_.1} parent=1 // pred_fallthru
      _
    // Predicated region
    $region42: #{_lambda_.1} parent=1 // pred_check
      _
    $region43: #{_lambda_.1} parent=1 // pred_check_branch
      %95 = sbr.rel (0) target = $region45
    $region44: #{_lambda_.1} parent=1 // pred_region
      _
    $region45: #{_lambda_.1} parent=1 // pred_fallthru
      _
    // Predicated region
    $region46: #{_lambda_.1} parent=1 // pred_check
      _
    $region47: #{_lambda_.1} parent=1 // pred_check_branch
      %97 = sbr.rel (0) target = $region49
    $region48: #{_lambda_.1} parent=1 // pred_region
      _
    $region49: #{_lambda_.1} parent=1 // pred_fallthru
      _
    // Predicated region
    $region50: #{_lambda_.1} parent=1 // pred_check
      _
    $region51: #{_lambda_.1} parent=1 // pred_check_branch
      %99 = sbr.rel (0) target = $region53
    $region52: #{_lambda_.1} parent=1 // pred_region
      %s101 = ssub.s32 512, 512
      %102 = vsyncadd [#allocation9], %s101
      %s103 = sshll.u32 [#allocation10], 4
      %s104 = int_to_ptr.vmem [resolvable:$true] %s103
      %109 = dma.hbm_to_vmem [thread:$0]  %s12, 512, %s104, [#allocation9], 128, 128, 8
    $region53: #{_lambda_.1} parent=1 // pred_fallthru
      _
    // Predicated region
    $region54: #{_lambda_.1} parent=1 // pred_check
      _
    $region55: #{_lambda_.1} parent=1 // pred_check_branch
      %111 = sbr.rel (0) target = $region57
    $region56: #{_lambda_.1} parent=1 // pred_region
      _
    $region57: #{_lambda_.1} parent=1 // pred_fallthru
      _
    // Predicated region
    $region58: #{_lambda_.1} parent=1 // pred_check
      _
    $region59: #{_lambda_.1} parent=1 // pred_check_branch
      %113 = sbr.rel (0) target = $region61
    $region60: #{_lambda_.1} parent=1 // pred_region
      _
    $region61: #{_lambda_.1} parent=1 // pred_fallthru
      _
    // Predicated region
    $region62: #{_lambda_.1} parent=1 // pred_check
      _
    $region63: #{_lambda_.1} parent=1 // pred_check_branch
      %115 = sbr.rel (0) target = $region65
    $region64: #{_lambda_.1} parent=1 // pred_region
      _
    $region65: #{_lambda_.1} parent=1 // pred_fallthru
      _
    // Predicated region
    $region66: #{_lambda_.1} parent=1 // pred_check
      _
    $region67: #{_lambda_.1} parent=1 // pred_check_branch
      %117 = sbr.rel (0) target = $region69
    $region68: #{_lambda_.1} parent=1 // pred_region
      %s119 = ssub.s32 512, 512
      %120 = vsyncadd [#allocation12], %s119
      %s121 = sshll.u32 [#allocation11], 4
      %s122 = int_to_ptr.vmem [resolvable:$true] %s121
      %127 = dma.hbm_to_vmem [thread:$0]  %s16, 512, %s122, [#allocation12], 128, 128, 8
    $region69: #{_lambda_.1} parent=1 // pred_fallthru
      _
    // Predicated region
    $region70: #{_lambda_.1} parent=1 // pred_check
      _
    $region71: #{_lambda_.1} parent=1 // pred_check_branch
      %129 = sbr.rel (0) target = $region73
    $region72: #{_lambda_.1} parent=1 // pred_region
      %s131 = ssub.s32 12288, 12288
      %132 = vsyncadd [#allocation12], %s131
      %s133 = sshll.u32 [#allocation13], 4
      %s134 = int_to_ptr.vmem [resolvable:$true] %s133
      %139 = dma.hbm_to_vmem [thread:$0]  %s17, 12288, %s134, [#allocation12], 128, 128, 8
    $region73: #{_lambda_.1} parent=1 // pred_fallthru
      _
    // Predicated region
    $region74: #{_lambda_.1} parent=1 // pred_check
      _
    $region75: #{_lambda_.1} parent=1 // pred_check_branch
      %141 = sbr.rel (0) target = $region77
    $region76: #{_lambda_.1} parent=1 // pred_region
      _
    $region77: #{_lambda_.1} parent=1 // pred_fallthru
      _
    // Predicated region
    $region78: #{_lambda_.1} parent=1 // pred_check
      _
    $region79: #{_lambda_.1} parent=1 // pred_check_branch
      %143 = sbr.rel (0) target = $region81
    $region80: #{_lambda_.1} parent=1 // pred_region
      %144 = dma.done [#allocation3], 2048
    $region81: #{_lambda_.1} parent=1 // pred_fallthru
      _
    // Predicated region
    $region82: #{_lambda_.1} parent=1 // pred_check
      _
    $region83: #{_lambda_.1} parent=1 // pred_check_branch
      %146 = sbr.rel (0) target = $region85
    $region84: #{_lambda_.1} parent=1 // pred_region
      %147 = dma.done [#allocation6], 1024
    $region85: #{_lambda_.1} parent=1 // pred_fallthru
      _
    // Predicated region
    $region86: #{_lambda_.1} parent=1 // pred_check
      _
    $region87: #{_lambda_.1} parent=1 // pred_check_branch
      %149 = sbr.rel (0) target = $region89
    $region88: #{_lambda_.1} parent=1 // pred_region
      %150 = dma.done [#allocation6], 8192
    $region89: #{_lambda_.1} parent=1 // pred_fallthru
      _
    // Predicated region
    $region90: #{_lambda_.1} parent=1 // pred_check
      _
    $region91: #{_lambda_.1} parent=1 // pred_check_branch
      %152 = sbr.rel (0) target = $region93
    $region92: #{_lambda_.1} parent=1 // pred_region
      %153 = dma.done [#allocation9], 8192
    $region93: #{_lambda_.1} parent=1 // pred_fallthru
      _
    // Predicated region
    $region94: #{_lambda_.1} parent=1 // pred_check
      _
    $region95: #{_lambda_.1} parent=1 // pred_check_branch
      %155 = sbr.rel (0) target = $region97
    $region96: #{_lambda_.1} parent=1 // pred_region
      %156 = dma.done [#allocation9], 512
    $region97: #{_lambda_.1} parent=1 // pred_fallthru
      _
    // Predicated region
    $region98: #{_lambda_.1} parent=1 // pred_check
      _
    $region99: #{_lambda_.1} parent=1 // pred_check_branch
      %158 = sbr.rel (0) target = $region101
    $region100: #{_lambda_.1} parent=1 // pred_region
      %159 = dma.done [#allocation12], 512
    $region101: #{_lambda_.1} parent=1 // pred_fallthru
      _
    // Predicated region
    $region102: #{_lambda_.1} parent=1 // pred_check
      _
    $region103: #{_lambda_.1} parent=1 // pred_check_branch
      %161 = sbr.rel (0) target = $region105
    $region104: #{_lambda_.1} parent=1 // pred_region
      %162 = dma.done [#allocation12], 12288
    $region105: #{_lambda_.1} parent=1 // pred_fallthru
      _
    %v163 = vld [vmem:[%s0] sm:$0xff]
    %v164 = vld [vmem:[%s0 + $0x8] sm:$0xff]
    %v165 = vld [vmem:[%s0 + $0x10] sm:$0xff]
    %v166 = vld [vmem:[%s0 + $0x18] sm:$0xff]
    %v167 = vld [vmem:[%s0 + $0x20] sm:$0xff]
    %v168 = vld [vmem:[%s0 + $0x28] sm:$0xff]
    %v169 = vld [vmem:[%s0 + $0x30] sm:$0xff]
    %v170 = vld [vmem:[%s0 + $0x38] sm:$0xff]
    %v171 = vld [vmem:[#allocation2] sm:$0xff]
    %v172 = vld [vmem:[#allocation2 + $0x8] sm:$0xff]
    %v173 = vld [vmem:[#allocation2 + $0x10] sm:$0xff]
    %v174 = vld [vmem:[#allocation2 + $0x18] sm:$0xff]
    %v175 = vld [vmem:[#allocation2 + $0x20] sm:$0xff]
    %v176 = vld [vmem:[#allocation2 + $0x28] sm:$0xff]
    %v177 = vld [vmem:[#allocation2 + $0x30] sm:$0xff]
    %v178 = vld [vmem:[#allocation2 + $0x38] sm:$0xff]
    %v179 = vld [vmem:[#allocation2 + $0x40] sm:$0xff]
    %v180 = vld [vmem:[#allocation2 + $0x48] sm:$0xff]
    %v181 = vld [vmem:[#allocation2 + $0x50] sm:$0xff]
    %v182 = vld [vmem:[#allocation2 + $0x58] sm:$0xff]
    %v183 = vld [vmem:[#allocation2 + $0x60] sm:$0xff]
    %v184 = vld [vmem:[#allocation2 + $0x68] sm:$0xff]
    %v185 = vld [vmem:[#allocation2 + $0x70] sm:$0xff]
    %v186 = vld [vmem:[#allocation2 + $0x78] sm:$0xff]
    %v187 = vld [vmem:[%s2] sm:$0xff]
    %v188 = vld [vmem:[%s2 + $0x8] sm:$0xff]
    %v189 = vld [vmem:[%s2 + $0x10] sm:$0xff]
    %v190 = vld [vmem:[%s2 + $0x18] sm:$0xff]
    %v191 = vld [vmem:[%s2 + $0x20] sm:$0xff]
    %v192 = vld [vmem:[%s2 + $0x28] sm:$0xff]
    %v193 = vld [vmem:[%s2 + $0x30] sm:$0xff]
    %v194 = vld [vmem:[%s2 + $0x38] sm:$0xff]
    %v195 = vld [vmem:[%s2 + $0x40] sm:$0xff]
    %v196 = vld [vmem:[%s2 + $0x48] sm:$0xff]
    %v197 = vld [vmem:[%s2 + $0x50] sm:$0xff]
    %v198 = vld [vmem:[%s2 + $0x58] sm:$0xff]
    %v199 = vld [vmem:[%s2 + $0x60] sm:$0xff]
    %v200 = vld [vmem:[%s2 + $0x68] sm:$0xff]
    %v201 = vld [vmem:[%s2 + $0x70] sm:$0xff]
    %v202 = vld [vmem:[%s2 + $0x78] sm:$0xff]
    %v203 = vld [vmem:[%s2 + $0x80] sm:$0xff]
    %v204 = vld [vmem:[%s2 + $0x88] sm:$0xff]
    %v205 = vld [vmem:[%s2 + $0x90] sm:$0xff]
    %v206 = vld [vmem:[%s2 + $0x98] sm:$0xff]
    %v207 = vld [vmem:[%s2 + $0xa0] sm:$0xff]
    %v208 = vld [vmem:[%s2 + $0xa8] sm:$0xff]
    %v209 = vld [vmem:[%s2 + $0xb0] sm:$0xff]
    %v210 = vld [vmem:[%s2 + $0xb8] sm:$0xff]
    %v211 = vld [vmem:[%s2 + $0xc0] sm:$0xff]
    %v212 = vld [vmem:[%s2 + $0xc8] sm:$0xff]
    %v213 = vld [vmem:[%s2 + $0xd0] sm:$0xff]
    %v214 = vld [vmem:[%s2 + $0xd8] sm:$0xff]
    %v215 = vld [vmem:[%s2 + $0xe0] sm:$0xff]
    %v216 = vld [vmem:[%s2 + $0xe8] sm:$0xff]
    %v217 = vld [vmem:[%s2 + $0xf0] sm:$0xff]
    %v218 = vld [vmem:[%s2 + $0xf8] sm:$0xff]
    %v219 = vld [vmem:[%s2 + $0x100] sm:$0xff]
    %v220 = vld [vmem:[%s2 + $0x108] sm:$0xff]
    %v221 = vld [vmem:[%s2 + $0x110] sm:$0xff]
    %v222 = vld [vmem:[%s2 + $0x118] sm:$0xff]
    %v223 = vld [vmem:[%s2 + $0x120] sm:$0xff]
    %v224 = vld [vmem:[%s2 + $0x128] sm:$0xff]
    %v225 = vld [vmem:[%s2 + $0x130] sm:$0xff]
    %v226 = vld [vmem:[%s2 + $0x138] sm:$0xff]
    %v227 = vld [vmem:[%s2 + $0x140] sm:$0xff]
    %v228 = vld [vmem:[%s2 + $0x148] sm:$0xff]
    %v229 = vld [vmem:[%s2 + $0x150] sm:$0xff]
    %v230 = vld [vmem:[%s2 + $0x158] sm:$0xff]
    %v231 = vld [vmem:[%s2 + $0x160] sm:$0xff]
    %v232 = vld [vmem:[%s2 + $0x168] sm:$0xff]
    %v233 = vld [vmem:[%s2 + $0x170] sm:$0xff]
    %v234 = vld [vmem:[%s2 + $0x178] sm:$0xff]
    %v235 = vld [vmem:[%s2 + $0x180] sm:$0xff]
    %v236 = vld [vmem:[%s2 + $0x188] sm:$0xff]
    %v237 = vld [vmem:[%s2 + $0x190] sm:$0xff]
    %v238 = vld [vmem:[%s2 + $0x198] sm:$0xff]
    %v239 = vld [vmem:[%s2 + $0x1a0] sm:$0xff]
    %v240 = vld [vmem:[%s2 + $0x1a8] sm:$0xff]
    %v241 = vld [vmem:[%s2 + $0x1b0] sm:$0xff]
    %v242 = vld [vmem:[%s2 + $0x1b8] sm:$0xff]
    %v243 = vld [vmem:[%s2 + $0x1c0] sm:$0xff]
    %v244 = vld [vmem:[%s2 + $0x1c8] sm:$0xff]
    %v245 = vld [vmem:[%s2 + $0x1d0] sm:$0xff]
    %v246 = vld [vmem:[%s2 + $0x1d8] sm:$0xff]
    %v247 = vld [vmem:[%s2 + $0x1e0] sm:$0xff]
    %v248 = vld [vmem:[%s2 + $0x1e8] sm:$0xff]
    %v249 = vld [vmem:[%s2 + $0x1f0] sm:$0xff]
    %v250 = vld [vmem:[%s2 + $0x1f8] sm:$0xff]
    %vm251 = vcmask 523264
    %v253 = vsel %vm251, %v171, 0
    %v256 = vsel %vm251, %v172, 0
    %v259 = vsel %vm251, %v173, 0
    %v262 = vsel %vm251, %v174, 0
    %v265 = vsel %vm251, %v175, 0
    %v268 = vsel %vm251, %v176, 0
    %v271 = vsel %vm251, %v177, 0
    %v274 = vsel %vm251, %v178, 0
    %v277 = vsel %vm251, %v179, 0
    %v280 = vsel %vm251, %v180, 0
    %v283 = vsel %vm251, %v181, 0
    %v286 = vsel %vm251, %v182, 0
    %v289 = vsel %vm251, %v183, 0
    %v292 = vsel %vm251, %v184, 0
    %v295 = vsel %vm251, %v185, 0
    %v298 = vsel %vm251, %v186, 0
    %300 = vmatprep.subr.mxu0 0.0
    %301 = vmatpush1.msra.mxu0 %v163
    %302 = vmatprep.subr.mxu0 0.0
    %303 = vmatpush1.msra.mxu0 %v164
    %304 = vmatprep.subr.mxu0 0.0
    %305 = vmatpush1.msra.mxu0 %v165
    %306 = vmatprep.subr.mxu0 0.0
    %307 = vmatpush1.msra.mxu0 %v166
    %308 = vmatprep.subr.mxu0 0.0
    %309 = vmatpush1.msra.mxu0 %v167
    %310 = vmatprep.subr.mxu0 0.0
    %311 = vmatpush1.msra.mxu0 %v168
    %312 = vmatprep.subr.mxu0 0.0
    %313 = vmatpush1.msra.mxu0 %v169
    %314 = vmatprep.subr.mxu0 0.0
    %315 = vmatpush1.msra.mxu0 %v170
    %316 = vmatprep.subr.mxu0 0.0
    %317 = vmatpush1.msra.mxu0 0.0
    %318 = vmatprep.subr.mxu0 0.0
    %319 = vmatpush1.msra.mxu0 0.0
    %320 = vmatprep.subr.mxu0 0.0
    %321 = vmatpush1.msra.mxu0 0.0
    %322 = vmatprep.subr.mxu0 0.0
    %323 = vmatpush1.msra.mxu0 0.0
    %324 = vmatprep.subr.mxu0 0.0
    %325 = vmatpush1.msra.mxu0 0.0
    %326 = vmatprep.subr.mxu0 0.0
    %327 = vmatpush1.msra.mxu0 0.0
    %328 = vmatprep.subr.mxu0 0.0
    %329 = vmatpush1.msra.mxu0 0.0
    %330 = vmatprep.subr.mxu0 0.0
    %331 = vmatpush1.msra.mxu0 0.0
    %332 = vmatprep.subr.mxu0 0.0
    %333 = vmatpush1.msra.mxu0 0.0
    %334 = vmatprep.subr.mxu0 0.0
    %335 = vmatpush1.msra.mxu0 0.0
    %336 = vmatprep.subr.mxu0 0.0
    %337 = vmatpush1.msra.mxu0 0.0
    %338 = vmatprep.subr.mxu0 0.0
    %339 = vmatpush1.msra.mxu0 0.0
    %340 = vmatprep.subr.mxu0 0.0
    %341 = vmatpush1.msra.mxu0 0.0
    %342 = vmatprep.subr.mxu0 0.0
    %343 = vmatpush1.msra.mxu0 0.0
    %344 = vmatprep.subr.mxu0 0.0
    %345 = vmatpush1.msra.mxu0 0.0
    %346 = vmatprep.subr.mxu0 0.0
    %347 = vmatpush1.msra.mxu0 0.0
    %348 = vmatprep.subr.mxu0 0.0
    %349 = vmatpush1.msra.mxu0 0.0
    %350 = vmatprep.subr.mxu0 0.0
    %351 = vmatpush1.msra.mxu0 0.0
    %352 = vmatprep.subr.mxu0 0.0
    %353 = vmatpush1.msra.mxu0 0.0
    %354 = vmatprep.subr.mxu0 0.0
    %355 = vmatpush1.msra.mxu0 0.0
    %356 = vmatprep.subr.mxu0 0.0
    %357 = vmatpush1.msra.mxu0 0.0
    %358 = vmatprep.subr.mxu0 0.0
    %359 = vmatpush1.msra.mxu0 0.0
    %360 = vmatprep.subr.mxu0 0.0
    %361 = vmatpush1.msra.mxu0 0.0
    %362 = vmatprep.subr.mxu0 0.0
    %363 = vmatpush1.msra.mxu0 0.0
    %364 = vmatprep.mubr.f32.mxu0 0.0
    %365 = vmatmul.mubr.f32.gmra.mrb[0].mxu0 %v253
    %v366 = vpop.f32.mrb[0].mxu0
    %v367 = vadd.f32 0.0, %v366
    %v368 = vpop.f32.mrb[0].mxu0
    %369 = vmatprep.mubr.f32.mxu0 0.0
    %370 = vmatmul.mubr.f32.gmra.mrb[0].mxu0 %v256
    %v371 = vpop.f32.mrb[0].mxu0
    %v372 = vadd.f32 0.0, %v371
    %v373 = vpop.f32.mrb[0].mxu0
    %374 = vmatprep.mubr.f32.mxu0 0.0
    %375 = vmatmul.mubr.f32.gmra.mrb[0].mxu0 %v259
    %v376 = vpop.f32.mrb[0].mxu0
    %v377 = vadd.f32 0.0, %v376
    %v378 = vpop.f32.mrb[0].mxu0
    %379 = vmatprep.mubr.f32.mxu0 0.0
    %380 = vmatmul.mubr.f32.gmra.mrb[0].mxu0 %v262
    %v381 = vpop.f32.mrb[0].mxu0
    %v382 = vadd.f32 0.0, %v381
    %v383 = vpop.f32.mrb[0].mxu0
    %384 = vmatprep.mubr.f32.mxu0 0.0
    %385 = vmatmul.mubr.f32.gmra.mrb[0].mxu0 %v265
    %v386 = vpop.f32.mrb[0].mxu0
    %v387 = vadd.f32 0.0, %v386
    %v388 = vpop.f32.mrb[0].mxu0
    %389 = vmatprep.mubr.f32.mxu0 0.0
    %390 = vmatmul.mubr.f32.gmra.mrb[0].mxu0 %v268
    %v391 = vpop.f32.mrb[0].mxu0
    %v392 = vadd.f32 0.0, %v391
    %v393 = vpop.f32.mrb[0].mxu0
    %394 = vmatprep.mubr.f32.mxu0 0.0
    %395 = vmatmul.mubr.f32.gmra.mrb[0].mxu0 %v271
    %v396 = vpop.f32.mrb[0].mxu0
    %v397 = vadd.f32 0.0, %v396
    %v398 = vpop.f32.mrb[0].mxu0
    %399 = vmatprep.mubr.f32.mxu0 0.0
    %400 = vmatmul.mubr.f32.gmra.mrb[0].mxu0 %v274
    %v401 = vpop.f32.mrb[0].mxu0
    %v402 = vadd.f32 0.0, %v401
    %v403 = vpop.f32.mrb[0].mxu0
    %404 = vmatprep.mubr.f32.mxu0 0.0
    %405 = vmatmul.mubr.f32.gmra.mrb[0].mxu0 %v277
    %v406 = vpop.f32.mrb[0].mxu0
    %v407 = vadd.f32 0.0, %v406
    %v408 = vpop.f32.mrb[0].mxu0
    %409 = vmatprep.mubr.f32.mxu0 0.0
    %410 = vmatmul.mubr.f32.gmra.mrb[0].mxu0 %v280
    %v411 = vpop.f32.mrb[0].mxu0
    %v412 = vadd.f32 0.0, %v411
    %v413 = vpop.f32.mrb[0].mxu0
    %414 = vmatprep.mubr.f32.mxu0 0.0
    %415 = vmatmul.mubr.f32.gmra.mrb[0].mxu0 %v283
    %v416 = vpop.f32.mrb[0].mxu0
    %v417 = vadd.f32 0.0, %v416
    %v418 = vpop.f32.mrb[0].mxu0
    %419 = vmatprep.mubr.f32.mxu0 0.0
    %420 = vmatmul.mubr.f32.gmra.mrb[0].mxu0 %v286
    %v421 = vpop.f32.mrb[0].mxu0
    %v422 = vadd.f32 0.0, %v421
    %v423 = vpop.f32.mrb[0].mxu0
    %424 = vmatprep.mubr.f32.mxu0 0.0
    %425 = vmatmul.mubr.f32.gmra.mrb[0].mxu0 %v289
    %v426 = vpop.f32.mrb[0].mxu0
    %v427 = vadd.f32 0.0, %v426
    %v428 = vpop.f32.mrb[0].mxu0
    %429 = vmatprep.mubr.f32.mxu0 0.0
    %430 = vmatmul.mubr.f32.gmra.mrb[0].mxu0 %v292
    %v431 = vpop.f32.mrb[0].mxu0
    %v432 = vadd.f32 0.0, %v431
    %v433 = vpop.f32.mrb[0].mxu0
    %434 = vmatprep.mubr.f32.mxu0 0.0
    %435 = vmatmul.mubr.f32.gmra.mrb[0].mxu0 %v295
    %v436 = vpop.f32.mrb[0].mxu0
    %v437 = vadd.f32 0.0, %v436
    %v438 = vpop.f32.mrb[0].mxu0
    %439 = vmatprep.mubr.f32.mxu0 0.0
    %440 = vmatmul.mubr.f32.gmra.mrb[0].mxu0 %v298
    %v441 = vpop.f32.mrb[0].mxu0
    %v442 = vadd.f32 0.0, %v441
    %v443 = vpop.f32.mrb[0].mxu0
    %444 = vdwg.mxu0
    %v445 = vld [vmem:[%s3] sm:$0x1]
    %v447 = vlaneseq
    %v448 = vshrl.u32 %v447, 7
    %v449 = vsub.s32 0, %v448
    %v450 = vrot.slane %v445, %v449
    %452 = vmatprep.subr.mxu0 0.0
    %453 = vmatpush1.msra.mxu0 %v187
    %454 = vmatprep.subr.mxu0 0.0
    %455 = vmatpush1.msra.mxu0 %v188
    %456 = vmatprep.subr.mxu0 0.0
    %457 = vmatpush1.msra.mxu0 %v189
    %458 = vmatprep.subr.mxu0 0.0
    %459 = vmatpush1.msra.mxu0 %v190
    %460 = vmatprep.subr.mxu0 0.0
    %461 = vmatpush1.msra.mxu0 %v191
    %462 = vmatprep.subr.mxu0 0.0
    %463 = vmatpush1.msra.mxu0 %v192
    %464 = vmatprep.subr.mxu0 0.0
    %465 = vmatpush1.msra.mxu0 %v193
    %466 = vmatprep.subr.mxu0 0.0
    %467 = vmatpush1.msra.mxu0 %v194
    %468 = vmatprep.subr.mxu0 0.0
    %469 = vmatpush1.msra.mxu0 %v195
    %470 = vmatprep.subr.mxu0 0.0
    %471 = vmatpush1.msra.mxu0 %v196
    %472 = vmatprep.subr.mxu0 0.0
    %473 = vmatpush1.msra.mxu0 %v197
    %474 = vmatprep.subr.mxu0 0.0
    %475 = vmatpush1.msra.mxu0 %v198
    %476 = vmatprep.subr.mxu0 0.0
    %477 = vmatpush1.msra.mxu0 %v199
    %478 = vmatprep.subr.mxu0 0.0
    %479 = vmatpush1.msra.mxu0 %v200
    %480 = vmatprep.subr.mxu0 0.0
    %481 = vmatpush1.msra.mxu0 %v201
    %482 = vmatprep.subr.mxu0 0.0
    %483 = vmatpush1.msra.mxu0 %v202
    %484 = vmatprep.subr.mxu0 0.0
    %485 = vmatpush1.msra.mxu0 %v203
    %486 = vmatprep.subr.mxu0 0.0
    %487 = vmatpush1.msra.mxu0 %v204
    %488 = vmatprep.subr.mxu0 0.0
    %489 = vmatpush1.msra.mxu0 %v205
    %490 = vmatprep.subr.mxu0 0.0
    %491 = vmatpush1.msra.mxu0 %v206
    %492 = vmatprep.subr.mxu0 0.0
    %493 = vmatpush1.msra.mxu0 %v207
    %494 = vmatprep.subr.mxu0 0.0
    %495 = vmatpush1.msra.mxu0 %v208
    %496 = vmatprep.subr.mxu0 0.0
    %497 = vmatpush1.msra.mxu0 %v209
    %498 = vmatprep.subr.mxu0 0.0
    %499 = vmatpush1.msra.mxu0 %v210
    %500 = vmatprep.subr.mxu0 0.0
    %501 = vmatpush1.msra.mxu0 %v211
    %502 = vmatprep.subr.mxu0 0.0
    %503 = vmatpush1.msra.mxu0 %v212
    %504 = vmatprep.subr.mxu0 0.0
    %505 = vmatpush1.msra.mxu0 %v213
    %506 = vmatprep.subr.mxu0 0.0
    %507 = vmatpush1.msra.mxu0 %v214
    %508 = vmatprep.subr.mxu0 0.0
    %509 = vmatpush1.msra.mxu0 %v215
    %510 = vmatprep.subr.mxu0 0.0
    %511 = vmatpush1.msra.mxu0 %v216
    %512 = vmatprep.subr.mxu0 0.0
    %513 = vmatpush1.msra.mxu0 %v217
    %514 = vmatprep.subr.mxu0 0.0
    %515 = vmatpush1.msra.mxu0 %v218
    %516 = vmatprep.mubr.f32.mxu0 %v387
    %517 = vmatmul.mubr.f32.gmra.mrb[0].mxu0 %v367
    %v518 = vpop.f32.mrb[0].mxu0
    %v519 = vadd.f32 %v450, %v518
    %v520 = vpop.f32.mrb[0].mxu0
    %521 = vmatprep.mubr.f32.mxu0 %v392
    %522 = vmatmul.mubr.f32.gmra.mrb[0].mxu0 %v372
    %v523 = vpop.f32.mrb[0].mxu0
    %v524 = vadd.f32 %v450, %v523
    %v525 = vpop.f32.mrb[0].mxu0
    %526 = vmatprep.mubr.f32.mxu0 %v397
    %527 = vmatmul.mubr.f32.gmra.mrb[0].mxu0 %v377
    %v528 = vpop.f32.mrb[0].mxu0
    %v529 = vadd.f32 %v450, %v528
    %v530 = vpop.f32.mrb[0].mxu0
    %531 = vmatprep.mubr.f32.mxu0 %v402
    %532 = vmatmul.mubr.f32.gmra.mrb[0].mxu0 %v382
    %v533 = vpop.f32.mrb[0].mxu0
    %v534 = vadd.f32 %v450, %v533
    %v535 = vpop.f32.mrb[0].mxu0
    %536 = vdwg.mxu0
    %537 = vmatprep.subr.mxu0 0.0
    %538 = vmatpush1.msra.mxu0 %v219
    %539 = vmatprep.subr.mxu0 0.0
    %540 = vmatpush1.msra.mxu0 %v220
    %541 = vmatprep.subr.mxu0 0.0
    %542 = vmatpush1.msra.mxu0 %v221
    %543 = vmatprep.subr.mxu0 0.0
    %544 = vmatpush1.msra.mxu0 %v222
    %545 = vmatprep.subr.mxu0 0.0
    %546 = vmatpush1.msra.mxu0 %v223
    %547 = vmatprep.subr.mxu0 0.0
    %548 = vmatpush1.msra.mxu0 %v224
    %549 = vmatprep.subr.mxu0 0.0
    %550 = vmatpush1.msra.mxu0 %v225
    %551 = vmatprep.subr.mxu0 0.0
    %552 = vmatpush1.msra.mxu0 %v226
    %553 = vmatprep.subr.mxu0 0.0
    %554 = vmatpush1.msra.mxu0 %v227
    %555 = vmatprep.subr.mxu0 0.0
    %556 = vmatpush1.msra.mxu0 %v228
    %557 = vmatprep.subr.mxu0 0.0
    %558 = vmatpush1.msra.mxu0 %v229
    %559 = vmatprep.subr.mxu0 0.0
    %560 = vmatpush1.msra.mxu0 %v230
    %561 = vmatprep.subr.mxu0 0.0
    %562 = vmatpush1.msra.mxu0 %v231
    %563 = vmatprep.subr.mxu0 0.0
    %564 = vmatpush1.msra.mxu0 %v232
    %565 = vmatprep.subr.mxu0 0.0
    %566 = vmatpush1.msra.mxu0 %v233
    %567 = vmatprep.subr.mxu0 0.0
    %568 = vmatpush1.msra.mxu0 %v234
    %569 = vmatprep.subr.mxu0 0.0
    %570 = vmatpush1.msra.mxu0 %v235
    %571 = vmatprep.subr.mxu0 0.0
    %572 = vmatpush1.msra.mxu0 %v236
    %573 = vmatprep.subr.mxu0 0.0
    %574 = vmatpush1.msra.mxu0 %v237
    %575 = vmatprep.subr.mxu0 0.0
    %576 = vmatpush1.msra.mxu0 %v238
    %577 = vmatprep.subr.mxu0 0.0
    %578 = vmatpush1.msra.mxu0 %v239
    %579 = vmatprep.subr.mxu0 0.0
    %580 = vmatpush1.msra.mxu0 %v240
    %581 = vmatprep.subr.mxu0 0.0
    %582 = vmatpush1.msra.mxu0 %v241
    %583 = vmatprep.subr.mxu0 0.0
    %584 = vmatpush1.msra.mxu0 %v242
    %585 = vmatprep.subr.mxu0 0.0
    %586 = vmatpush1.msra.mxu0 %v243
    %587 = vmatprep.subr.mxu0 0.0
    %588 = vmatpush1.msra.mxu0 %v244
    %589 = vmatprep.subr.mxu0 0.0
    %590 = vmatpush1.msra.mxu0 %v245
    %591 = vmatprep.subr.mxu0 0.0
    %592 = vmatpush1.msra.mxu0 %v246
    %593 = vmatprep.subr.mxu0 0.0
    %594 = vmatpush1.msra.mxu0 %v247
    %595 = vmatprep.subr.mxu0 0.0
    %596 = vmatpush1.msra.mxu0 %v248
    %597 = vmatprep.subr.mxu0 0.0
    %598 = vmatpush1.msra.mxu0 %v249
    %599 = vmatprep.subr.mxu0 0.0
    %600 = vmatpush1.msra.mxu0 %v250
    %601 = vmatprep.mubr.f32.mxu0 %v427
    %602 = vmatmul.mubr.f32.gmra.mrb[0].mxu0 %v407
    %v603 = vpop.f32.mrb[0].mxu0
    %v604 = vadd.f32 %v519, %v603
    %v605 = vpop.f32.mrb[0].mxu0
    %606 = vmatprep.mubr.f32.mxu0 %v432
    %607 = vmatmul.mubr.f32.gmra.mrb[0].mxu0 %v412
    %v608 = vpop.f32.mrb[0].mxu0
    %v609 = vadd.f32 %v524, %v608
    %v610 = vpop.f32.mrb[0].mxu0
    %611 = vmatprep.mubr.f32.mxu0 %v437
    %612 = vmatmul.mubr.f32.gmra.mrb[0].mxu0 %v417
    %v613 = vpop.f32.mrb[0].mxu0
    %v614 = vadd.f32 %v529, %v613
    %v615 = vpop.f32.mrb[0].mxu0
    %616 = vmatprep.mubr.f32.mxu0 %v442
    %617 = vmatmul.mubr.f32.gmra.mrb[0].mxu0 %v422
    %v618 = vpop.f32.mrb[0].mxu0
    %v619 = vadd.f32 %v534, %v618
    %v620 = vpop.f32.mrb[0].mxu0
    %621 = vdwg.mxu0
    %vm622 = vcmp.gt.f32.partialorder %v604, 0.0
    %vm623 = vcmp.gt.f32.partialorder %v609, 0.0
    %vm624 = vcmp.gt.f32.partialorder %v614, 0.0
    %vm625 = vcmp.gt.f32.partialorder %v619, 0.0
    %v626 = vmul.f32 %v604, 0.2
    %v627 = vmul.f32 %v609, 0.2
    %v628 = vmul.f32 %v614, 0.2
    %v629 = vmul.f32 %v619, 0.2
    %v630 = vsel %vm622, %v604, %v626
    %v631 = vsel %vm623, %v609, %v627
    %v632 = vsel %vm624, %v614, %v628
    %v633 = vsel %vm625, %v619, %v629
    %634 = vst [vmem:[%s19] sm:$0xff] %v630
    %635 = vst [vmem:[%s19 + $0x8] sm:$0xff] %v631
    %636 = vst [vmem:[%s19 + $0x10] sm:$0xff] %v632
    %637 = vst [vmem:[%s19 + $0x18] sm:$0xff] %v633
    %v638 = vld [vmem:[#allocation5] sm:$0xff]
    %v639 = vld [vmem:[#allocation5 + $0x8] sm:$0xff]
    %v640 = vld [vmem:[#allocation5 + $0x10] sm:$0xff]
    %v641 = vld [vmem:[#allocation5 + $0x18] sm:$0xff]
    %v642 = vld [vmem:[#allocation5 + $0x20] sm:$0xff]
    %v643 = vld [vmem:[#allocation5 + $0x28] sm:$0xff]
    %v644 = vld [vmem:[#allocation5 + $0x30] sm:$0xff]
    %v645 = vld [vmem:[#allocation5 + $0x38] sm:$0xff]
    %v646 = vld [vmem:[#allocation7] sm:$0xff]
    %v647 = vld [vmem:[#allocation7 + $0x8] sm:$0xff]
    %v648 = vld [vmem:[#allocation7 + $0x10] sm:$0xff]
    %v649 = vld [vmem:[#allocation7 + $0x18] sm:$0xff]
    %v650 = vld [vmem:[#allocation7 + $0x20] sm:$0xff]
    %v651 = vld [vmem:[#allocation7 + $0x28] sm:$0xff]
    %v652 = vld [vmem:[#allocation7 + $0x30] sm:$0xff]
    %v653 = vld [vmem:[#allocation7 + $0x38] sm:$0xff]
    %v654 = vld [vmem:[#allocation7 + $0x40] sm:$0xff]
    %v655 = vld [vmem:[#allocation7 + $0x48] sm:$0xff]
    %v656 = vld [vmem:[#allocation7 + $0x50] sm:$0xff]
    %v657 = vld [vmem:[#allocation7 + $0x58] sm:$0xff]
    %v658 = vld [vmem:[#allocation7 + $0x60] sm:$0xff]
    %v659 = vld [vmem:[#allocation7 + $0x68] sm:$0xff]
    %v660 = vld [vmem:[#allocation7 + $0x70] sm:$0xff]
    %v661 = vld [vmem:[#allocation7 + $0x78] sm:$0xff]
    %v662 = vld [vmem:[#allocation7 + $0x80] sm:$0xff]
    %v663 = vld [vmem:[#allocation7 + $0x88] sm:$0xff]
    %v664 = vld [vmem:[#allocation7 + $0x90] sm:$0xff]
    %v665 = vld [vmem:[#allocation7 + $0x98] sm:$0xff]
    %v666 = vld [vmem:[#allocation7 + $0xa0] sm:$0xff]
    %v667 = vld [vmem:[#allocation7 + $0xa8] sm:$0xff]
    %v668 = vld [vmem:[#allocation7 + $0xb0] sm:$0xff]
    %v669 = vld [vmem:[#allocation7 + $0xb8] sm:$0xff]
    %v670 = vld [vmem:[#allocation7 + $0xc0] sm:$0xff]
    %v671 = vld [vmem:[#allocation7 + $0xc8] sm:$0xff]
    %v672 = vld [vmem:[#allocation7 + $0xd0] sm:$0xff]
    %v673 = vld [vmem:[#allocation7 + $0xd8] sm:$0xff]
    %v674 = vld [vmem:[#allocation7 + $0xe0] sm:$0xff]
    %v675 = vld [vmem:[#allocation7 + $0xe8] sm:$0xff]
    %v676 = vld [vmem:[#allocation7 + $0xf0] sm:$0xff]
    %v677 = vld [vmem:[#allocation7 + $0xf8] sm:$0xff]
    %v678 = vld [vmem:[#allocation7 + $0x100] sm:$0xff]
    %v679 = vld [vmem:[#allocation7 + $0x108] sm:$0xff]
    %v680 = vld [vmem:[#allocation7 + $0x110] sm:$0xff]
    %v681 = vld [vmem:[#allocation7 + $0x118] sm:$0xff]
    %v682 = vld [vmem:[#allocation7 + $0x120] sm:$0xff]
    %v683 = vld [vmem:[#allocation7 + $0x128] sm:$0xff]
    %v684 = vld [vmem:[#allocation7 + $0x130] sm:$0xff]
    %v685 = vld [vmem:[#allocation7 + $0x138] sm:$0xff]
    %v686 = vld [vmem:[#allocation7 + $0x140] sm:$0xff]
    %v687 = vld [vmem:[#allocation7 + $0x148] sm:$0xff]
    %v688 = vld [vmem:[#allocation7 + $0x150] sm:$0xff]
    %v689 = vld [vmem:[#allocation7 + $0x158] sm:$0xff]
    %v690 = vld [vmem:[#allocation7 + $0x160] sm:$0xff]
    %v691 = vld [vmem:[#allocation7 + $0x168] sm:$0xff]
    %v692 = vld [vmem:[#allocation7 + $0x170] sm:$0xff]
    %v693 = vld [vmem:[#allocation7 + $0x178] sm:$0xff]
    %v694 = vld [vmem:[#allocation7 + $0x180] sm:$0xff]
    %v695 = vld [vmem:[#allocation7 + $0x188] sm:$0xff]
    %v696 = vld [vmem:[#allocation7 + $0x190] sm:$0xff]
    %v697 = vld [vmem:[#allocation7 + $0x198] sm:$0xff]
    %v698 = vld [vmem:[#allocation7 + $0x1a0] sm:$0xff]
    %v699 = vld [vmem:[#allocation7 + $0x1a8] sm:$0xff]
    %v700 = vld [vmem:[#allocation7 + $0x1b0] sm:$0xff]
    %v701 = vld [vmem:[#allocation7 + $0x1b8] sm:$0xff]
    %v702 = vld [vmem:[#allocation7 + $0x1c0] sm:$0xff]
    %v703 = vld [vmem:[#allocation7 + $0x1c8] sm:$0xff]
    %v704 = vld [vmem:[#allocation7 + $0x1d0] sm:$0xff]
    %v705 = vld [vmem:[#allocation7 + $0x1d8] sm:$0xff]
    %v706 = vld [vmem:[#allocation7 + $0x1e0] sm:$0xff]
    %v707 = vld [vmem:[#allocation7 + $0x1e8] sm:$0xff]
    %v708 = vld [vmem:[#allocation7 + $0x1f0] sm:$0xff]
    %v709 = vld [vmem:[#allocation7 + $0x1f8] sm:$0xff]
    %vm710 = vcmask 261120
    %v712 = vsel %vm710, %v638, 0
    %v715 = vsel %vm710, %v639, 0
    %v718 = vsel %vm710, %v640, 0
    %v721 = vsel %vm710, %v641, 0
    %v724 = vsel %vm710, %v642, 0
    %v727 = vsel %vm710, %v643, 0
    %v730 = vsel %vm710, %v644, 0
    %v733 = vsel %vm710, %v645, 0
    %735 = vmatprep.subr.mxu0 0.0
    %736 = vmatpush1.msra.mxu0 %v630
    %737 = vmatprep.subr.mxu0 0.0
    %738 = vmatpush1.msra.mxu0 %v631
    %739 = vmatprep.subr.mxu0 0.0
    %740 = vmatpush1.msra.mxu0 %v632
    %741 = vmatprep.subr.mxu0 0.0
    %742 = vmatpush1.msra.mxu0 %v633
    %743 = vmatprep.subr.mxu0 0.0
    %744 = vmatpush1.msra.mxu0 0.0
    %745 = vmatprep.subr.mxu0 0.0
    %746 = vmatpush1.msra.mxu0 0.0
    %747 = vmatprep.subr.mxu0 0.0
    %748 = vmatpush1.msra.mxu0 0.0
    %749 = vmatprep.subr.mxu0 0.0
    %750 = vmatpush1.msra.mxu0 0.0
    %751 = vmatprep.subr.mxu0 0.0
    %752 = vmatpush1.msra.mxu0 0.0
    %753 = vmatprep.subr.mxu0 0.0
    %754 = vmatpush1.msra.mxu0 0.0
    %755 = vmatprep.subr.mxu0 0.0
    %756 = vmatpush1.msra.mxu0 0.0
    %757 = vmatprep.subr.mxu0 0.0
    %758 = vmatpush1.msra.mxu0 0.0
    %759 = vmatprep.subr.mxu0 0.0
    %760 = vmatpush1.msra.mxu0 0.0
    %761 = vmatprep.subr.mxu0 0.0
    %762 = vmatpush1.msra.mxu0 0.0
    %763 = vmatprep.subr.mxu0 0.0
    %764 = vmatpush1.msra.mxu0 0.0
    %765 = vmatprep.subr.mxu0 0.0
    %766 = vmatpush1.msra.mxu0 0.0
    %767 = vmatprep.subr.mxu0 0.0
    %768 = vmatpush1.msra.mxu0 0.0
    %769 = vmatprep.subr.mxu0 0.0
    %770 = vmatpush1.msra.mxu0 0.0
    %771 = vmatprep.subr.mxu0 0.0
    %772 = vmatpush1.msra.mxu0 0.0
    %773 = vmatprep.subr.mxu0 0.0
    %774 = vmatpush1.msra.mxu0 0.0
    %775 = vmatprep.subr.mxu0 0.0
    %776 = vmatpush1.msra.mxu0 0.0
    %777 = vmatprep.subr.mxu0 0.0
    %778 = vmatpush1.msra.mxu0 0.0
    %779 = vmatprep.subr.mxu0 0.0
    %780 = vmatpush1.msra.mxu0 0.0
    %781 = vmatprep.subr.mxu0 0.0
    %782 = vmatpush1.msra.mxu0 0.0
    %783 = vmatprep.subr.mxu0 0.0
    %784 = vmatpush1.msra.mxu0 0.0
    %785 = vmatprep.subr.mxu0 0.0
    %786 = vmatpush1.msra.mxu0 0.0
    %787 = vmatprep.subr.mxu0 0.0
    %788 = vmatpush1.msra.mxu0 0.0
    %789 = vmatprep.subr.mxu0 0.0
    %790 = vmatpush1.msra.mxu0 0.0
    %791 = vmatprep.subr.mxu0 0.0
    %792 = vmatpush1.msra.mxu0 0.0
    %793 = vmatprep.subr.mxu0 0.0
    %794 = vmatpush1.msra.mxu0 0.0
    %795 = vmatprep.subr.mxu0 0.0
    %796 = vmatpush1.msra.mxu0 0.0
    %797 = vmatprep.subr.mxu0 0.0
    %798 = vmatpush1.msra.mxu0 0.0
    %799 = vmatprep.mubr.f32.mxu0 0.0
    %800 = vmatmul.mubr.f32.gmra.mrb[0].mxu0 %v712
    %v801 = vpop.f32.mrb[0].mxu0
    %v802 = vadd.f32 0.0, %v801
    %v803 = vpop.f32.mrb[0].mxu0
    %804 = vmatprep.mubr.f32.mxu0 0.0
    %805 = vmatmul.mubr.f32.gmra.mrb[0].mxu0 %v715
    %v806 = vpop.f32.mrb[0].mxu0
    %v807 = vadd.f32 0.0, %v806
    %v808 = vpop.f32.mrb[0].mxu0
    %809 = vmatprep.mubr.f32.mxu0 0.0
    %810 = vmatmul.mubr.f32.gmra.mrb[0].mxu0 %v718
    %v811 = vpop.f32.mrb[0].mxu0
    %v812 = vadd.f32 0.0, %v811
    %v813 = vpop.f32.mrb[0].mxu0
    %814 = vmatprep.mubr.f32.mxu0 0.0
    %815 = vmatmul.mubr.f32.gmra.mrb[0].mxu0 %v721
    %v816 = vpop.f32.mrb[0].mxu0
    %v817 = vadd.f32 0.0, %v816
    %v818 = vpop.f32.mrb[0].mxu0
    %819 = vmatprep.mubr.f32.mxu0 0.0
    %820 = vmatmul.mubr.f32.gmra.mrb[0].mxu0 %v724
    %v821 = vpop.f32.mrb[0].mxu0
    %v822 = vadd.f32 0.0, %v821
    %v823 = vpop.f32.mrb[0].mxu0
    %824 = vmatprep.mubr.f32.mxu0 0.0
    %825 = vmatmul.mubr.f32.gmra.mrb[0].mxu0 %v727
    %v826 = vpop.f32.mrb[0].mxu0
    %v827 = vadd.f32 0.0, %v826
    %v828 = vpop.f32.mrb[0].mxu0
    %829 = vmatprep.mubr.f32.mxu0 0.0
    %830 = vmatmul.mubr.f32.gmra.mrb[0].mxu0 %v730
    %v831 = vpop.f32.mrb[0].mxu0
    %v832 = vadd.f32 0.0, %v831
    %v833 = vpop.f32.mrb[0].mxu0
    %834 = vmatprep.mubr.f32.mxu0 0.0
    %835 = vmatmul.mubr.f32.gmra.mrb[0].mxu0 %v733
    %v836 = vpop.f32.mrb[0].mxu0
    %v837 = vadd.f32 0.0, %v836
    %v838 = vpop.f32.mrb[0].mxu0
    %839 = vdwg.mxu0
    %840 = vmatprep.subr.mxu0 0.0
    %841 = vmatpush1.msra.mxu0 %v646
    %842 = vmatprep.subr.mxu0 0.0
    %843 = vmatpush1.msra.mxu0 %v647
    %844 = vmatprep.subr.mxu0 0.0
    %845 = vmatpush1.msra.mxu0 %v648
    %846 = vmatprep.subr.mxu0 0.0
    %847 = vmatpush1.msra.mxu0 %v649
    %848 = vmatprep.subr.mxu0 0.0
    %849 = vmatpush1.msra.mxu0 %v650
    %850 = vmatprep.subr.mxu0 0.0
    %851 = vmatpush1.msra.mxu0 %v651
    %852 = vmatprep.subr.mxu0 0.0
    %853 = vmatpush1.msra.mxu0 %v652
    %854 = vmatprep.subr.mxu0 0.0
    %855 = vmatpush1.msra.mxu0 %v653
    %856 = vmatprep.subr.mxu0 0.0
    %857 = vmatpush1.msra.mxu0 %v654
    %858 = vmatprep.subr.mxu0 0.0
    %859 = vmatpush1.msra.mxu0 %v655
    %860 = vmatprep.subr.mxu0 0.0
    %861 = vmatpush1.msra.mxu0 %v656
    %862 = vmatprep.subr.mxu0 0.0
    %863 = vmatpush1.msra.mxu0 %v657
    %864 = vmatprep.subr.mxu0 0.0
    %865 = vmatpush1.msra.mxu0 %v658
    %866 = vmatprep.subr.mxu0 0.0
    %867 = vmatpush1.msra.mxu0 %v659
    %868 = vmatprep.subr.mxu0 0.0
    %869 = vmatpush1.msra.mxu0 %v660
    %870 = vmatprep.subr.mxu0 0.0
    %871 = vmatpush1.msra.mxu0 %v661
    %872 = vmatprep.subr.mxu0 0.0
    %873 = vmatpush1.msra.mxu0 %v662
    %874 = vmatprep.subr.mxu0 0.0
    %875 = vmatpush1.msra.mxu0 %v663
    %876 = vmatprep.subr.mxu0 0.0
    %877 = vmatpush1.msra.mxu0 %v664
    %878 = vmatprep.subr.mxu0 0.0
    %879 = vmatpush1.msra.mxu0 %v665
    %880 = vmatprep.subr.mxu0 0.0
    %881 = vmatpush1.msra.mxu0 %v666
    %882 = vmatprep.subr.mxu0 0.0
    %883 = vmatpush1.msra.mxu0 %v667
    %884 = vmatprep.subr.mxu0 0.0
    %885 = vmatpush1.msra.mxu0 %v668
    %886 = vmatprep.subr.mxu0 0.0
    %887 = vmatpush1.msra.mxu0 %v669
    %888 = vmatprep.subr.mxu0 0.0
    %889 = vmatpush1.msra.mxu0 %v670
    %890 = vmatprep.subr.mxu0 0.0
    %891 = vmatpush1.msra.mxu0 %v671
    %892 = vmatprep.subr.mxu0 0.0
    %893 = vmatpush1.msra.mxu0 %v672
    %894 = vmatprep.subr.mxu0 0.0
    %895 = vmatpush1.msra.mxu0 %v673
    %896 = vmatprep.subr.mxu0 0.0
    %897 = vmatpush1.msra.mxu0 %v674
    %898 = vmatprep.subr.mxu0 0.0
    %899 = vmatpush1.msra.mxu0 %v675
    %900 = vmatprep.subr.mxu0 0.0
    %901 = vmatpush1.msra.mxu0 %v676
    %902 = vmatprep.subr.mxu0 0.0
    %903 = vmatpush1.msra.mxu0 %v677
    %904 = vmatprep.mubr.f32.mxu0 %v812
    %905 = vmatmul.mubr.f32.gmra.mrb[0].mxu0 %v802
    %v906 = vpop.f32.mrb[0].mxu0
    %v907 = vadd.f32 0.0, %v906
    %v908 = vpop.f32.mrb[0].mxu0
    %909 = vmatprep.mubr.f32.mxu0 %v817
    %910 = vmatmul.mubr.f32.gmra.mrb[0].mxu0 %v807
    %v911 = vpop.f32.mrb[0].mxu0
    %v912 = vadd.f32 0.0, %v911
    %v913 = vpop.f32.mrb[0].mxu0
    %914 = vdwg.mxu0
    %915 = vmatprep.subr.mxu0 0.0
    %916 = vmatpush1.msra.mxu0 %v678
    %917 = vmatprep.subr.mxu0 0.0
    %918 = vmatpush1.msra.mxu0 %v679
    %919 = vmatprep.subr.mxu0 0.0
    %920 = vmatpush1.msra.mxu0 %v680
    %921 = vmatprep.subr.mxu0 0.0
    %922 = vmatpush1.msra.mxu0 %v681
    %923 = vmatprep.subr.mxu0 0.0
    %924 = vmatpush1.msra.mxu0 %v682
    %925 = vmatprep.subr.mxu0 0.0
    %926 = vmatpush1.msra.mxu0 %v683
    %927 = vmatprep.subr.mxu0 0.0
    %928 = vmatpush1.msra.mxu0 %v684
    %929 = vmatprep.subr.mxu0 0.0
    %930 = vmatpush1.msra.mxu0 %v685
    %931 = vmatprep.subr.mxu0 0.0
    %932 = vmatpush1.msra.mxu0 %v686
    %933 = vmatprep.subr.mxu0 0.0
    %934 = vmatpush1.msra.mxu0 %v687
    %935 = vmatprep.subr.mxu0 0.0
    %936 = vmatpush1.msra.mxu0 %v688
    %937 = vmatprep.subr.mxu0 0.0
    %938 = vmatpush1.msra.mxu0 %v689
    %939 = vmatprep.subr.mxu0 0.0
    %940 = vmatpush1.msra.mxu0 %v690
    %941 = vmatprep.subr.mxu0 0.0
    %942 = vmatpush1.msra.mxu0 %v691
    %943 = vmatprep.subr.mxu0 0.0
    %944 = vmatpush1.msra.mxu0 %v692
    %945 = vmatprep.subr.mxu0 0.0
    %946 = vmatpush1.msra.mxu0 %v693
    %947 = vmatprep.subr.mxu0 0.0
    %948 = vmatpush1.msra.mxu0 %v694
    %949 = vmatprep.subr.mxu0 0.0
    %950 = vmatpush1.msra.mxu0 %v695
    %951 = vmatprep.subr.mxu0 0.0
    %952 = vmatpush1.msra.mxu0 %v696
    %953 = vmatprep.subr.mxu0 0.0
    %954 = vmatpush1.msra.mxu0 %v697
    %955 = vmatprep.subr.mxu0 0.0
    %956 = vmatpush1.msra.mxu0 %v698
    %957 = vmatprep.subr.mxu0 0.0
    %958 = vmatpush1.msra.mxu0 %v699
    %959 = vmatprep.subr.mxu0 0.0
    %960 = vmatpush1.msra.mxu0 %v700
    %961 = vmatprep.subr.mxu0 0.0
    %962 = vmatpush1.msra.mxu0 %v701
    %963 = vmatprep.subr.mxu0 0.0
    %964 = vmatpush1.msra.mxu0 %v702
    %965 = vmatprep.subr.mxu0 0.0
    %966 = vmatpush1.msra.mxu0 %v703
    %967 = vmatprep.subr.mxu0 0.0
    %968 = vmatpush1.msra.mxu0 %v704
    %969 = vmatprep.subr.mxu0 0.0
    %970 = vmatpush1.msra.mxu0 %v705
    %971 = vmatprep.subr.mxu0 0.0
    %972 = vmatpush1.msra.mxu0 %v706
    %973 = vmatprep.subr.mxu0 0.0
    %974 = vmatpush1.msra.mxu0 %v707
    %975 = vmatprep.subr.mxu0 0.0
    %976 = vmatpush1.msra.mxu0 %v708
    %977 = vmatprep.subr.mxu0 0.0
    %978 = vmatpush1.msra.mxu0 %v709
    %979 = vmatprep.mubr.f32.mxu0 %v832
    %980 = vmatmul.mubr.f32.gmra.mrb[0].mxu0 %v822
    %v981 = vpop.f32.mrb[0].mxu0
    %v982 = vadd.f32 %v907, %v981
    %v983 = vpop.f32.mrb[0].mxu0
    %984 = vmatprep.mubr.f32.mxu0 %v837
    %985 = vmatmul.mubr.f32.gmra.mrb[0].mxu0 %v827
    %v986 = vpop.f32.mrb[0].mxu0
    %v987 = vadd.f32 %v912, %v986
    %v988 = vpop.f32.mrb[0].mxu0
    %989 = vdwg.mxu0
    %v990 = vld [vmem:[%s6] sm:$0x1]
    %v991 = vld [vmem:[%s7] sm:$0x1]
    %v992 = vadd.f32 %v982, %v987
    %v993 = vrot.slane %v992, 4
    %v994 = vadd.f32 %v992, %v993
    %v995 = vrot.slane %v994, 2
    %v996 = vadd.f32 %v994, %v995
    %v997 = vrot.slane %v996, 1
    %v998 = vadd.f32 %v996, %v997
    %1000 = vrot.lane.b32.xlu0 %v998, 112
    %v1001 = vpop.permute.xlu0 %1000
    %v1003 = vadd.f32 %v998, %v1001
    %1004 = vrot.lane.b32.xlu0 %v998, 96
    %v1005 = vpop.permute.xlu0 %1004
    %v1007 = vadd.f32 %v1003, %v1005
    %1008 = vrot.lane.b32.xlu0 %v998, 80
    %v1009 = vpop.permute.xlu0 %1008
    %v1011 = vadd.f32 %v1007, %v1009
    %1012 = vrot.lane.b32.xlu0 %v998, 64
    %v1013 = vpop.permute.xlu0 %1012
    %v1015 = vadd.f32 %v1011, %v1013
    %1016 = vrot.lane.b32.xlu0 %v998, 48
    %v1017 = vpop.permute.xlu0 %1016
    %v1019 = vadd.f32 %v1015, %v1017
    %1020 = vrot.lane.b32.xlu0 %v998, 32
    %v1021 = vpop.permute.xlu0 %1020
    %v1023 = vadd.f32 %v1019, %v1021
    %1024 = vrot.lane.b32.xlu0 %v998, 16
    %v1025 = vpop.permute.xlu0 %1024
    %v1027 = vadd.f32 %v1023, %v1025
    %v1028 = vmul.f32 %v1027, 0.0078125
    %1030 = vrot.lane.b32.xlu0 %v1028, 16
    %v1031 = vpop.permute.xlu0 %1030
    %1033 = vrot.lane.b32.xlu0 %v1028, 32
    %v1034 = vpop.permute.xlu0 %1033
    %1036 = vrot.lane.b32.xlu0 %v1028, 48
    %v1037 = vpop.permute.xlu0 %1036
    %1039 = vrot.lane.b32.xlu0 %v1028, 64
    %v1040 = vpop.permute.xlu0 %1039
    %1042 = vrot.lane.b32.xlu0 %v1028, 80
    %v1043 = vpop.permute.xlu0 %1042
    %1045 = vrot.lane.b32.xlu0 %v1028, 96
    %v1046 = vpop.permute.xlu0 %1045
    %1048 = vrot.lane.b32.xlu0 %v1028, 112
    %v1049 = vpop.permute.xlu0 %1048
    %vm1051 = vcmask 130048
    %v1052 = vsel %vm1051, %v1028, %v1031
    %v1053 = vsel %vm710, %v1052, %v1034
    %vm1054 = vcmask 392192
    %v1055 = vsel %vm1054, %v1053, %v1037
    %v1056 = vsel %vm251, %v1055, %v1040
    %vm1057 = vcmask 654336
    %v1058 = vsel %vm1057, %v1056, %v1043
    %vm1059 = vcmask 785408
    %v1060 = vsel %vm1059, %v1058, %v1046
    %vm1061 = vcmask 916480
    %v1062 = vsel %vm1061, %v1060, %v1049
    %v1063 = vlaneseq
    %v1064 = vshrl.u32 %v1063, 7
    %v1065 = vsub.s32 0, %v1064
    %v1066 = vrot.slane %v1062, %v1065
    %v1067 = vsub.f32 %v982, %v1066
    %v1068 = vsub.f32 %v987, %v1066
    %v1069 = vmul.f32 %v1067, %v1067
    %v1070 = vmul.f32 %v1068, %v1068
    %v1071 = vadd.f32 %v1069, %v1070
    %v1072 = vrot.slane %v1071, 4
    %v1073 = vadd.f32 %v1071, %v1072
    %v1074 = vrot.slane %v1073, 2
    %v1075 = vadd.f32 %v1073, %v1074
    %v1076 = vrot.slane %v1075, 1
    %v1077 = vadd.f32 %v1075, %v1076
    %1079 = vrot.lane.b32.xlu0 %v1077, 112
    %v1080 = vpop.permute.xlu0 %1079
    %v1082 = vadd.f32 %v1077, %v1080
    %1083 = vrot.lane.b32.xlu0 %v1077, 96
    %v1084 = vpop.permute.xlu0 %1083
    %v1086 = vadd.f32 %v1082, %v1084
    %1087 = vrot.lane.b32.xlu0 %v1077, 80
    %v1088 = vpop.permute.xlu0 %1087
    %v1090 = vadd.f32 %v1086, %v1088
    %1091 = vrot.lane.b32.xlu0 %v1077, 64
    %v1092 = vpop.permute.xlu0 %1091
    %v1094 = vadd.f32 %v1090, %v1092
    %1095 = vrot.lane.b32.xlu0 %v1077, 48
    %v1096 = vpop.permute.xlu0 %1095
    %v1098 = vadd.f32 %v1094, %v1096
    %1099 = vrot.lane.b32.xlu0 %v1077, 32
    %v1100 = vpop.permute.xlu0 %1099
    %v1102 = vadd.f32 %v1098, %v1100
    %1103 = vrot.lane.b32.xlu0 %v1077, 16
    %v1104 = vpop.permute.xlu0 %1103
    %v1106 = vadd.f32 %v1102, %v1104
    %v1107 = vmul.f32 %v1106, 0.0078125
    %v1108 = vadd.f32 %v1107, 1e-05
    %v1109 = vrsqrt.pop %v1108
    %v1110 = vmul.f32 %v990, %v1109
    %v1112 = vlaneseq
    %v1113 = vshrl.u32 %v1112, 7
    %v1114 = vsub.s32 0, %v1113
    %v1115 = vrot.slane %v1110, %v1114
    %1116 = vrot.lane.b32.xlu0 %v1115, 16
    %v1117 = vpop.permute.xlu0 %1116
    %1119 = vrot.lane.b32.xlu0 %v1115, 32
    %v1120 = vpop.permute.xlu0 %1119
    %1122 = vrot.lane.b32.xlu0 %v1115, 48
    %v1123 = vpop.permute.xlu0 %1122
    %1125 = vrot.lane.b32.xlu0 %v1115, 64
    %v1126 = vpop.permute.xlu0 %1125
    %1128 = vrot.lane.b32.xlu0 %v1115, 80
    %v1129 = vpop.permute.xlu0 %1128
    %1131 = vrot.lane.b32.xlu0 %v1115, 96
    %v1132 = vpop.permute.xlu0 %1131
    %1134 = vrot.lane.b32.xlu0 %v1115, 112
    %v1135 = vpop.permute.xlu0 %1134
    %v1137 = vsel %vm1051, %v1110, %v1117
    %v1138 = vsel %vm710, %v1137, %v1120
    %v1139 = vsel %vm1054, %v1138, %v1123
    %v1140 = vsel %vm251, %v1139, %v1126
    %v1141 = vsel %vm1057, %v1140, %v1129
    %v1142 = vsel %vm1059, %v1141, %v1132
    %v1143 = vsel %vm1061, %v1142, %v1135
    %v1144 = vlaneseq
    %v1145 = vshrl.u32 %v1144, 7
    %v1146 = vsub.s32 0, %v1145
    %v1147 = vrot.slane %v1143, %v1146
    %v1148 = vmul.f32 %v1067, %v1147
    %v1149 = vmul.f32 %v1068, %v1147
    %v1151 = vlaneseq
    %v1152 = vshrl.u32 %v1151, 7
    %v1153 = vsub.s32 0, %v1152
    %v1154 = vrot.slane %v991, %v1153
    %v1156 = vadd.f32 %v1148, %v1154
    %v1157 = vadd.f32 %v1149, %v1154
    %vm1158 = vcmp.gt.f32.partialorder %v1156, 0.0
    %vm1159 = vcmp.gt.f32.partialorder %v1157, 0.0
    %v1160 = vmul.f32 %v1156, 0.2
    %v1161 = vmul.f32 %v1157, 0.2
    %v1162 = vsel %vm1158, %v1156, %v1160
    %v1163 = vsel %vm1159, %v1157, %v1161
    %1164 = vst [vmem:[%s20] sm:$0xff] %v1162
    %1165 = vst [vmem:[%s20 + $0x8] sm:$0xff] %v1163
    %v1166 = vld [vmem:[%s8] sm:$0xff]
    %v1167 = vld [vmem:[%s8 + $0x8] sm:$0xff]
    %v1168 = vld [vmem:[%s8 + $0x10] sm:$0xff]
    %v1169 = vld [vmem:[%s8 + $0x18] sm:$0xff]
    %v1170 = vld [vmem:[#allocation8] sm:$0xff]
    %v1171 = vld [vmem:[#allocation8 + $0x8] sm:$0xff]
    %v1172 = vld [vmem:[#allocation8 + $0x10] sm:$0xff]
    %v1173 = vld [vmem:[#allocation8 + $0x18] sm:$0xff]
    %v1174 = vld [vmem:[#allocation8 + $0x20] sm:$0xff]
    %v1175 = vld [vmem:[#allocation8 + $0x28] sm:$0xff]
    %v1176 = vld [vmem:[#allocation8 + $0x30] sm:$0xff]
    %v1177 = vld [vmem:[#allocation8 + $0x38] sm:$0xff]
    %v1178 = vld [vmem:[#allocation8 + $0x40] sm:$0xff]
    %v1179 = vld [vmem:[#allocation8 + $0x48] sm:$0xff]
    %v1180 = vld [vmem:[#allocation8 + $0x50] sm:$0xff]
    %v1181 = vld [vmem:[#allocation8 + $0x58] sm:$0xff]
    %v1182 = vld [vmem:[#allocation8 + $0x60] sm:$0xff]
    %v1183 = vld [vmem:[#allocation8 + $0x68] sm:$0xff]
    %v1184 = vld [vmem:[#allocation8 + $0x70] sm:$0xff]
    %v1185 = vld [vmem:[#allocation8 + $0x78] sm:$0xff]
    %v1186 = vld [vmem:[#allocation8 + $0x80] sm:$0xff]
    %v1187 = vld [vmem:[#allocation8 + $0x88] sm:$0xff]
    %v1188 = vld [vmem:[#allocation8 + $0x90] sm:$0xff]
    %v1189 = vld [vmem:[#allocation8 + $0x98] sm:$0xff]
    %v1190 = vld [vmem:[#allocation8 + $0xa0] sm:$0xff]
    %v1191 = vld [vmem:[#allocation8 + $0xa8] sm:$0xff]
    %v1192 = vld [vmem:[#allocation8 + $0xb0] sm:$0xff]
    %v1193 = vld [vmem:[#allocation8 + $0xb8] sm:$0xff]
    %v1194 = vld [vmem:[#allocation8 + $0xc0] sm:$0xff]
    %v1195 = vld [vmem:[#allocation8 + $0xc8] sm:$0xff]
    %v1196 = vld [vmem:[#allocation8 + $0xd0] sm:$0xff]
    %v1197 = vld [vmem:[#allocation8 + $0xd8] sm:$0xff]
    %v1198 = vld [vmem:[#allocation8 + $0xe0] sm:$0xff]
    %v1199 = vld [vmem:[#allocation8 + $0xe8] sm:$0xff]
    %v1200 = vld [vmem:[#allocation8 + $0xf0] sm:$0xff]
    %v1201 = vld [vmem:[#allocation8 + $0xf8] sm:$0xff]
    %v1202 = vld [vmem:[#allocation8 + $0x100] sm:$0xff]
    %v1203 = vld [vmem:[#allocation8 + $0x108] sm:$0xff]
    %v1204 = vld [vmem:[#allocation8 + $0x110] sm:$0xff]
    %v1205 = vld [vmem:[#allocation8 + $0x118] sm:$0xff]
    %v1206 = vld [vmem:[#allocation8 + $0x120] sm:$0xff]
    %v1207 = vld [vmem:[#allocation8 + $0x128] sm:$0xff]
    %v1208 = vld [vmem:[#allocation8 + $0x130] sm:$0xff]
    %v1209 = vld [vmem:[#allocation8 + $0x138] sm:$0xff]
    %v1210 = vld [vmem:[#allocation8 + $0x140] sm:$0xff]
    %v1211 = vld [vmem:[#allocation8 + $0x148] sm:$0xff]
    %v1212 = vld [vmem:[#allocation8 + $0x150] sm:$0xff]
    %v1213 = vld [vmem:[#allocation8 + $0x158] sm:$0xff]
    %v1214 = vld [vmem:[#allocation8 + $0x160] sm:$0xff]
    %v1215 = vld [vmem:[#allocation8 + $0x168] sm:$0xff]
    %v1216 = vld [vmem:[#allocation8 + $0x170] sm:$0xff]
    %v1217 = vld [vmem:[#allocation8 + $0x178] sm:$0xff]
    %v1218 = vld [vmem:[#allocation8 + $0x180] sm:$0xff]
    %v1219 = vld [vmem:[#allocation8 + $0x188] sm:$0xff]
    %v1220 = vld [vmem:[#allocation8 + $0x190] sm:$0xff]
    %v1221 = vld [vmem:[#allocation8 + $0x198] sm:$0xff]
    %v1222 = vld [vmem:[#allocation8 + $0x1a0] sm:$0xff]
    %v1223 = vld [vmem:[#allocation8 + $0x1a8] sm:$0xff]
    %v1224 = vld [vmem:[#allocation8 + $0x1b0] sm:$0xff]
    %v1225 = vld [vmem:[#allocation8 + $0x1b8] sm:$0xff]
    %v1226 = vld [vmem:[#allocation8 + $0x1c0] sm:$0xff]
    %v1227 = vld [vmem:[#allocation8 + $0x1c8] sm:$0xff]
    %v1228 = vld [vmem:[#allocation8 + $0x1d0] sm:$0xff]
    %v1229 = vld [vmem:[#allocation8 + $0x1d8] sm:$0xff]
    %v1230 = vld [vmem:[#allocation8 + $0x1e0] sm:$0xff]
    %v1231 = vld [vmem:[#allocation8 + $0x1e8] sm:$0xff]
    %v1232 = vld [vmem:[#allocation8 + $0x1f0] sm:$0xff]
    %v1233 = vld [vmem:[#allocation8 + $0x1f8] sm:$0xff]
    %v1235 = vsel %vm1051, %v1166, 0
    %v1238 = vsel %vm1051, %v1167, 0
    %v1241 = vsel %vm1051, %v1168, 0
    %v1244 = vsel %vm1051, %v1169, 0
    %1246 = vmatprep.subr.mxu0 0.0
    %1247 = vmatpush1.msra.mxu0 %v1162
    %1248 = vmatprep.subr.mxu0 0.0
    %1249 = vmatpush1.msra.mxu0 %v1163
    %1250 = vmatprep.subr.mxu0 0.0
    %1251 = vmatpush1.msra.mxu0 0.0
    %1252 = vmatprep.subr.mxu0 0.0
    %1253 = vmatpush1.msra.mxu0 0.0
    %1254 = vmatprep.subr.mxu0 0.0
    %1255 = vmatpush1.msra.mxu0 0.0
    %1256 = vmatprep.subr.mxu0 0.0
    %1257 = vmatpush1.msra.mxu0 0.0
    %1258 = vmatprep.subr.mxu0 0.0
    %1259 = vmatpush1.msra.mxu0 0.0
    %1260 = vmatprep.subr.mxu0 0.0
    %1261 = vmatpush1.msra.mxu0 0.0
    %1262 = vmatprep.subr.mxu0 0.0
    %1263 = vmatpush1.msra.mxu0 0.0
    %1264 = vmatprep.subr.mxu0 0.0
    %1265 = vmatpush1.msra.mxu0 0.0
    %1266 = vmatprep.subr.mxu0 0.0
    %1267 = vmatpush1.msra.mxu0 0.0
    %1268 = vmatprep.subr.mxu0 0.0
    %1269 = vmatpush1.msra.mxu0 0.0
    %1270 = vmatprep.subr.mxu0 0.0
    %1271 = vmatpush1.msra.mxu0 0.0
    %1272 = vmatprep.subr.mxu0 0.0
    %1273 = vmatpush1.msra.mxu0 0.0
    %1274 = vmatprep.subr.mxu0 0.0
    %1275 = vmatpush1.msra.mxu0 0.0
    %1276 = vmatprep.subr.mxu0 0.0
    %1277 = vmatpush1.msra.mxu0 0.0
    %1278 = vmatprep.subr.mxu0 0.0
    %1279 = vmatpush1.msra.mxu0 0.0
    %1280 = vmatprep.subr.mxu0 0.0
    %1281 = vmatpush1.msra.mxu0 0.0
    %1282 = vmatprep.subr.mxu0 0.0
    %1283 = vmatpush1.msra.mxu0 0.0
    %1284 = vmatprep.subr.mxu0 0.0
    %1285 = vmatpush1.msra.mxu0 0.0
    %1286 = vmatprep.subr.mxu0 0.0
    %1287 = vmatpush1.msra.mxu0 0.0
    %1288 = vmatprep.subr.mxu0 0.0
    %1289 = vmatpush1.msra.mxu0 0.0
    %1290 = vmatprep.subr.mxu0 0.0
    %1291 = vmatpush1.msra.mxu0 0.0
    %1292 = vmatprep.subr.mxu0 0.0
    %1293 = vmatpush1.msra.mxu0 0.0
    %1294 = vmatprep.subr.mxu0 0.0
    %1295 = vmatpush1.msra.mxu0 0.0
    %1296 = vmatprep.subr.mxu0 0.0
    %1297 = vmatpush1.msra.mxu0 0.0
    %1298 = vmatprep.subr.mxu0 0.0
    %1299 = vmatpush1.msra.mxu0 0.0
    %1300 = vmatprep.subr.mxu0 0.0
    %1301 = vmatpush1.msra.mxu0 0.0
    %1302 = vmatprep.subr.mxu0 0.0
    %1303 = vmatpush1.msra.mxu0 0.0
    %1304 = vmatprep.subr.mxu0 0.0
    %1305 = vmatpush1.msra.mxu0 0.0
    %1306 = vmatprep.subr.mxu0 0.0
    %1307 = vmatpush1.msra.mxu0 0.0
    %1308 = vmatprep.subr.mxu0 0.0
    %1309 = vmatpush1.msra.mxu0 0.0
    %1310 = vmatprep.mubr.f32.mxu0 0.0
    %1311 = vmatmul.mubr.f32.gmra.mrb[0].mxu0 %v1235
    %v1312 = vpop.f32.mrb[0].mxu0
    %v1313 = vadd.f32 0.0, %v1312
    %v1314 = vpop.f32.mrb[0].mxu0
    %1315 = vmatprep.mubr.f32.mxu0 0.0
    %1316 = vmatmul.mubr.f32.gmra.mrb[0].mxu0 %v1238
    %v1317 = vpop.f32.mrb[0].mxu0
    %v1318 = vadd.f32 0.0, %v1317
    %v1319 = vpop.f32.mrb[0].mxu0
    %1320 = vmatprep.mubr.f32.mxu0 0.0
    %1321 = vmatmul.mubr.f32.gmra.mrb[0].mxu0 %v1241
    %v1322 = vpop.f32.mrb[0].mxu0
    %v1323 = vadd.f32 0.0, %v1322
    %v1324 = vpop.f32.mrb[0].mxu0
    %1325 = vmatprep.mubr.f32.mxu0 0.0
    %1326 = vmatmul.mubr.f32.gmra.mrb[0].mxu0 %v1244
    %v1327 = vpop.f32.mrb[0].mxu0
    %v1328 = vadd.f32 0.0, %v1327
    %v1329 = vpop.f32.mrb[0].mxu0
    %1330 = vdwg.mxu0
    %1331 = vmatprep.subr.mxu0 0.0
    %1332 = vmatpush1.msra.mxu0 %v1170
    %1333 = vmatprep.subr.mxu0 0.0
    %1334 = vmatpush1.msra.mxu0 %v1171
    %1335 = vmatprep.subr.mxu0 0.0
    %1336 = vmatpush1.msra.mxu0 %v1172
    %1337 = vmatprep.subr.mxu0 0.0
    %1338 = vmatpush1.msra.mxu0 %v1173
    %1339 = vmatprep.subr.mxu0 0.0
    %1340 = vmatpush1.msra.mxu0 %v1174
    %1341 = vmatprep.subr.mxu0 0.0
    %1342 = vmatpush1.msra.mxu0 %v1175
    %1343 = vmatprep.subr.mxu0 0.0
    %1344 = vmatpush1.msra.mxu0 %v1176
    %1345 = vmatprep.subr.mxu0 0.0
    %1346 = vmatpush1.msra.mxu0 %v1177
    %1347 = vmatprep.subr.mxu0 0.0
    %1348 = vmatpush1.msra.mxu0 %v1178
    %1349 = vmatprep.subr.mxu0 0.0
    %1350 = vmatpush1.msra.mxu0 %v1179
    %1351 = vmatprep.subr.mxu0 0.0
    %1352 = vmatpush1.msra.mxu0 %v1180
    %1353 = vmatprep.subr.mxu0 0.0
    %1354 = vmatpush1.msra.mxu0 %v1181
    %1355 = vmatprep.subr.mxu0 0.0
    %1356 = vmatpush1.msra.mxu0 %v1182
    %1357 = vmatprep.subr.mxu0 0.0
    %1358 = vmatpush1.msra.mxu0 %v1183
    %1359 = vmatprep.subr.mxu0 0.0
    %1360 = vmatpush1.msra.mxu0 %v1184
    %1361 = vmatprep.subr.mxu0 0.0
    %1362 = vmatpush1.msra.mxu0 %v1185
    %1363 = vmatprep.subr.mxu0 0.0
    %1364 = vmatpush1.msra.mxu0 %v1186
    %1365 = vmatprep.subr.mxu0 0.0
    %1366 = vmatpush1.msra.mxu0 %v1187
    %1367 = vmatprep.subr.mxu0 0.0
    %1368 = vmatpush1.msra.mxu0 %v1188
    %1369 = vmatprep.subr.mxu0 0.0
    %1370 = vmatpush1.msra.mxu0 %v1189
    %1371 = vmatprep.subr.mxu0 0.0
    %1372 = vmatpush1.msra.mxu0 %v1190
    %1373 = vmatprep.subr.mxu0 0.0
    %1374 = vmatpush1.msra.mxu0 %v1191
    %1375 = vmatprep.subr.mxu0 0.0
    %1376 = vmatpush1.msra.mxu0 %v1192
    %1377 = vmatprep.subr.mxu0 0.0
    %1378 = vmatpush1.msra.mxu0 %v1193
    %1379 = vmatprep.subr.mxu0 0.0
    %1380 = vmatpush1.msra.mxu0 %v1194
    %1381 = vmatprep.subr.mxu0 0.0
    %1382 = vmatpush1.msra.mxu0 %v1195
    %1383 = vmatprep.subr.mxu0 0.0
    %1384 = vmatpush1.msra.mxu0 %v1196
    %1385 = vmatprep.subr.mxu0 0.0
    %1386 = vmatpush1.msra.mxu0 %v1197
    %1387 = vmatprep.subr.mxu0 0.0
    %1388 = vmatpush1.msra.mxu0 %v1198
    %1389 = vmatprep.subr.mxu0 0.0
    %1390 = vmatpush1.msra.mxu0 %v1199
    %1391 = vmatprep.subr.mxu0 0.0
    %1392 = vmatpush1.msra.mxu0 %v1200
    %1393 = vmatprep.subr.mxu0 0.0
    %1394 = vmatpush1.msra.mxu0 %v1201
    %1395 = vmatprep.mubr.f32.mxu0 %v1318
    %1396 = vmatmul.mubr.f32.gmra.mrb[0].mxu0 %v1313
    %v1397 = vpop.f32.mrb[0].mxu0
    %v1398 = vadd.f32 0.0, %v1397
    %v1399 = vpop.f32.mrb[0].mxu0
    %1400 = vdwg.mxu0
    %1401 = vmatprep.subr.mxu0 0.0
    %1402 = vmatpush1.msra.mxu0 %v1202
    %1403 = vmatprep.subr.mxu0 0.0
    %1404 = vmatpush1.msra.mxu0 %v1203
    %1405 = vmatprep.subr.mxu0 0.0
    %1406 = vmatpush1.msra.mxu0 %v1204
    %1407 = vmatprep.subr.mxu0 0.0
    %1408 = vmatpush1.msra.mxu0 %v1205
    %1409 = vmatprep.subr.mxu0 0.0
    %1410 = vmatpush1.msra.mxu0 %v1206
    %1411 = vmatprep.subr.mxu0 0.0
    %1412 = vmatpush1.msra.mxu0 %v1207
    %1413 = vmatprep.subr.mxu0 0.0
    %1414 = vmatpush1.msra.mxu0 %v1208
    %1415 = vmatprep.subr.mxu0 0.0
    %1416 = vmatpush1.msra.mxu0 %v1209
    %1417 = vmatprep.subr.mxu0 0.0
    %1418 = vmatpush1.msra.mxu0 %v1210
    %1419 = vmatprep.subr.mxu0 0.0
    %1420 = vmatpush1.msra.mxu0 %v1211
    %1421 = vmatprep.subr.mxu0 0.0
    %1422 = vmatpush1.msra.mxu0 %v1212
    %1423 = vmatprep.subr.mxu0 0.0
    %1424 = vmatpush1.msra.mxu0 %v1213
    %1425 = vmatprep.subr.mxu0 0.0
    %1426 = vmatpush1.msra.mxu0 %v1214
    %1427 = vmatprep.subr.mxu0 0.0
    %1428 = vmatpush1.msra.mxu0 %v1215
    %1429 = vmatprep.subr.mxu0 0.0
    %1430 = vmatpush1.msra.mxu0 %v1216
    %1431 = vmatprep.subr.mxu0 0.0
    %1432 = vmatpush1.msra.mxu0 %v1217
    %1433 = vmatprep.subr.mxu0 0.0
    %1434 = vmatpush1.msra.mxu0 %v1218
    %1435 = vmatprep.subr.mxu0 0.0
    %1436 = vmatpush1.msra.mxu0 %v1219
    %1437 = vmatprep.subr.mxu0 0.0
    %1438 = vmatpush1.msra.mxu0 %v1220
    %1439 = vmatprep.subr.mxu0 0.0
    %1440 = vmatpush1.msra.mxu0 %v1221
    %1441 = vmatprep.subr.mxu0 0.0
    %1442 = vmatpush1.msra.mxu0 %v1222
    %1443 = vmatprep.subr.mxu0 0.0
    %1444 = vmatpush1.msra.mxu0 %v1223
    %1445 = vmatprep.subr.mxu0 0.0
    %1446 = vmatpush1.msra.mxu0 %v1224
    %1447 = vmatprep.subr.mxu0 0.0
    %1448 = vmatpush1.msra.mxu0 %v1225
    %1449 = vmatprep.subr.mxu0 0.0
    %1450 = vmatpush1.msra.mxu0 %v1226
    %1451 = vmatprep.subr.mxu0 0.0
    %1452 = vmatpush1.msra.mxu0 %v1227
    %1453 = vmatprep.subr.mxu0 0.0
    %1454 = vmatpush1.msra.mxu0 %v1228
    %1455 = vmatprep.subr.mxu0 0.0
    %1456 = vmatpush1.msra.mxu0 %v1229
    %1457 = vmatprep.subr.mxu0 0.0
    %1458 = vmatpush1.msra.mxu0 %v1230
    %1459 = vmatprep.subr.mxu0 0.0
    %1460 = vmatpush1.msra.mxu0 %v1231
    %1461 = vmatprep.subr.mxu0 0.0
    %1462 = vmatpush1.msra.mxu0 %v1232
    %1463 = vmatprep.subr.mxu0 0.0
    %1464 = vmatpush1.msra.mxu0 %v1233
    %1465 = vmatprep.mubr.f32.mxu0 %v1328
    %1466 = vmatmul.mubr.f32.gmra.mrb[0].mxu0 %v1323
    %v1467 = vpop.f32.mrb[0].mxu0
    %v1468 = vadd.f32 %v1398, %v1467
    %v1469 = vpop.f32.mrb[0].mxu0
    %1470 = vdwg.mxu0
    %v1471 = vld [vmem:[%s10] sm:$0x1]
    %v1472 = vld [vmem:[%s11] sm:$0x1]
    %v1473 = vrot.slane %v1468, 4
    %v1474 = vadd.f32 %v1468, %v1473
    %v1475 = vrot.slane %v1474, 2
    %v1476 = vadd.f32 %v1474, %v1475
    %v1477 = vrot.slane %v1476, 1
    %v1478 = vadd.f32 %v1476, %v1477
    %1480 = vrot.lane.b32.xlu0 %v1478, 96
    %v1481 = vpop.permute.xlu0 %1480
    %v1483 = vadd.f32 %v1478, %v1481
    %1484 = vrot.lane.b32.xlu0 %v1478, 64
    %v1485 = vpop.permute.xlu0 %1484
    %v1487 = vadd.f32 %v1483, %v1485
    %1488 = vrot.lane.b32.xlu0 %v1478, 32
    %v1489 = vpop.permute.xlu0 %1488
    %v1491 = vadd.f32 %v1487, %v1489
    %v1492 = vmul.f32 %v1491, 0.03125
    %1494 = vrot.lane.b32.xlu0 %v1492, 32
    %v1495 = vpop.permute.xlu0 %1494
    %1497 = vrot.lane.b32.xlu0 %v1492, 64
    %v1498 = vpop.permute.xlu0 %1497
    %1500 = vrot.lane.b32.xlu0 %v1492, 96
    %v1501 = vpop.permute.xlu0 %1500
    %v1503 = vsel %vm710, %v1492, %v1495
    %v1504 = vsel %vm251, %v1503, %v1498
    %v1505 = vsel %vm1059, %v1504, %v1501
    %v1506 = vlaneseq
    %v1507 = vshrl.u32 %v1506, 7
    %v1508 = vsub.s32 0, %v1507
    %v1509 = vrot.slane %v1505, %v1508
    %v1510 = vsub.f32 %v1468, %v1509
    %v1511 = vmul.f32 %v1510, %v1510
    %v1512 = vrot.slane %v1511, 4
    %v1513 = vadd.f32 %v1511, %v1512
    %v1514 = vrot.slane %v1513, 2
    %v1515 = vadd.f32 %v1513, %v1514
    %v1516 = vrot.slane %v1515, 1
    %v1517 = vadd.f32 %v1515, %v1516
    %1519 = vrot.lane.b32.xlu0 %v1517, 96
    %v1520 = vpop.permute.xlu0 %1519
    %v1522 = vadd.f32 %v1517, %v1520
    %1523 = vrot.lane.b32.xlu0 %v1517, 64
    %v1524 = vpop.permute.xlu0 %1523
    %v1526 = vadd.f32 %v1522, %v1524
    %1527 = vrot.lane.b32.xlu0 %v1517, 32
    %v1528 = vpop.permute.xlu0 %1527
    %v1530 = vadd.f32 %v1526, %v1528
    %v1531 = vmul.f32 %v1530, 0.03125
    %v1532 = vadd.f32 %v1531, 1e-05
    %v1533 = vrsqrt.pop %v1532
    %v1534 = vmul.f32 %v1471, %v1533
    %v1536 = vlaneseq
    %v1537 = vshrl.u32 %v1536, 7
    %v1538 = vsub.s32 0, %v1537
    %v1539 = vrot.slane %v1534, %v1538
    %1540 = vrot.lane.b32.xlu0 %v1539, 32
    %v1541 = vpop.permute.xlu0 %1540
    %1543 = vrot.lane.b32.xlu0 %v1539, 64
    %v1544 = vpop.permute.xlu0 %1543
    %1546 = vrot.lane.b32.xlu0 %v1539, 96
    %v1547 = vpop.permute.xlu0 %1546
    %v1549 = vsel %vm710, %v1534, %v1541
    %v1550 = vsel %vm251, %v1549, %v1544
    %v1551 = vsel %vm1059, %v1550, %v1547
    %v1552 = vlaneseq
    %v1553 = vshrl.u32 %v1552, 7
    %v1554 = vsub.s32 0, %v1553
    %v1555 = vrot.slane %v1551, %v1554
    %v1556 = vmul.f32 %v1510, %v1555
    %v1558 = vlaneseq
    %v1559 = vshrl.u32 %v1558, 7
    %v1560 = vsub.s32 0, %v1559
    %v1561 = vrot.slane %v1472, %v1560
    %v1563 = vadd.f32 %v1556, %v1561
    %vm1564 = vcmp.gt.f32.partialorder %v1563, 0.0
    %v1565 = vmul.f32 %v1563, 0.2
    %v1566 = vsel %vm1564, %v1563, %v1565
    %1567 = vst [vmem:[%s21] sm:$0xff] %v1566
    %v1568 = vld [vmem:[#allocation10] sm:$0xff]
    %v1569 = vld [vmem:[#allocation10 + $0x8] sm:$0xff]
    %v1570 = vld [vmem:[#allocation10 + $0x10] sm:$0xff]
    %v1571 = vld [vmem:[#allocation10 + $0x18] sm:$0xff]
    %v1572 = vld [vmem:[%s13] sm:$0xff]
    %v1573 = vld [vmem:[%s13 + $0x8] sm:$0xff]
    %v1574 = vld [vmem:[%s13 + $0x10] sm:$0xff]
    %v1575 = vld [vmem:[%s13 + $0x18] sm:$0xff]
    %v1576 = vld [vmem:[%s13 + $0x20] sm:$0xff]
    %v1577 = vld [vmem:[%s13 + $0x28] sm:$0xff]
    %v1578 = vld [vmem:[%s13 + $0x30] sm:$0xff]
    %v1579 = vld [vmem:[%s13 + $0x38] sm:$0xff]
    %v1580 = vld [vmem:[%s13 + $0x40] sm:$0xff]
    %v1581 = vld [vmem:[%s13 + $0x48] sm:$0xff]
    %v1582 = vld [vmem:[%s13 + $0x50] sm:$0xff]
    %v1583 = vld [vmem:[%s13 + $0x58] sm:$0xff]
    %v1584 = vld [vmem:[%s13 + $0x60] sm:$0xff]
    %v1585 = vld [vmem:[%s13 + $0x68] sm:$0xff]
    %v1586 = vld [vmem:[%s13 + $0x70] sm:$0xff]
    %v1587 = vld [vmem:[%s13 + $0x78] sm:$0xff]
    %v1588 = vld [vmem:[%s13 + $0x80] sm:$0xff]
    %v1589 = vld [vmem:[%s13 + $0x88] sm:$0xff]
    %v1590 = vld [vmem:[%s13 + $0x90] sm:$0xff]
    %v1591 = vld [vmem:[%s13 + $0x98] sm:$0xff]
    %v1592 = vld [vmem:[%s13 + $0xa0] sm:$0xff]
    %v1593 = vld [vmem:[%s13 + $0xa8] sm:$0xff]
    %v1594 = vld [vmem:[%s13 + $0xb0] sm:$0xff]
    %v1595 = vld [vmem:[%s13 + $0xb8] sm:$0xff]
    %v1596 = vld [vmem:[%s13 + $0xc0] sm:$0xff]
    %v1597 = vld [vmem:[%s13 + $0xc8] sm:$0xff]
    %v1598 = vld [vmem:[%s13 + $0xd0] sm:$0xff]
    %v1599 = vld [vmem:[%s13 + $0xd8] sm:$0xff]
    %v1600 = vld [vmem:[%s13 + $0xe0] sm:$0xff]
    %v1601 = vld [vmem:[%s13 + $0xe8] sm:$0xff]
    %v1602 = vld [vmem:[%s13 + $0xf0] sm:$0xff]
    %v1603 = vld [vmem:[%s13 + $0xf8] sm:$0xff]
    %v1604 = vld [vmem:[%s13 + $0x100] sm:$0xff]
    %v1605 = vld [vmem:[%s13 + $0x108] sm:$0xff]
    %v1606 = vld [vmem:[%s13 + $0x110] sm:$0xff]
    %v1607 = vld [vmem:[%s13 + $0x118] sm:$0xff]
    %v1608 = vld [vmem:[%s13 + $0x120] sm:$0xff]
    %v1609 = vld [vmem:[%s13 + $0x128] sm:$0xff]
    %v1610 = vld [vmem:[%s13 + $0x130] sm:$0xff]
    %v1611 = vld [vmem:[%s13 + $0x138] sm:$0xff]
    %v1612 = vld [vmem:[%s13 + $0x140] sm:$0xff]
    %v1613 = vld [vmem:[%s13 + $0x148] sm:$0xff]
    %v1614 = vld [vmem:[%s13 + $0x150] sm:$0xff]
    %v1615 = vld [vmem:[%s13 + $0x158] sm:$0xff]
    %v1616 = vld [vmem:[%s13 + $0x160] sm:$0xff]
    %v1617 = vld [vmem:[%s13 + $0x168] sm:$0xff]
    %v1618 = vld [vmem:[%s13 + $0x170] sm:$0xff]
    %v1619 = vld [vmem:[%s13 + $0x178] sm:$0xff]
    %v1620 = vld [vmem:[%s13 + $0x180] sm:$0xff]
    %v1621 = vld [vmem:[%s13 + $0x188] sm:$0xff]
    %v1622 = vld [vmem:[%s13 + $0x190] sm:$0xff]
    %v1623 = vld [vmem:[%s13 + $0x198] sm:$0xff]
    %v1624 = vld [vmem:[%s13 + $0x1a0] sm:$0xff]
    %v1625 = vld [vmem:[%s13 + $0x1a8] sm:$0xff]
    %v1626 = vld [vmem:[%s13 + $0x1b0] sm:$0xff]
    %v1627 = vld [vmem:[%s13 + $0x1b8] sm:$0xff]
    %v1628 = vld [vmem:[%s13 + $0x1c0] sm:$0xff]
    %v1629 = vld [vmem:[%s13 + $0x1c8] sm:$0xff]
    %v1630 = vld [vmem:[%s13 + $0x1d0] sm:$0xff]
    %v1631 = vld [vmem:[%s13 + $0x1d8] sm:$0xff]
    %v1632 = vld [vmem:[%s13 + $0x1e0] sm:$0xff]
    %v1633 = vld [vmem:[%s13 + $0x1e8] sm:$0xff]
    %v1634 = vld [vmem:[%s13 + $0x1f0] sm:$0xff]
    %v1635 = vld [vmem:[%s13 + $0x1f8] sm:$0xff]
    %v1636 = vld [vmem:[%s13 + $0x200] sm:$0xff]
    %v1637 = vld [vmem:[%s13 + $0x208] sm:$0xff]
    %v1638 = vld [vmem:[%s13 + $0x210] sm:$0xff]
    %v1639 = vld [vmem:[%s13 + $0x218] sm:$0xff]
    %v1640 = vld [vmem:[%s13 + $0x220] sm:$0xff]
    %v1641 = vld [vmem:[%s13 + $0x228] sm:$0xff]
    %v1642 = vld [vmem:[%s13 + $0x230] sm:$0xff]
    %v1643 = vld [vmem:[%s13 + $0x238] sm:$0xff]
    %v1644 = vld [vmem:[%s13 + $0x240] sm:$0xff]
    %v1645 = vld [vmem:[%s13 + $0x248] sm:$0xff]
    %v1646 = vld [vmem:[%s13 + $0x250] sm:$0xff]
    %v1647 = vld [vmem:[%s13 + $0x258] sm:$0xff]
    %v1648 = vld [vmem:[%s13 + $0x260] sm:$0xff]
    %v1649 = vld [vmem:[%s13 + $0x268] sm:$0xff]
    %v1650 = vld [vmem:[%s13 + $0x270] sm:$0xff]
    %v1651 = vld [vmem:[%s13 + $0x278] sm:$0xff]
    %v1652 = vld [vmem:[%s13 + $0x280] sm:$0xff]
    %v1653 = vld [vmem:[%s13 + $0x288] sm:$0xff]
    %v1654 = vld [vmem:[%s13 + $0x290] sm:$0xff]
    %v1655 = vld [vmem:[%s13 + $0x298] sm:$0xff]
    %v1656 = vld [vmem:[%s13 + $0x2a0] sm:$0xff]
    %v1657 = vld [vmem:[%s13 + $0x2a8] sm:$0xff]
    %v1658 = vld [vmem:[%s13 + $0x2b0] sm:$0xff]
    %v1659 = vld [vmem:[%s13 + $0x2b8] sm:$0xff]
    %v1660 = vld [vmem:[%s13 + $0x2c0] sm:$0xff]
    %v1661 = vld [vmem:[%s13 + $0x2c8] sm:$0xff]
    %v1662 = vld [vmem:[%s13 + $0x2d0] sm:$0xff]
    %v1663 = vld [vmem:[%s13 + $0x2d8] sm:$0xff]
    %v1664 = vld [vmem:[%s13 + $0x2e0] sm:$0xff]
    %v1665 = vld [vmem:[%s13 + $0x2e8] sm:$0xff]
    %v1666 = vld [vmem:[%s13 + $0x2f0] sm:$0xff]
    %v1667 = vld [vmem:[%s13 + $0x2f8] sm:$0xff]
    %v1668 = vld [vmem:[%s13 + $0x300] sm:$0xff]
    %v1669 = vld [vmem:[%s13 + $0x308] sm:$0xff]
    %v1670 = vld [vmem:[%s13 + $0x310] sm:$0xff]
    %v1671 = vld [vmem:[%s13 + $0x318] sm:$0xff]
    %v1672 = vld [vmem:[%s13 + $0x320] sm:$0xff]
    %v1673 = vld [vmem:[%s13 + $0x328] sm:$0xff]
    %v1674 = vld [vmem:[%s13 + $0x330] sm:$0xff]
    %v1675 = vld [vmem:[%s13 + $0x338] sm:$0xff]
    %v1676 = vld [vmem:[%s13 + $0x340] sm:$0xff]
    %v1677 = vld [vmem:[%s13 + $0x348] sm:$0xff]
    %v1678 = vld [vmem:[%s13 + $0x350] sm:$0xff]
    %v1679 = vld [vmem:[%s13 + $0x358] sm:$0xff]
    %v1680 = vld [vmem:[%s13 + $0x360] sm:$0xff]
    %v1681 = vld [vmem:[%s13 + $0x368] sm:$0xff]
    %v1682 = vld [vmem:[%s13 + $0x370] sm:$0xff]
    %v1683 = vld [vmem:[%s13 + $0x378] sm:$0xff]
    %v1684 = vld [vmem:[%s13 + $0x380] sm:$0xff]
    %v1685 = vld [vmem:[%s13 + $0x388] sm:$0xff]
    %v1686 = vld [vmem:[%s13 + $0x390] sm:$0xff]
    %v1687 = vld [vmem:[%s13 + $0x398] sm:$0xff]
    %v1688 = vld [vmem:[%s13 + $0x3a0] sm:$0xff]
    %v1689 = vld [vmem:[%s13 + $0x3a8] sm:$0xff]
    %v1690 = vld [vmem:[%s13 + $0x3b0] sm:$0xff]
    %v1691 = vld [vmem:[%s13 + $0x3b8] sm:$0xff]
    %v1692 = vld [vmem:[%s13 + $0x3c0] sm:$0xff]
    %v1693 = vld [vmem:[%s13 + $0x3c8] sm:$0xff]
    %v1694 = vld [vmem:[%s13 + $0x3d0] sm:$0xff]
    %v1695 = vld [vmem:[%s13 + $0x3d8] sm:$0xff]
    %v1696 = vld [vmem:[%s13 + $0x3e0] sm:$0xff]
    %v1697 = vld [vmem:[%s13 + $0x3e8] sm:$0xff]
    %v1698 = vld [vmem:[%s13 + $0x3f0] sm:$0xff]
    %v1699 = vld [vmem:[%s13 + $0x3f8] sm:$0xff]
    %vm1700 = vcmask 64512
    %v1702 = vsel %vm1700, %v1568, 0
    %v1705 = vsel %vm1700, %v1569, 0
    %v1708 = vsel %vm1700, %v1570, 0
    %v1711 = vsel %vm1700, %v1571, 0
    %1713 = vmatprep.subr.mxu0 0.0
    %1714 = vmatpush1.msra.mxu0 %v1566
    %1715 = vmatprep.subr.mxu0 0.0
    %1716 = vmatpush1.msra.mxu0 0.0
    %1717 = vmatprep.subr.mxu0 0.0
    %1718 = vmatpush1.msra.mxu0 0.0
    %1719 = vmatprep.subr.mxu0 0.0
    %1720 = vmatpush1.msra.mxu0 0.0
    %1721 = vmatprep.subr.mxu0 0.0
    %1722 = vmatpush1.msra.mxu0 0.0
    %1723 = vmatprep.subr.mxu0 0.0
    %1724 = vmatpush1.msra.mxu0 0.0
    %1725 = vmatprep.subr.mxu0 0.0
    %1726 = vmatpush1.msra.mxu0 0.0
    %1727 = vmatprep.subr.mxu0 0.0
    %1728 = vmatpush1.msra.mxu0 0.0
    %1729 = vmatprep.subr.mxu0 0.0
    %1730 = vmatpush1.msra.mxu0 0.0
    %1731 = vmatprep.subr.mxu0 0.0
    %1732 = vmatpush1.msra.mxu0 0.0
    %1733 = vmatprep.subr.mxu0 0.0
    %1734 = vmatpush1.msra.mxu0 0.0
    %1735 = vmatprep.subr.mxu0 0.0
    %1736 = vmatpush1.msra.mxu0 0.0
    %1737 = vmatprep.subr.mxu0 0.0
    %1738 = vmatpush1.msra.mxu0 0.0
    %1739 = vmatprep.subr.mxu0 0.0
    %1740 = vmatpush1.msra.mxu0 0.0
    %1741 = vmatprep.subr.mxu0 0.0
    %1742 = vmatpush1.msra.mxu0 0.0
    %1743 = vmatprep.subr.mxu0 0.0
    %1744 = vmatpush1.msra.mxu0 0.0
    %1745 = vmatprep.subr.mxu0 0.0
    %1746 = vmatpush1.msra.mxu0 0.0
    %1747 = vmatprep.subr.mxu0 0.0
    %1748 = vmatpush1.msra.mxu0 0.0
    %1749 = vmatprep.subr.mxu0 0.0
    %1750 = vmatpush1.msra.mxu0 0.0
    %1751 = vmatprep.subr.mxu0 0.0
    %1752 = vmatpush1.msra.mxu0 0.0
    %1753 = vmatprep.subr.mxu0 0.0
    %1754 = vmatpush1.msra.mxu0 0.0
    %1755 = vmatprep.subr.mxu0 0.0
    %1756 = vmatpush1.msra.mxu0 0.0
    %1757 = vmatprep.subr.mxu0 0.0
    %1758 = vmatpush1.msra.mxu0 0.0
    %1759 = vmatprep.subr.mxu0 0.0
    %1760 = vmatpush1.msra.mxu0 0.0
    %1761 = vmatprep.subr.mxu0 0.0
    %1762 = vmatpush1.msra.mxu0 0.0
    %1763 = vmatprep.subr.mxu0 0.0
    %1764 = vmatpush1.msra.mxu0 0.0
    %1765 = vmatprep.subr.mxu0 0.0
    %1766 = vmatpush1.msra.mxu0 0.0
    %1767 = vmatprep.subr.mxu0 0.0
    %1768 = vmatpush1.msra.mxu0 0.0
    %1769 = vmatprep.subr.mxu0 0.0
    %1770 = vmatpush1.msra.mxu0 0.0
    %1771 = vmatprep.subr.mxu0 0.0
    %1772 = vmatpush1.msra.mxu0 0.0
    %1773 = vmatprep.subr.mxu0 0.0
    %1774 = vmatpush1.msra.mxu0 0.0
    %1775 = vmatprep.subr.mxu0 0.0
    %1776 = vmatpush1.msra.mxu0 0.0
    %1777 = vmatprep.mubr.f32.mxu0 0.0
    %1778 = vmatmul.mubr.f32.gmra.mrb[0].mxu0 %v1702
    %v1779 = vpop.f32.mrb[0].mxu0
    %v1780 = vadd.f32 0.0, %v1779
    %v1781 = vpop.f32.mrb[0].mxu0
    %1782 = vmatprep.mubr.f32.mxu0 0.0
    %1783 = vmatmul.mubr.f32.gmra.mrb[0].mxu0 %v1705
    %v1784 = vpop.f32.mrb[0].mxu0
    %v1785 = vadd.f32 0.0, %v1784
    %v1786 = vpop.f32.mrb[0].mxu0
    %1787 = vmatprep.mubr.f32.mxu0 0.0
    %1788 = vmatmul.mubr.f32.gmra.mrb[0].mxu0 %v1708
    %v1789 = vpop.f32.mrb[0].mxu0
    %v1790 = vadd.f32 0.0, %v1789
    %v1791 = vpop.f32.mrb[0].mxu0
    %1792 = vmatprep.mubr.f32.mxu0 0.0
    %1793 = vmatmul.mubr.f32.gmra.mrb[0].mxu0 %v1711
    %v1794 = vpop.f32.mrb[0].mxu0
    %v1795 = vadd.f32 0.0, %v1794
    %v1796 = vpop.f32.mrb[0].mxu0
    %1797 = vdwg.mxu0
    %1798 = vmatprep.subr.mxu0 %v1573
    %1799 = vmatpush1.msra.mxu0 %v1572
    %1800 = vmatprep.subr.mxu0 %v1575
    %1801 = vmatpush1.msra.mxu0 %v1574
    %1802 = vmatprep.subr.mxu0 %v1577
    %1803 = vmatpush1.msra.mxu0 %v1576
    %1804 = vmatprep.subr.mxu0 %v1579
    %1805 = vmatpush1.msra.mxu0 %v1578
    %1806 = vmatprep.subr.mxu0 %v1581
    %1807 = vmatpush1.msra.mxu0 %v1580
    %1808 = vmatprep.subr.mxu0 %v1583
    %1809 = vmatpush1.msra.mxu0 %v1582
    %1810 = vmatprep.subr.mxu0 %v1585
    %1811 = vmatpush1.msra.mxu0 %v1584
    %1812 = vmatprep.subr.mxu0 %v1587
    %1813 = vmatpush1.msra.mxu0 %v1586
    %1814 = vmatprep.subr.mxu0 %v1589
    %1815 = vmatpush1.msra.mxu0 %v1588
    %1816 = vmatprep.subr.mxu0 %v1591
    %1817 = vmatpush1.msra.mxu0 %v1590
    %1818 = vmatprep.subr.mxu0 %v1593
    %1819 = vmatpush1.msra.mxu0 %v1592
    %1820 = vmatprep.subr.mxu0 %v1595
    %1821 = vmatpush1.msra.mxu0 %v1594
    %1822 = vmatprep.subr.mxu0 %v1597
    %1823 = vmatpush1.msra.mxu0 %v1596
    %1824 = vmatprep.subr.mxu0 %v1599
    %1825 = vmatpush1.msra.mxu0 %v1598
    %1826 = vmatprep.subr.mxu0 %v1601
    %1827 = vmatpush1.msra.mxu0 %v1600
    %1828 = vmatprep.subr.mxu0 %v1603
    %1829 = vmatpush1.msra.mxu0 %v1602
    %1830 = vmatprep.subr.mxu0 %v1605
    %1831 = vmatpush1.msra.mxu0 %v1604
    %1832 = vmatprep.subr.mxu0 %v1607
    %1833 = vmatpush1.msra.mxu0 %v1606
    %1834 = vmatprep.subr.mxu0 %v1609
    %1835 = vmatpush1.msra.mxu0 %v1608
    %1836 = vmatprep.subr.mxu0 %v1611
    %1837 = vmatpush1.msra.mxu0 %v1610
    %1838 = vmatprep.subr.mxu0 %v1613
    %1839 = vmatpush1.msra.mxu0 %v1612
    %1840 = vmatprep.subr.mxu0 %v1615
    %1841 = vmatpush1.msra.mxu0 %v1614
    %1842 = vmatprep.subr.mxu0 %v1617
    %1843 = vmatpush1.msra.mxu0 %v1616
    %1844 = vmatprep.subr.mxu0 %v1619
    %1845 = vmatpush1.msra.mxu0 %v1618
    %1846 = vmatprep.subr.mxu0 %v1621
    %1847 = vmatpush1.msra.mxu0 %v1620
    %1848 = vmatprep.subr.mxu0 %v1623
    %1849 = vmatpush1.msra.mxu0 %v1622
    %1850 = vmatprep.subr.mxu0 %v1625
    %1851 = vmatpush1.msra.mxu0 %v1624
    %1852 = vmatprep.subr.mxu0 %v1627
    %1853 = vmatpush1.msra.mxu0 %v1626
    %1854 = vmatprep.subr.mxu0 %v1629
    %1855 = vmatpush1.msra.mxu0 %v1628
    %1856 = vmatprep.subr.mxu0 %v1631
    %1857 = vmatpush1.msra.mxu0 %v1630
    %1858 = vmatprep.subr.mxu0 %v1633
    %1859 = vmatpush1.msra.mxu0 %v1632
    %1860 = vmatprep.subr.mxu0 %v1635
    %1861 = vmatpush1.msra.mxu0 %v1634
    %1862 = vmatprep.mubr.f32.mxu0 %v1785
    %1863 = vmatmul.mubr.f32.gmra.mrb[0].mxu0 %v1780
    %v1864 = vpop.f32.mrb[0].mxu0
    %v1865 = vadd.f32 0.0, %v1864
    %v1866 = vpop.f32.mrb[0].mxu0
    %v1867 = vadd.f32 0.0, %v1866
    %1868 = vdwg.mxu0
    %1869 = vmatprep.subr.mxu0 %v1637
    %1870 = vmatpush1.msra.mxu0 %v1636
    %1871 = vmatprep.subr.mxu0 %v1639
    %1872 = vmatpush1.msra.mxu0 %v1638
    %1873 = vmatprep.subr.mxu0 %v1641
    %1874 = vmatpush1.msra.mxu0 %v1640
    %1875 = vmatprep.subr.mxu0 %v1643
    %1876 = vmatpush1.msra.mxu0 %v1642
    %1877 = vmatprep.subr.mxu0 %v1645
    %1878 = vmatpush1.msra.mxu0 %v1644
    %1879 = vmatprep.subr.mxu0 %v1647
    %1880 = vmatpush1.msra.mxu0 %v1646
    %1881 = vmatprep.subr.mxu0 %v1649
    %1882 = vmatpush1.msra.mxu0 %v1648
    %1883 = vmatprep.subr.mxu0 %v1651
    %1884 = vmatpush1.msra.mxu0 %v1650
    %1885 = vmatprep.subr.mxu0 %v1653
    %1886 = vmatpush1.msra.mxu0 %v1652
    %1887 = vmatprep.subr.mxu0 %v1655
    %1888 = vmatpush1.msra.mxu0 %v1654
    %1889 = vmatprep.subr.mxu0 %v1657
    %1890 = vmatpush1.msra.mxu0 %v1656
    %1891 = vmatprep.subr.mxu0 %v1659
    %1892 = vmatpush1.msra.mxu0 %v1658
    %1893 = vmatprep.subr.mxu0 %v1661
    %1894 = vmatpush1.msra.mxu0 %v1660
    %1895 = vmatprep.subr.mxu0 %v1663
    %1896 = vmatpush1.msra.mxu0 %v1662
    %1897 = vmatprep.subr.mxu0 %v1665
    %1898 = vmatpush1.msra.mxu0 %v1664
    %1899 = vmatprep.subr.mxu0 %v1667
    %1900 = vmatpush1.msra.mxu0 %v1666
    %1901 = vmatprep.subr.mxu0 %v1669
    %1902 = vmatpush1.msra.mxu0 %v1668
    %1903 = vmatprep.subr.mxu0 %v1671
    %1904 = vmatpush1.msra.mxu0 %v1670
    %1905 = vmatprep.subr.mxu0 %v1673
    %1906 = vmatpush1.msra.mxu0 %v1672
    %1907 = vmatprep.subr.mxu0 %v1675
    %1908 = vmatpush1.msra.mxu0 %v1674
    %1909 = vmatprep.subr.mxu0 %v1677
    %1910 = vmatpush1.msra.mxu0 %v1676
    %1911 = vmatprep.subr.mxu0 %v1679
    %1912 = vmatpush1.msra.mxu0 %v1678
    %1913 = vmatprep.subr.mxu0 %v1681
    %1914 = vmatpush1.msra.mxu0 %v1680
    %1915 = vmatprep.subr.mxu0 %v1683
    %1916 = vmatpush1.msra.mxu0 %v1682
    %1917 = vmatprep.subr.mxu0 %v1685
    %1918 = vmatpush1.msra.mxu0 %v1684
    %1919 = vmatprep.subr.mxu0 %v1687
    %1920 = vmatpush1.msra.mxu0 %v1686
    %1921 = vmatprep.subr.mxu0 %v1689
    %1922 = vmatpush1.msra.mxu0 %v1688
    %1923 = vmatprep.subr.mxu0 %v1691
    %1924 = vmatpush1.msra.mxu0 %v1690
    %1925 = vmatprep.subr.mxu0 %v1693
    %1926 = vmatpush1.msra.mxu0 %v1692
    %1927 = vmatprep.subr.mxu0 %v1695
    %1928 = vmatpush1.msra.mxu0 %v1694
    %1929 = vmatprep.subr.mxu0 %v1697
    %1930 = vmatpush1.msra.mxu0 %v1696
    %1931 = vmatprep.subr.mxu0 %v1699
    %1932 = vmatpush1.msra.mxu0 %v1698
    %1933 = vmatprep.mubr.f32.mxu0 %v1795
    %1934 = vmatmul.mubr.f32.gmra.mrb[0].mxu0 %v1790
    %v1935 = vpop.f32.mrb[0].mxu0
    %v1936 = vadd.f32 %v1865, %v1935
    %v1937 = vpop.f32.mrb[0].mxu0
    %v1938 = vadd.f32 %v1867, %v1937
    %1939 = vdwg.mxu0
    %v1940 = vld [vmem:[%s14] sm:$0x1]
    %v1941 = vld [vmem:[%s15] sm:$0x3]
    %vm1942 = vcmask 1045504
    %v1943 = vsel %vm1942, %v1936, 0.0
    %v1944 = vrot.slane %v1943, 4
    %v1945 = vadd.f32 %v1943, %v1944
    %v1946 = vrot.slane %v1945, 2
    %v1947 = vadd.f32 %v1945, %v1946
    %v1948 = vrot.slane %v1947, 1
    %v1949 = vadd.f32 %v1947, %v1948
    %vm1950 = vcmask 521216
    %v1951 = vsel %vm1950, %v1938, 0.0
    %v1952 = vrot.slane %v1951, 4
    %v1953 = vadd.f32 %v1951, %v1952
    %v1954 = vrot.slane %v1953, 2
    %v1955 = vadd.f32 %v1953, %v1954
    %v1956 = vrot.slane %v1955, 1
    %v1957 = vadd.f32 %v1955, %v1956
    %1959 = vrot.lane.b32.xlu0 %v1949, 64
    %v1960 = vpop.permute.xlu0 %1959
    %v1962 = vadd.f32 %v1949, %v1960
    %v1963 = vadd.f32 %v1962, %v1957
    %v1964 = vmul.f32 %v1963, 0.055555556
    %1966 = vrot.lane.b32.xlu0 %v1964, 64
    %v1967 = vpop.permute.xlu0 %1966
    %v1969 = vsel %vm251, %v1964, %v1967
    %v1970 = vlaneseq
    %v1971 = vshrl.u32 %v1970, 7
    %v1972 = vsub.s32 0, %v1971
    %v1973 = vrot.slane %v1969, %v1972
    %v1974 = vlaneseq
    %v1975 = vshrl.u32 %v1974, 7
    %v1976 = vsub.s32 0, %v1975
    %v1977 = vrot.slane %v1964, %v1976
    %v1978 = vsub.f32 %v1936, %v1973
    %v1979 = vsub.f32 %v1938, %v1977
    %v1980 = vmul.f32 %v1978, %v1978
    %v1981 = vmul.f32 %v1979, %v1979
    %v1982 = vsel %vm1942, %v1980, 0.0
    %v1983 = vrot.slane %v1982, 4
    %v1984 = vadd.f32 %v1982, %v1983
    %v1985 = vrot.slane %v1984, 2
    %v1986 = vadd.f32 %v1984, %v1985
    %v1987 = vrot.slane %v1986, 1
    %v1988 = vadd.f32 %v1986, %v1987
    %v1989 = vsel %vm1950, %v1981, 0.0
    %v1990 = vrot.slane %v1989, 4
    %v1991 = vadd.f32 %v1989, %v1990
    %v1992 = vrot.slane %v1991, 2
    %v1993 = vadd.f32 %v1991, %v1992
    %v1994 = vrot.slane %v1993, 1
    %v1995 = vadd.f32 %v1993, %v1994
    %1997 = vrot.lane.b32.xlu0 %v1988, 64
    %v1998 = vpop.permute.xlu0 %1997
    %v2000 = vadd.f32 %v1988, %v1998
    %v2001 = vadd.f32 %v2000, %v1995
    %v2002 = vmul.f32 %v2001, 0.055555556
    %v2003 = vadd.f32 %v2002, 1e-05
    %v2004 = vrsqrt.pop %v2003
    %v2005 = vmul.f32 %v1940, %v2004
    %v2007 = vlaneseq
    %v2008 = vshrl.u32 %v2007, 7
    %v2009 = vsub.s32 0, %v2008
    %v2010 = vrot.slane %v2005, %v2009
    %2011 = vrot.lane.b32.xlu0 %v2010, 64
    %v2012 = vpop.permute.xlu0 %2011
    %v2014 = vsel %vm251, %v2005, %v2012
    %v2015 = vlaneseq
    %v2016 = vshrl.u32 %v2015, 7
    %v2017 = vsub.s32 0, %v2016
    %v2018 = vrot.slane %v2014, %v2017
    %v2019 = vlaneseq
    %v2020 = vshrl.u32 %v2019, 7
    %v2021 = vsub.s32 0, %v2020
    %v2022 = vrot.slane %v2005, %v2021
    %v2023 = vmul.f32 %v1978, %v2018
    %v2024 = vmul.f32 %v1979, %v2022
    %v2026 = vlaneseq
    %v2027 = vshrl.u32 %v2026, 7
    %v2028 = vsub.s32 0, %v2027
    %v2029 = vrot.slane %v1941, %v2028
    %v2030 = vlaneseq
    %v2031 = vshrl.u32 %v2030, 7
    %v2032 = vsub.s32 1, %v2031
    %v2033 = vrot.slane %v1941, %v2032
    %v2036 = vadd.f32 %v2023, %v2029
    %v2037 = vadd.f32 %v2024, %v2033
    %vm2038 = vcmp.gt.f32.partialorder %v2036, 0.0
    %vm2039 = vcmp.gt.f32.partialorder %v2037, 0.0
    %v2040 = vmul.f32 %v2036, 0.2
    %v2041 = vmul.f32 %v2037, 0.2
    %v2042 = vsel %vm2038, %v2036, %v2040
    %v2043 = vsel %vm2039, %v2037, %v2041
    %2044 = vst [vmem:[%s22] sm:$0x3f] %v2042
    %2045 = vst.msk [vmem:[%s22 + $0x8] sm:$0x3f] %vm1950, %v2043
    %v2046 = vld [vmem:[#allocation11] sm:$0xff]
    %v2047 = vld [vmem:[#allocation11 + $0x8] sm:$0xff]
    %v2048 = vld [vmem:[#allocation11 + $0x10] sm:$0xff]
    %v2049 = vld [vmem:[#allocation11 + $0x18] sm:$0xff]
    %v2050 = vld [vmem:[#allocation13] sm:$0xff]
    %v2051 = vld [vmem:[#allocation13 + $0x8] sm:$0xff]
    %v2052 = vld [vmem:[#allocation13 + $0x10] sm:$0xff]
    %v2053 = vld [vmem:[#allocation13 + $0x18] sm:$0xff]
    %v2054 = vld [vmem:[#allocation13 + $0x20] sm:$0xff]
    %v2055 = vld [vmem:[#allocation13 + $0x28] sm:$0xff]
    %v2056 = vld [vmem:[#allocation13 + $0x30] sm:$0xff]
    %v2057 = vld [vmem:[#allocation13 + $0x38] sm:$0xff]
    %v2058 = vld [vmem:[#allocation13 + $0x40] sm:$0xff]
    %v2059 = vld [vmem:[#allocation13 + $0x48] sm:$0xff]
    %v2060 = vld [vmem:[#allocation13 + $0x50] sm:$0xff]
    %v2061 = vld [vmem:[#allocation13 + $0x58] sm:$0xff]
    %v2062 = vld [vmem:[#allocation13 + $0x60] sm:$0xff]
    %v2063 = vld [vmem:[#allocation13 + $0x68] sm:$0xff]
    %v2064 = vld [vmem:[#allocation13 + $0x70] sm:$0xff]
    %v2065 = vld [vmem:[#allocation13 + $0x78] sm:$0xff]
    %v2066 = vld [vmem:[#allocation13 + $0x80] sm:$0xff]
    %v2067 = vld [vmem:[#allocation13 + $0x88] sm:$0xff]
    %v2068 = vld [vmem:[#allocation13 + $0x90] sm:$0xff]
    %v2069 = vld [vmem:[#allocation13 + $0x98] sm:$0xff]
    %v2070 = vld [vmem:[#allocation13 + $0xa0] sm:$0xff]
    %v2071 = vld [vmem:[#allocation13 + $0xa8] sm:$0xff]
    %v2072 = vld [vmem:[#allocation13 + $0xb0] sm:$0xff]
    %v2073 = vld [vmem:[#allocation13 + $0xb8] sm:$0xff]
    %v2074 = vld [vmem:[#allocation13 + $0xc0] sm:$0xff]
    %v2075 = vld [vmem:[#allocation13 + $0xc8] sm:$0xff]
    %v2076 = vld [vmem:[#allocation13 + $0xd0] sm:$0xff]
    %v2077 = vld [vmem:[#allocation13 + $0xd8] sm:$0xff]
    %v2078 = vld [vmem:[#allocation13 + $0xe0] sm:$0xff]
    %v2079 = vld [vmem:[#allocation13 + $0xe8] sm:$0xff]
    %v2080 = vld [vmem:[#allocation13 + $0xf0] sm:$0xff]
    %v2081 = vld [vmem:[#allocation13 + $0xf8] sm:$0xff]
    %v2082 = vld [vmem:[#allocation13 + $0x100] sm:$0xff]
    %v2083 = vld [vmem:[#allocation13 + $0x108] sm:$0xff]
    %v2084 = vld [vmem:[#allocation13 + $0x110] sm:$0xff]
    %v2085 = vld [vmem:[#allocation13 + $0x118] sm:$0xff]
    %v2086 = vld [vmem:[#allocation13 + $0x120] sm:$0xff]
    %v2087 = vld [vmem:[#allocation13 + $0x128] sm:$0xff]
    %v2088 = vld [vmem:[#allocation13 + $0x130] sm:$0xff]
    %v2089 = vld [vmem:[#allocation13 + $0x138] sm:$0xff]
    %v2090 = vld [vmem:[#allocation13 + $0x140] sm:$0xff]
    %v2091 = vld [vmem:[#allocation13 + $0x148] sm:$0xff]
    %v2092 = vld [vmem:[#allocation13 + $0x150] sm:$0xff]
    %v2093 = vld [vmem:[#allocation13 + $0x158] sm:$0xff]
    %v2094 = vld [vmem:[#allocation13 + $0x160] sm:$0xff]
    %v2095 = vld [vmem:[#allocation13 + $0x168] sm:$0xff]
    %v2096 = vld [vmem:[#allocation13 + $0x170] sm:$0xff]
    %v2097 = vld [vmem:[#allocation13 + $0x178] sm:$0xff]
    %v2098 = vld [vmem:[#allocation13 + $0x180] sm:$0xff]
    %v2099 = vld [vmem:[#allocation13 + $0x188] sm:$0xff]
    %v2100 = vld [vmem:[#allocation13 + $0x190] sm:$0xff]
    %v2101 = vld [vmem:[#allocation13 + $0x198] sm:$0xff]
    %v2102 = vld [vmem:[#allocation13 + $0x1a0] sm:$0xff]
    %v2103 = vld [vmem:[#allocation13 + $0x1a8] sm:$0xff]
    %v2104 = vld [vmem:[#allocation13 + $0x1b0] sm:$0xff]
    %v2105 = vld [vmem:[#allocation13 + $0x1b8] sm:$0xff]
    %v2106 = vld [vmem:[#allocation13 + $0x1c0] sm:$0xff]
    %v2107 = vld [vmem:[#allocation13 + $0x1c8] sm:$0xff]
    %v2108 = vld [vmem:[#allocation13 + $0x1d0] sm:$0xff]
    %v2109 = vld [vmem:[#allocation13 + $0x1d8] sm:$0xff]
    %v2110 = vld [vmem:[#allocation13 + $0x1e0] sm:$0xff]
    %v2111 = vld [vmem:[#allocation13 + $0x1e8] sm:$0xff]
    %v2112 = vld [vmem:[#allocation13 + $0x1f0] sm:$0xff]
    %v2113 = vld [vmem:[#allocation13 + $0x1f8] sm:$0xff]
    %v2114 = vld [vmem:[#allocation13 + $0x200] sm:$0xff]
    %v2115 = vld [vmem:[#allocation13 + $0x208] sm:$0xff]
    %v2116 = vld [vmem:[#allocation13 + $0x210] sm:$0xff]
    %v2117 = vld [vmem:[#allocation13 + $0x218] sm:$0xff]
    %v2118 = vld [vmem:[#allocation13 + $0x220] sm:$0xff]
    %v2119 = vld [vmem:[#allocation13 + $0x228] sm:$0xff]
    %v2120 = vld [vmem:[#allocation13 + $0x230] sm:$0xff]
    %v2121 = vld [vmem:[#allocation13 + $0x238] sm:$0xff]
    %v2122 = vld [vmem:[#allocation13 + $0x240] sm:$0xff]
    %v2123 = vld [vmem:[#allocation13 + $0x248] sm:$0xff]
    %v2124 = vld [vmem:[#allocation13 + $0x250] sm:$0xff]
    %v2125 = vld [vmem:[#allocation13 + $0x258] sm:$0xff]
    %v2126 = vld [vmem:[#allocation13 + $0x260] sm:$0xff]
    %v2127 = vld [vmem:[#allocation13 + $0x268] sm:$0xff]
    %v2128 = vld [vmem:[#allocation13 + $0x270] sm:$0xff]
    %v2129 = vld [vmem:[#allocation13 + $0x278] sm:$0xff]
    %v2130 = vld [vmem:[#allocation13 + $0x280] sm:$0xff]
    %v2131 = vld [vmem:[#allocation13 + $0x288] sm:$0xff]
    %v2132 = vld [vmem:[#allocation13 + $0x290] sm:$0xff]
    %v2133 = vld [vmem:[#allocation13 + $0x298] sm:$0xff]
    %v2134 = vld [vmem:[#allocation13 + $0x2a0] sm:$0xff]
    %v2135 = vld [vmem:[#allocation13 + $0x2a8] sm:$0xff]
    %v2136 = vld [vmem:[#allocation13 + $0x2b0] sm:$0xff]
    %v2137 = vld [vmem:[#allocation13 + $0x2b8] sm:$0xff]
    %v2138 = vld [vmem:[#allocation13 + $0x2c0] sm:$0xff]
    %v2139 = vld [vmem:[#allocation13 + $0x2c8] sm:$0xff]
    %v2140 = vld [vmem:[#allocation13 + $0x2d0] sm:$0xff]
    %v2141 = vld [vmem:[#allocation13 + $0x2d8] sm:$0xff]
    %v2142 = vld [vmem:[#allocation13 + $0x2e0] sm:$0xff]
    %v2143 = vld [vmem:[#allocation13 + $0x2e8] sm:$0xff]
    %v2144 = vld [vmem:[#allocation13 + $0x2f0] sm:$0xff]
    %v2145 = vld [vmem:[#allocation13 + $0x2f8] sm:$0xff]
    %vm2146 = vcmask 48128
    %v2148 = vsel %vm2146, %v2046, 0
    %v2151 = vsel %vm2146, %v2047, 0
    %v2154 = vsel %vm2146, %v2048, 0
    %v2157 = vsel %vm2146, %v2049, 0
    %v2160 = vsel %vm1942, %v2042, 0
    %v2163 = vsel %vm1942, %v2043, 0
    %2165 = vmatprep.subr.mxu0 %v2163
    %2166 = vmatpush1.msra.mxu0 %v2160
    %2167 = vmatprep.subr.mxu0 0.0
    %2168 = vmatpush1.msra.mxu0 0.0
    %2169 = vmatprep.subr.mxu0 0.0
    %2170 = vmatpush1.msra.mxu0 0.0
    %2171 = vmatprep.subr.mxu0 0.0
    %2172 = vmatpush1.msra.mxu0 0.0
    %2173 = vmatprep.subr.mxu0 0.0
    %2174 = vmatpush1.msra.mxu0 0.0
    %2175 = vmatprep.subr.mxu0 0.0
    %2176 = vmatpush1.msra.mxu0 0.0
    %2177 = vmatprep.subr.mxu0 0.0
    %2178 = vmatpush1.msra.mxu0 0.0
    %2179 = vmatprep.subr.mxu0 0.0
    %2180 = vmatpush1.msra.mxu0 0.0
    %2181 = vmatprep.subr.mxu0 0.0
    %2182 = vmatpush1.msra.mxu0 0.0
    %2183 = vmatprep.subr.mxu0 0.0
    %2184 = vmatpush1.msra.mxu0 0.0
    %2185 = vmatprep.subr.mxu0 0.0
    %2186 = vmatpush1.msra.mxu0 0.0
    %2187 = vmatprep.subr.mxu0 0.0
    %2188 = vmatpush1.msra.mxu0 0.0
    %2189 = vmatprep.subr.mxu0 0.0
    %2190 = vmatpush1.msra.mxu0 0.0
    %2191 = vmatprep.subr.mxu0 0.0
    %2192 = vmatpush1.msra.mxu0 0.0
    %2193 = vmatprep.subr.mxu0 0.0
    %2194 = vmatpush1.msra.mxu0 0.0
    %2195 = vmatprep.subr.mxu0 0.0
    %2196 = vmatpush1.msra.mxu0 0.0
    %2197 = vmatprep.subr.mxu0 0.0
    %2198 = vmatpush1.msra.mxu0 0.0
    %2199 = vmatprep.subr.mxu0 0.0
    %2200 = vmatpush1.msra.mxu0 0.0
    %2201 = vmatprep.subr.mxu0 0.0
    %2202 = vmatpush1.msra.mxu0 0.0
    %2203 = vmatprep.subr.mxu0 0.0
    %2204 = vmatpush1.msra.mxu0 0.0
    %2205 = vmatprep.subr.mxu0 0.0
    %2206 = vmatpush1.msra.mxu0 0.0
    %2207 = vmatprep.subr.mxu0 0.0
    %2208 = vmatpush1.msra.mxu0 0.0
    %2209 = vmatprep.subr.mxu0 0.0
    %2210 = vmatpush1.msra.mxu0 0.0
    %2211 = vmatprep.subr.mxu0 0.0
    %2212 = vmatpush1.msra.mxu0 0.0
    %2213 = vmatprep.subr.mxu0 0.0
    %2214 = vmatpush1.msra.mxu0 0.0
    %2215 = vmatprep.subr.mxu0 0.0
    %2216 = vmatpush1.msra.mxu0 0.0
    %2217 = vmatprep.subr.mxu0 0.0
    %2218 = vmatpush1.msra.mxu0 0.0
    %2219 = vmatprep.subr.mxu0 0.0
    %2220 = vmatpush1.msra.mxu0 0.0
    %2221 = vmatprep.subr.mxu0 0.0
    %2222 = vmatpush1.msra.mxu0 0.0
    %2223 = vmatprep.subr.mxu0 0.0
    %2224 = vmatpush1.msra.mxu0 0.0
    %2225 = vmatprep.subr.mxu0 0.0
    %2226 = vmatpush1.msra.mxu0 0.0
    %2227 = vmatprep.subr.mxu0 0.0
    %2228 = vmatpush1.msra.mxu0 0.0
    %2229 = vmatprep.mubr.f32.mxu0 0.0
    %2230 = vmatmul.mubr.f32.gmra.mrb[0].mxu0 %v2148
    %v2231 = vpop.f32.mrb[0].mxu0
    %v2232 = vadd.f32 0.0, %v2231
    %v2233 = vpop.f32.mrb[0].mxu0
    %v2234 = vadd.f32 0.0, %v2233
    %2235 = vmatprep.mubr.f32.mxu0 0.0
    %2236 = vmatmul.mubr.f32.gmra.mrb[0].mxu0 %v2151
    %v2237 = vpop.f32.mrb[0].mxu0
    %v2238 = vadd.f32 0.0, %v2237
    %v2239 = vpop.f32.mrb[0].mxu0
    %v2240 = vadd.f32 0.0, %v2239
    %2241 = vmatprep.mubr.f32.mxu0 0.0
    %2242 = vmatmul.mubr.f32.gmra.mrb[0].mxu0 %v2154
    %v2243 = vpop.f32.mrb[0].mxu0
    %v2244 = vadd.f32 0.0, %v2243
    %v2245 = vpop.f32.mrb[0].mxu0
    %v2246 = vadd.f32 0.0, %v2245
    %2247 = vmatprep.mubr.f32.mxu0 0.0
    %2248 = vmatmul.mubr.f32.gmra.mrb[0].mxu0 %v2157
    %v2249 = vpop.f32.mrb[0].mxu0
    %v2250 = vadd.f32 0.0, %v2249
    %v2251 = vpop.f32.mrb[0].mxu0
    %v2252 = vadd.f32 0.0, %v2251
    %2253 = vdwg.mxu0
    %2256 = vrot.lane.b32.xlu0 %v2238, 64
    %v2257 = vpop.permute.xlu0 %2256
    %2258 = vrot.lane.b32.xlu0 %v2240, 64
    %v2259 = vpop.permute.xlu0 %2258
    %v2260 = vsel %vm251, %v2257, %v2259
    %2265 = vrot.lane.b32.xlu0 %v2250, 64
    %v2266 = vpop.permute.xlu0 %2265
    %2267 = vrot.lane.b32.xlu0 %v2252, 64
    %v2268 = vpop.permute.xlu0 %2267
    %v2269 = vsel %vm251, %v2266, %v2268
    %v2272 = vsel %vm251, %v2234, %v2257
    %v2273 = vsel %vm251, %v2246, %v2266
    %v2274 = vld [vmem:[%s18] sm:$0x1]
    %v2276 = vlaneseq
    %v2277 = vshrl.u32 %v2276, 7
    %v2278 = vsub.s32 0, %v2277
    %v2279 = vrot.slane %v2274, %v2278
    %2281 = vmatprep.subr.mxu0 0.0
    %2282 = vmatpush1.msra.mxu0 %v2050
    %2283 = vmatprep.subr.mxu0 0.0
    %2284 = vmatpush1.msra.mxu0 %v2051
    %2285 = vmatprep.subr.mxu0 0.0
    %2286 = vmatpush1.msra.mxu0 %v2052
    %2287 = vmatprep.subr.mxu0 0.0
    %2288 = vmatpush1.msra.mxu0 %v2053
    %2289 = vmatprep.subr.mxu0 0.0
    %2290 = vmatpush1.msra.mxu0 %v2054
    %2291 = vmatprep.subr.mxu0 0.0
    %2292 = vmatpush1.msra.mxu0 %v2055
    %2293 = vmatprep.subr.mxu0 0.0
    %2294 = vmatpush1.msra.mxu0 %v2056
    %2295 = vmatprep.subr.mxu0 0.0
    %2296 = vmatpush1.msra.mxu0 %v2057
    %2297 = vmatprep.subr.mxu0 0.0
    %2298 = vmatpush1.msra.mxu0 %v2058
    %2299 = vmatprep.subr.mxu0 0.0
    %2300 = vmatpush1.msra.mxu0 %v2059
    %2301 = vmatprep.subr.mxu0 0.0
    %2302 = vmatpush1.msra.mxu0 %v2060
    %2303 = vmatprep.subr.mxu0 0.0
    %2304 = vmatpush1.msra.mxu0 %v2061
    %2305 = vmatprep.subr.mxu0 0.0
    %2306 = vmatpush1.msra.mxu0 %v2062
    %2307 = vmatprep.subr.mxu0 0.0
    %2308 = vmatpush1.msra.mxu0 %v2063
    %2309 = vmatprep.subr.mxu0 0.0
    %2310 = vmatpush1.msra.mxu0 %v2064
    %2311 = vmatprep.subr.mxu0 0.0
    %2312 = vmatpush1.msra.mxu0 %v2065
    %2313 = vmatprep.subr.mxu0 0.0
    %2314 = vmatpush1.msra.mxu0 %v2066
    %2315 = vmatprep.subr.mxu0 0.0
    %2316 = vmatpush1.msra.mxu0 %v2067
    %2317 = vmatprep.subr.mxu0 0.0
    %2318 = vmatpush1.msra.mxu0 %v2068
    %2319 = vmatprep.subr.mxu0 0.0
    %2320 = vmatpush1.msra.mxu0 %v2069
    %2321 = vmatprep.subr.mxu0 0.0
    %2322 = vmatpush1.msra.mxu0 %v2070
    %2323 = vmatprep.subr.mxu0 0.0
    %2324 = vmatpush1.msra.mxu0 %v2071
    %2325 = vmatprep.subr.mxu0 0.0
    %2326 = vmatpush1.msra.mxu0 %v2072
    %2327 = vmatprep.subr.mxu0 0.0
    %2328 = vmatpush1.msra.mxu0 %v2073
    %2329 = vmatprep.subr.mxu0 0.0
    %2330 = vmatpush1.msra.mxu0 %v2074
    %2331 = vmatprep.subr.mxu0 0.0
    %2332 = vmatpush1.msra.mxu0 %v2075
    %2333 = vmatprep.subr.mxu0 0.0
    %2334 = vmatpush1.msra.mxu0 %v2076
    %2335 = vmatprep.subr.mxu0 0.0
    %2336 = vmatpush1.msra.mxu0 %v2077
    %2337 = vmatprep.subr.mxu0 0.0
    %2338 = vmatpush1.msra.mxu0 %v2078
    %2339 = vmatprep.subr.mxu0 0.0
    %2340 = vmatpush1.msra.mxu0 %v2079
    %2341 = vmatprep.subr.mxu0 0.0
    %2342 = vmatpush1.msra.mxu0 %v2080
    %2343 = vmatprep.subr.mxu0 0.0
    %2344 = vmatpush1.msra.mxu0 %v2081
    %2345 = vmatprep.mubr.f32.mxu0 %v2272
    %2346 = vmatmul.mubr.f32.gmra.mrb[0].mxu0 %v2232
    %v2347 = vpop.f32.mrb[0].mxu0
    %v2348 = vadd.f32 %v2279, %v2347
    %v2349 = vpop.f32.mrb[0].mxu0
    %2350 = vdwg.mxu0
    %2351 = vmatprep.subr.mxu0 0.0
    %2352 = vmatpush1.msra.mxu0 %v2082
    %2353 = vmatprep.subr.mxu0 0.0
    %2354 = vmatpush1.msra.mxu0 %v2083
    %2355 = vmatprep.subr.mxu0 0.0
    %2356 = vmatpush1.msra.mxu0 %v2084
    %2357 = vmatprep.subr.mxu0 0.0
    %2358 = vmatpush1.msra.mxu0 %v2085
    %2359 = vmatprep.subr.mxu0 0.0
    %2360 = vmatpush1.msra.mxu0 %v2086
    %2361 = vmatprep.subr.mxu0 0.0
    %2362 = vmatpush1.msra.mxu0 %v2087
    %2363 = vmatprep.subr.mxu0 0.0
    %2364 = vmatpush1.msra.mxu0 %v2088
    %2365 = vmatprep.subr.mxu0 0.0
    %2366 = vmatpush1.msra.mxu0 %v2089
    %2367 = vmatprep.subr.mxu0 0.0
    %2368 = vmatpush1.msra.mxu0 %v2090
    %2369 = vmatprep.subr.mxu0 0.0
    %2370 = vmatpush1.msra.mxu0 %v2091
    %2371 = vmatprep.subr.mxu0 0.0
    %2372 = vmatpush1.msra.mxu0 %v2092
    %2373 = vmatprep.subr.mxu0 0.0
    %2374 = vmatpush1.msra.mxu0 %v2093
    %2375 = vmatprep.subr.mxu0 0.0
    %2376 = vmatpush1.msra.mxu0 %v2094
    %2377 = vmatprep.subr.mxu0 0.0
    %2378 = vmatpush1.msra.mxu0 %v2095
    %2379 = vmatprep.subr.mxu0 0.0
    %2380 = vmatpush1.msra.mxu0 %v2096
    %2381 = vmatprep.subr.mxu0 0.0
    %2382 = vmatpush1.msra.mxu0 %v2097
    %2383 = vmatprep.subr.mxu0 0.0
    %2384 = vmatpush1.msra.mxu0 %v2098
    %2385 = vmatprep.subr.mxu0 0.0
    %2386 = vmatpush1.msra.mxu0 %v2099
    %2387 = vmatprep.subr.mxu0 0.0
    %2388 = vmatpush1.msra.mxu0 %v2100
    %2389 = vmatprep.subr.mxu0 0.0
    %2390 = vmatpush1.msra.mxu0 %v2101
    %2391 = vmatprep.subr.mxu0 0.0
    %2392 = vmatpush1.msra.mxu0 %v2102
    %2393 = vmatprep.subr.mxu0 0.0
    %2394 = vmatpush1.msra.mxu0 %v2103
    %2395 = vmatprep.subr.mxu0 0.0
    %2396 = vmatpush1.msra.mxu0 %v2104
    %2397 = vmatprep.subr.mxu0 0.0
    %2398 = vmatpush1.msra.mxu0 %v2105
    %2399 = vmatprep.subr.mxu0 0.0
    %2400 = vmatpush1.msra.mxu0 %v2106
    %2401 = vmatprep.subr.mxu0 0.0
    %2402 = vmatpush1.msra.mxu0 %v2107
    %2403 = vmatprep.subr.mxu0 0.0
    %2404 = vmatpush1.msra.mxu0 %v2108
    %2405 = vmatprep.subr.mxu0 0.0
    %2406 = vmatpush1.msra.mxu0 %v2109
    %2407 = vmatprep.subr.mxu0 0.0
    %2408 = vmatpush1.msra.mxu0 %v2110
    %2409 = vmatprep.subr.mxu0 0.0
    %2410 = vmatpush1.msra.mxu0 %v2111
    %2411 = vmatprep.subr.mxu0 0.0
    %2412 = vmatpush1.msra.mxu0 %v2112
    %2413 = vmatprep.subr.mxu0 0.0
    %2414 = vmatpush1.msra.mxu0 %v2113
    %2415 = vmatprep.mubr.f32.mxu0 %v2244
    %2416 = vmatmul.mubr.f32.gmra.mrb[0].mxu0 %v2260
    %v2417 = vpop.f32.mrb[0].mxu0
    %v2418 = vadd.f32 %v2348, %v2417
    %v2419 = vpop.f32.mrb[0].mxu0
    %2420 = vdwg.mxu0
    %2421 = vmatprep.subr.mxu0 0.0
    %2422 = vmatpush1.msra.mxu0 %v2114
    %2423 = vmatprep.subr.mxu0 0.0
    %2424 = vmatpush1.msra.mxu0 %v2115
    %2425 = vmatprep.subr.mxu0 0.0
    %2426 = vmatpush1.msra.mxu0 %v2116
    %2427 = vmatprep.subr.mxu0 0.0
    %2428 = vmatpush1.msra.mxu0 %v2117
    %2429 = vmatprep.subr.mxu0 0.0
    %2430 = vmatpush1.msra.mxu0 %v2118
    %2431 = vmatprep.subr.mxu0 0.0
    %2432 = vmatpush1.msra.mxu0 %v2119
    %2433 = vmatprep.subr.mxu0 0.0
    %2434 = vmatpush1.msra.mxu0 %v2120
    %2435 = vmatprep.subr.mxu0 0.0
    %2436 = vmatpush1.msra.mxu0 %v2121
    %2437 = vmatprep.subr.mxu0 0.0
    %2438 = vmatpush1.msra.mxu0 %v2122
    %2439 = vmatprep.subr.mxu0 0.0
    %2440 = vmatpush1.msra.mxu0 %v2123
    %2441 = vmatprep.subr.mxu0 0.0
    %2442 = vmatpush1.msra.mxu0 %v2124
    %2443 = vmatprep.subr.mxu0 0.0
    %2444 = vmatpush1.msra.mxu0 %v2125
    %2445 = vmatprep.subr.mxu0 0.0
    %2446 = vmatpush1.msra.mxu0 %v2126
    %2447 = vmatprep.subr.mxu0 0.0
    %2448 = vmatpush1.msra.mxu0 %v2127
    %2449 = vmatprep.subr.mxu0 0.0
    %2450 = vmatpush1.msra.mxu0 %v2128
    %2451 = vmatprep.subr.mxu0 0.0
    %2452 = vmatpush1.msra.mxu0 %v2129
    %2453 = vmatprep.subr.mxu0 0.0
    %2454 = vmatpush1.msra.mxu0 %v2130
    %2455 = vmatprep.subr.mxu0 0.0
    %2456 = vmatpush1.msra.mxu0 %v2131
    %2457 = vmatprep.subr.mxu0 0.0
    %2458 = vmatpush1.msra.mxu0 %v2132
    %2459 = vmatprep.subr.mxu0 0.0
    %2460 = vmatpush1.msra.mxu0 %v2133
    %2461 = vmatprep.subr.mxu0 0.0
    %2462 = vmatpush1.msra.mxu0 %v2134
    %2463 = vmatprep.subr.mxu0 0.0
    %2464 = vmatpush1.msra.mxu0 %v2135
    %2465 = vmatprep.subr.mxu0 0.0
    %2466 = vmatpush1.msra.mxu0 %v2136
    %2467 = vmatprep.subr.mxu0 0.0
    %2468 = vmatpush1.msra.mxu0 %v2137
    %2469 = vmatprep.subr.mxu0 0.0
    %2470 = vmatpush1.msra.mxu0 %v2138
    %2471 = vmatprep.subr.mxu0 0.0
    %2472 = vmatpush1.msra.mxu0 %v2139
    %2473 = vmatprep.subr.mxu0 0.0
    %2474 = vmatpush1.msra.mxu0 %v2140
    %2475 = vmatprep.subr.mxu0 0.0
    %2476 = vmatpush1.msra.mxu0 %v2141
    %2477 = vmatprep.subr.mxu0 0.0
    %2478 = vmatpush1.msra.mxu0 %v2142
    %2479 = vmatprep.subr.mxu0 0.0
    %2480 = vmatpush1.msra.mxu0 %v2143
    %2481 = vmatprep.subr.mxu0 0.0
    %2482 = vmatpush1.msra.mxu0 %v2144
    %2483 = vmatprep.subr.mxu0 0.0
    %2484 = vmatpush1.msra.mxu0 %v2145
    %2485 = vmatprep.mubr.f32.mxu0 %v2269
    %2486 = vmatmul.mubr.f32.gmra.mrb[0].mxu0 %v2273
    %v2487 = vpop.f32.mrb[0].mxu0
    %v2488 = vadd.f32 %v2418, %v2487
    %v2489 = vpop.f32.mrb[0].mxu0
    %2490 = vdwg.mxu0
    %vm2491 = vcmask 11264
    %2492 = vst.msk [vmem:[#allocation14] sm:$0xf] %vm2491, %v2488
    // Predicated region
    $region106: #{_lambda_.1} parent=1 // pred_check
      _
    $region107: #{_lambda_.1} parent=1 // pred_check_branch
      %2494 = sbr.rel (0) target = $region109
    $region108: #{_lambda_.1} parent=1 // pred_region
      _
    $region109: #{_lambda_.1} parent=1 // pred_fallthru
      _
    // Predicated region
    $region110: #{_lambda_.1} parent=1 // pred_check
      _
    $region111: #{_lambda_.1} parent=1 // pred_check_branch
      %2496 = sbr.rel (0) target = $region113
    $region112: #{_lambda_.1} parent=1 // pred_region
      _
    $region113: #{_lambda_.1} parent=1 // pred_fallthru
      _
    // Predicated region
    $region114: #{_lambda_.1} parent=1 // pred_check
      _
    $region115: #{_lambda_.1} parent=1 // pred_check_branch
      %2498 = sbr.rel (0) target = $region117
    $region116: #{_lambda_.1} parent=1 // pred_region
      _
    $region117: #{_lambda_.1} parent=1 // pred_fallthru
      _
    // Predicated region
    $region118: #{_lambda_.1} parent=1 // pred_check
      _
    $region119: #{_lambda_.1} parent=1 // pred_check_branch
      %2500 = sbr.rel (0) target = $region121
    $region120: #{_lambda_.1} parent=1 // pred_region
      _
    $region121: #{_lambda_.1} parent=1 // pred_fallthru
      _
    // Predicated region
    $region122: #{_lambda_.1} parent=1 // pred_check
      _
    $region123: #{_lambda_.1} parent=1 // pred_check_branch
      %2502 = sbr.rel (0) target = $region125
    $region124: #{_lambda_.1} parent=1 // pred_region
      %s2504 = ssub.s32 64, 64
      %2505 = vsyncadd [#allocation4], %s2504
      %s2507 = sshll.u32 [#allocation14], 4
      %s2508 = int_to_ptr.vmem [resolvable:$true] %s2507
      %2510 = dma.vmem_to_hbm [thread:$0]  %s2508, 64, %s23, [#allocation4]
    $region125: #{_lambda_.1} parent=1 // pred_fallthru
      _
    // Predicated region
    $region126: #{_lambda_.1} parent=1 // pred_check
      _
    $region127: #{_lambda_.1} parent=1 // pred_check_branch
      %2512 = sbr.rel (0) target = $region129
    $region128: #{_lambda_.1} parent=1 // pred_region
      _
    $region129: #{_lambda_.1} parent=1 // pred_fallthru
      _
    // Predicated region
    $region130: #{_lambda_.1} parent=1 // pred_check
      _
    $region131: #{_lambda_.1} parent=1 // pred_check_branch
      %2514 = sbr.rel (0) target = $region133
    $region132: #{_lambda_.1} parent=1 // pred_region
      _
    $region133: #{_lambda_.1} parent=1 // pred_fallthru
      _
    // Predicated region
    $region134: #{_lambda_.1} parent=1 // pred_check
      _
    $region135: #{_lambda_.1} parent=1 // pred_check_branch
      %2516 = sbr.rel (0) target = $region137
    $region136: #{_lambda_.1} parent=1 // pred_region
      _
    $region137: #{_lambda_.1} parent=1 // pred_fallthru
      _
    // Predicated region
    $region138: #{_lambda_.1} parent=1 // pred_check
      _
    $region139: #{_lambda_.1} parent=1 // pred_check_branch
      %2518 = sbr.rel (0) target = $region141
    $region140: #{_lambda_.1} parent=1 // pred_region
      _
    $region141: #{_lambda_.1} parent=1 // pred_fallthru
      _
    // Predicated region
    $region142: #{_lambda_.1} parent=1 // pred_check
      _
    $region143: #{_lambda_.1} parent=1 // pred_check_branch
      %2520 = sbr.rel (0) target = $region145
    $region144: #{_lambda_.1} parent=1 // pred_region
      %2521 = dma.done [#allocation4], 64
    $region145: #{_lambda_.1} parent=1 // pred_fallthru
      _
    %2522 = vsyncpa [#allocation3], 1
    %2523 = vsyncpa [#allocation6], 1
    %2524 = vsyncpa [#allocation9], 1
    %2525 = vsyncpa [#allocation12], 1
    %2526 = vsyncpa [#allocation4], 1

</llo_original>
